<compile_context>
chip_gen: v5e
topology: v5e:2x2
jax: 0.10.0
libtpu: 0.0.40
codegen_flags: <defaults>
</compile_context>

<pallas_src>
import functools
import math

import jax
import jax.numpy as jnp
from jax.experimental import pallas as pl
from jax.experimental.pallas import tpu as pltpu

_NEG_INF = -1e30
_VMEM_LIMIT_CACHE = None


def _vmem_limit():
    """Per-generation VMEM budget (~3/4 of physical capacity), safe fallback."""
    global _VMEM_LIMIT_CACHE
    if _VMEM_LIMIT_CACHE is None:
        try:
            cap = pltpu.get_tpu_info().vmem_capacity_bytes
            _VMEM_LIMIT_CACHE = int(cap) * 3 // 4
        except Exception:
            _VMEM_LIMIT_CACHE = 64 * 1024 * 1024
    return _VMEM_LIMIT_CACHE


# ----------------------------- config helpers -----------------------------

def find_multiple(n: int, k: int) -> int:
    if n % k == 0:
        return n
    return n + k - n % k


class ModelArgs:
    def __init__(self, dim=64, n_layers=2, n_heads=4, n_kv_heads=2,
                 vocab_size=256, multiple_of=32, ffn_dim_multiplier=None,
                 norm_eps=1e-5, max_seq_len=16):
        self.dim = dim
        self.n_layers = n_layers
        self.n_heads = n_heads
        self.n_kv_heads = n_kv_heads if n_kv_heads is not None else n_heads
        self.vocab_size = vocab_size
        self.multiple_of = multiple_of
        self.ffn_dim_multiplier = ffn_dim_multiplier if ffn_dim_multiplier is not None else 4 / 3
        self.norm_eps = norm_eps
        self.max_seq_len = max_seq_len
        self.intermediate_size = find_multiple(
            int(2 * self.ffn_dim_multiplier * self.dim), self.multiple_of)
        # FeedForward recomputes its hidden dim from intermediate_size:
        hd = int(2 * self.intermediate_size / 3)
        self.ffn_hidden = find_multiple(hd, self.multiple_of)


def precompute_freqs_cis(dim: int, end: int, theta: float = 10000.0):
    freqs = 1.0 / (theta ** (jnp.arange(0, dim, 2)[: dim // 2].astype(jnp.float32) / dim))
    t = jnp.arange(end, dtype=jnp.float32)
    f = jnp.outer(t, freqs)                      # (end, dim//2)
    return jnp.cos(f), jnp.sin(f)


def _pick_tile(dim: int, pref: int) -> int:
    """Largest power-of-two tile <= pref that divides dim, else the full dim."""
    t = pref
    while t >= 8:
        if dim % t == 0:
            return t
        t //= 2
    # TODO(synk): remainder/masked tiling path for dims with no pow2 divisor.
    return dim


# ------------------------------ Pallas kernels ------------------------------

def _norm_qkv_rope_kernel(x_ref, nw_ref, wq_ref, wk_ref, wv_ref, cos_ref, sin_ref,
                          q_ref, k_ref, v_ref, *, eps, head_dim):
    """Fused RMSNorm -> QKV (bf16 MXU) -> RoPE, outputs head-major (H, ts, hd)."""
    ts = x_ref.shape[1]
    half = head_dim // 2

    x = x_ref[0].astype(jnp.float32)                          # (ts, D)
    ms = jnp.mean(x * x, axis=-1, keepdims=True)
    xn = (x * jax.lax.rsqrt(ms + eps) * nw_ref[...]).astype(jnp.bfloat16)

    cos = cos_ref[...][None]                                  # (1, ts, hd//2)
    sin = sin_ref[...][None]

    def project(w_ref, out_ref, rope):
        n_h = out_ref.shape[1]
        t = jnp.dot(xn, w_ref[...], preferred_element_type=jnp.float32)    # (ts, n_h*hd)
        # Head-major layout (minor dim preserved): (ts, n_h, hd) -> (n_h, ts, hd).
        t = jnp.transpose(t.reshape(ts, n_h, head_dim), (1, 0, 2))
        if rope:
            # One split + two FMAs + one concat (weights were permuted per head
            # to "even features first", so this equals interleaved RoPE).
            a = t[:, :, :half]
            b = t[:, :, half:]
            t = jnp.concatenate([a * cos - b * sin, b * cos + a * sin], axis=-1)
        out_ref[0] = t.astype(out_ref.dtype)

    project(wq_ref, q_ref, True)
    project(wk_ref, k_ref, True)
    project(wv_ref, v_ref, False)


def norm_qkv_rope(h, norm_w, wq_t, wk_t, wv_t, cos, sin, *, eps,
                  n_heads, n_kv_heads, head_dim):
    B, S, D = h.shape
    half = head_dim // 2
    ts = _pick_tile(S, 256)
    kernel = functools.partial(_norm_qkv_rope_kernel, eps=eps, head_dim=head_dim)
    # TODO(synk): for very large `dim` (v7x, 64 MiB VMEM) the QKV weight N/K axes
    # must additionally be tiled instead of kept resident per program.
    return pl.pallas_call(
        kernel,
        grid=(B, S // ts),
        in_specs=[
            pl.BlockSpec((1, ts, D), lambda b, s: (b, s, 0)),
            pl.BlockSpec((1, D), lambda b, s: (0, 0)),
            pl.BlockSpec((D, n_heads * head_dim), lambda b, s: (0, 0)),
            pl.BlockSpec((D, n_kv_heads * head_dim), lambda b, s: (0, 0)),
            pl.BlockSpec((D, n_kv_heads * head_dim), lambda b, s: (0, 0)),
            pl.BlockSpec((ts, half), lambda b, s: (s, 0)),
            pl.BlockSpec((ts, half), lambda b, s: (s, 0)),
        ],
        out_specs=(
            pl.BlockSpec((1, n_heads, ts, head_dim), lambda b, s: (b, 0, s, 0)),
            pl.BlockSpec((1, n_kv_heads, ts, head_dim), lambda b, s: (b, 0, s, 0)),
            pl.BlockSpec((1, n_kv_heads, ts, head_dim), lambda b, s: (b, 0, s, 0)),
        ),
        out_shape=(
            jax.ShapeDtypeStruct((B, n_heads, S, head_dim), jnp.bfloat16),
            jax.ShapeDtypeStruct((B, n_kv_heads, S, head_dim), jnp.bfloat16),
            jax.ShapeDtypeStruct((B, n_kv_heads, S, head_dim), jnp.bfloat16),
        ),
        compiler_params=pltpu.CompilerParams(
            dimension_semantics=("parallel", "parallel"),
            vmem_limit_bytes=_vmem_limit()),
    )(h, norm_w.reshape(1, D), wq_t, wk_t, wv_t, cos, sin)


def _flash_attn_wo_kernel(q_ref, k_ref, v_ref, x_ref, wo_ref, o_ref,
                          m_sc, l_sc, acc_sc, *, scale):
    """Flash attention (online softmax, causal block skip) fused with the wo
    projection + residual add at the last KV block."""
    qi = pl.program_id(1)
    ki = pl.program_id(2)
    nk = pl.num_programs(2)
    n_heads, tq, head_dim = q_ref.shape[1], q_ref.shape[2], q_ref.shape[3]
    n_kv, tkv = k_ref.shape[1], k_ref.shape[2]
    n_rep = n_heads // n_kv
    rows = n_rep * tq                                         # grouped GQA rows

    @pl.when(ki == 0)
    def _():
        m_sc[...] = jnp.full_like(m_sc, _NEG_INF)
        l_sc[...] = jnp.zeros_like(l_sc)
        acc_sc[...] = jnp.zeros_like(acc_sc)

    # Skip KV blocks that lie entirely above the causal diagonal (~2x fewer
    # score/softmax/PV blocks for causal attention).
    @pl.when(qi * tq + (tq - 1) >= ki * tkv)
    def _():
        # GQA grouping: q heads [g*n_rep, (g+1)*n_rep) share KV head g, so a
        # pure reshape of the head-major Q tile gives (n_kv, n_rep*tq, hd)
        # without materializing K/V n_rep times.
        q = q_ref[0].reshape(n_kv, rows, head_dim)            # bf16
        k = k_ref[0]                                          # (n_kv, tkv, hd)
        v = v_ref[0]

        s = jnp.einsum('gqd,gkd->gqk', q, k,
                       preferred_element_type=jnp.float32) * scale
        r = jax.lax.broadcasted_iota(jnp.int32, (n_rep, tq, tkv), 1)
        row_pos = qi * tq + r.reshape(rows, tkv)
        col_pos = ki * tkv + jax.lax.broadcasted_iota(jnp.int32, (rows, tkv), 1)
        s = jnp.where((row_pos >= col_pos)[None], s, _NEG_INF)

        m_prev = m_sc[...]                                    # (n_kv, rows, 1)
        m_new = jnp.maximum(m_prev, jnp.max(s, axis=-1, keepdims=True))
        alpha = jnp.exp(m_prev - m_new)
        p = jnp.exp(s - m_new)
        l_sc[...] = alpha * l_sc[...] + jnp.sum(p, axis=-1, keepdims=True)
        acc_sc[...] = alpha * acc_sc[...] + jnp.einsum(
            'gqk,gkd->gqd', p.astype(v.dtype), v,
            preferred_element_type=jnp.float32)
        m_sc[...] = m_new

    @pl.when(ki == nk - 1)
    def _():
        attn = acc_sc[...] / l_sc[...]                        # exact normalization
        # (n_kv, n_rep*tq, hd) -> (tq, H*hd): head-major features for wo.
        attn = jnp.transpose(attn.reshape(n_heads, tq, head_dim), (1, 0, 2))
        attn = attn.reshape(tq, n_heads * head_dim).astype(jnp.bfloat16)
        out = jnp.dot(attn, wo_ref[...], preferred_element_type=jnp.float32)
        o_ref[0] = (out + x_ref[0].astype(jnp.float32)).astype(o_ref.dtype)


def flash_attention_wo(q, k, v, x_resid, wo_t, *, scale):
    B, n_heads, S, head_dim = q.shape
    n_kv = k.shape[1]
    D = x_resid.shape[-1]
    n_rep = n_heads // n_kv
    tq = _pick_tile(S, 256)
    tkv = _pick_tile(S, 256)
    kernel = functools.partial(_flash_attn_wo_kernel, scale=scale)
    # TODO(synk): on v7x (64 MiB VMEM) the resident wo tile should be N-tiled.
    return pl.pallas_call(
        kernel,
        grid=(B, S // tq, S // tkv),
        in_specs=[
            pl.BlockSpec((1, n_heads, tq, head_dim), lambda b, qi, ki: (b, 0, qi, 0)),
            pl.BlockSpec((1, n_kv, tkv, head_dim), lambda b, qi, ki: (b, 0, ki, 0)),
            pl.BlockSpec((1, n_kv, tkv, head_dim), lambda b, qi, ki: (b, 0, ki, 0)),
            pl.BlockSpec((1, tq, D), lambda b, qi, ki: (b, qi, 0)),
            pl.BlockSpec((n_heads * head_dim, D), lambda b, qi, ki: (0, 0)),
        ],
        out_specs=pl.BlockSpec((1, tq, D), lambda b, qi, ki: (b, qi, 0)),
        out_shape=jax.ShapeDtypeStruct((B, S, D), jnp.bfloat16),
        scratch_shapes=[pltpu.VMEM((n_kv, n_rep * tq, 1), jnp.float32),
                        pltpu.VMEM((n_kv, n_rep * tq, 1), jnp.float32),
                        pltpu.VMEM((n_kv, n_rep * tq, head_dim), jnp.float32)],
        compiler_params=pltpu.CompilerParams(
            dimension_semantics=("parallel", "parallel", "arbitrary"),
            vmem_limit_bytes=_vmem_limit()),
    )(q, k, v, x_resid, wo_t)


def _ffn_kernel(x_ref, nw_ref, w1_ref, w3_ref, w2_ref, o_ref, xn_sc, acc_sc, *, eps):
    """Fused RMSNorm + SwiGLU + residual; hidden axis tiled on grid axis 1."""
    j = pl.program_id(1)

    @pl.when(j == 0)
    def _():
        x = x_ref[...].astype(jnp.float32)
        ms = jnp.mean(x * x, axis=-1, keepdims=True)
        xn_sc[...] = (x * jax.lax.rsqrt(ms + eps) * nw_ref[...]).astype(jnp.bfloat16)
        acc_sc[...] = jnp.zeros_like(acc_sc)

    xn = xn_sc[...]
    h1 = jnp.dot(xn, w1_ref[...], preferred_element_type=jnp.float32)   # (tm, th)
    h3 = jnp.dot(xn, w3_ref[...], preferred_element_type=jnp.float32)
    g = (h1 * (1.0 / (1.0 + jnp.exp(-h1))) * h3).astype(jnp.bfloat16)   # SiLU(h1)*h3
    acc_sc[...] += jnp.dot(g, w2_ref[...], preferred_element_type=jnp.float32)

    @pl.when(j == pl.num_programs(1) - 1)
    def _():
        o_ref[...] = (acc_sc[...] + x_ref[...].astype(jnp.float32)).astype(o_ref.dtype)


def ffn_block(x2d, norm_w, w1_t, w3_t, w2_t, eps):
    M, D = x2d.shape
    Hff = w1_t.shape[1]
    tm = _pick_tile(M, 256)
    th = _pick_tile(Hff, 512)
    return pl.pallas_call(
        functools.partial(_ffn_kernel, eps=eps),
        grid=(M // tm, Hff // th),
        in_specs=[pl.BlockSpec((tm, D), lambda i, j: (i, 0)),
                  pl.BlockSpec((1, D), lambda i, j: (0, 0)),
                  pl.BlockSpec((D, th), lambda i, j: (0, j)),
                  pl.BlockSpec((D, th), lambda i, j: (0, j)),
                  pl.BlockSpec((th, D), lambda i, j: (j, 0))],
        out_specs=pl.BlockSpec((tm, D), lambda i, j: (i, 0)),
        out_shape=jax.ShapeDtypeStruct((M, D), jnp.bfloat16),
        scratch_shapes=[pltpu.VMEM((tm, D), jnp.bfloat16),
                        pltpu.VMEM((tm, D), jnp.float32)],
        compiler_params=pltpu.CompilerParams(
            dimension_semantics=("parallel", "arbitrary"),
            vmem_limit_bytes=_vmem_limit()),
    )(x2d, norm_w.reshape(1, D), w1_t, w3_t, w2_t)


def _norm_logits_kernel(x_ref, nw_ref, w_ref, o_ref, xn_sc, *, eps):
    """Fused final RMSNorm + vocab-logits matmul (norm cached per row tile)."""
    @pl.when(pl.program_id(1) == 0)
    def _():
        x = x_ref[...].astype(jnp.float32)
        ms = jnp.mean(x * x, axis=-1, keepdims=True)
        xn_sc[...] = (x * jax.lax.rsqrt(ms + eps) * nw_ref[...]).astype(jnp.bfloat16)

    o_ref[...] = jnp.dot(xn_sc[...], w_ref[...],
                         preferred_element_type=jnp.float32).astype(o_ref.dtype)


def norm_logits(x2d, norm_w, out_t, eps):
    M, D = x2d.shape
    V = out_t.shape[1]
    tm = _pick_tile(M, 256)
    tn = _pick_tile(V, 512)
    return pl.pallas_call(
        functools.partial(_norm_logits_kernel, eps=eps),
        grid=(M // tm, V // tn),
        in_specs=[pl.BlockSpec((tm, D), lambda i, j: (i, 0)),
                  pl.BlockSpec((1, D), lambda i, j: (0, 0)),
                  pl.BlockSpec((D, tn), lambda i, j: (0, j))],
        out_specs=pl.BlockSpec((tm, tn), lambda i, j: (i, j)),
        out_shape=jax.ShapeDtypeStruct((M, V), jnp.float32),
        scratch_shapes=[pltpu.VMEM((tm, D), jnp.bfloat16)],
        compiler_params=pltpu.CompilerParams(
            dimension_semantics=("parallel", "arbitrary"),
            vmem_limit_bytes=_vmem_limit()),
    )(x2d, norm_w.reshape(1, D), out_t)


# ------------------------------ parameter init ------------------------------

def init_params(key, args: ModelArgs):
    D, H, Hkv = args.dim, args.n_heads, args.n_kv_heads
    hd = D // H
    Hff = args.ffn_hidden
    keys = jax.random.split(key, 2 + 7 * args.n_layers)

    def lin_t(k, out_dim, in_dim):
        # torch nn.Linear init, then pre-transpose (K, N) and pre-cast to bf16.
        bound = 1.0 / math.sqrt(in_dim)
        w = jax.random.uniform(k, (out_dim, in_dim), jnp.float32, -bound, bound)
        return jnp.transpose(w).astype(jnp.bfloat16)

    def even_first_perm(nh):
        base = jnp.concatenate([jnp.arange(0, hd, 2), jnp.arange(1, hd, 2)])
        return (jnp.arange(nh)[:, None] * hd + base[None, :]).reshape(-1)

    perm_q = even_first_perm(H)
    perm_kv = even_first_perm(Hkv)

    params = {
        "tok_emb": jax.random.normal(keys[0], (args.vocab_size, D), jnp.float32) * 0.02,
        "out_t": lin_t(keys[1], args.vocab_size, D),
        "norm_w": jnp.ones((D,), jnp.float32),
        "layers": [],
    }
    for l in range(args.n_layers):
        k = keys[2 + 7 * l: 2 + 7 * (l + 1)]
        params["layers"].append({
            # TODO(synk): when loading a real LLaMA checkpoint apply the same
            # per-head "even features first" column permutation to wq/wk
            # (the permutation is score-invariant since Q and K share it).
            "wq_t": lin_t(k[0], H * hd, D)[:, perm_q],
            "wk_t": lin_t(k[1], Hkv * hd, D)[:, perm_kv],
            "wv_t": lin_t(k[2], Hkv * hd, D),
            "wo_t": lin_t(k[3], D, H * hd),
            "w1_t": lin_t(k[4], Hff, D),
            "w2_t": lin_t(k[5], D, Hff),
            "w3_t": lin_t(k[6], Hff, D),
            "attn_norm_w": jnp.ones((D,), jnp.float32),
            "ffn_norm_w": jnp.ones((D,), jnp.float32),
        })
    cos, sin = precompute_freqs_cis(hd, args.max_seq_len * 2)
    params["freqs_cos"] = cos
    params["freqs_sin"] = sin
    return params


# ------------------------------ full forward ------------------------------

def transformer_forward(params, tokens, start_pos, args: ModelArgs):
    B, S = tokens.shape
    D, H, Hkv = args.dim, args.n_heads, args.n_kv_heads
    hd = D // H
    M = B * S
    scale = 1.0 / math.sqrt(hd)

    # TODO(synk): token-embedding gather has no clean tiled-Pallas equivalent at
    # this size; plain JAX gather.  Residual stream is carried in bf16.
    h = params["tok_emb"][tokens].astype(jnp.bfloat16)        # (B, S, D)

    cos = params["freqs_cos"][start_pos:start_pos + S]         # (S, hd//2)
    sin = params["freqs_sin"][start_pos:start_pos + S]

    for lp in params["layers"]:
        # attention sub-block: (norm + QKV + RoPE), (flash attn + wo + residual)
        q, k, v = norm_qkv_rope(h, lp["attn_norm_w"], lp["wq_t"], lp["wk_t"],
                                lp["wv_t"], cos, sin, eps=args.norm_eps,
                                n_heads=H, n_kv_heads=Hkv, head_dim=hd)
        h = flash_attention_wo(q, k, v, h, lp["wo_t"], scale=scale)   # (B, S, D) bf16

        # feed-forward sub-block: norm + SwiGLU + residual in one kernel
        h = ffn_block(h.reshape(M, D), lp["ffn_norm_w"], lp["w1_t"],
                      lp["w3_t"], lp["w2_t"], args.norm_eps).reshape(B, S, D)

    logits = norm_logits(h.reshape(M, D), params["norm_w"], params["out_t"],
                         args.norm_eps)                        # (M, V) f32
    return logits.reshape(B, S, args.vocab_size)


# ----------------------------------- main -----------------------------------

if __name__ == "__main__":
    args = ModelArgs(dim=64, n_layers=2, n_heads=4, n_kv_heads=2,
                     vocab_size=256, multiple_of=32, norm_eps=1e-5,
                     max_seq_len=16)
    key = jax.random.PRNGKey(0)
    pkey, tkey = jax.random.split(key)
    params = init_params(pkey, args)

    batch, seqlen, start_pos = 2, 8, 0
    tokens = jax.random.randint(tkey, (batch, seqlen), 0, args.vocab_size,
                                dtype=jnp.int32)

    @jax.jit
    def fwd(p, t):
        return transformer_forward(p, t, start_pos, args)

    logits = jax.block_until_ready(fwd(params, tokens))

    assert logits.shape == (batch, seqlen, args.vocab_size)
    assert bool(jnp.all(jnp.isfinite(logits)))
    print("KERNEL_OK")
</pallas_src>

<mosaic_0001>
module attributes {stable_mosaic.version = 11 : i64} {
  func.func @_norm_logits_kernel(%arg0: i32, %arg1: i32, %arg2: memref<16x64xbf16, #tpu.memory_space<vmem>>, %arg3: memref<1x64xf32, #tpu.memory_space<vmem>>, %arg4: memref<64x256xbf16, #tpu.memory_space<vmem>>, %arg5: memref<16x256xf32, #tpu.memory_space<vmem>>, %arg6: memref<16x64xbf16, #tpu.memory_space<vmem>>) attributes {dimension_semantics = [#tpu.dimension_semantics<parallel>, #tpu.dimension_semantics<arbitrary>], iteration_bounds = array<i64: 1, 1>, scalar_prefetch = 0 : i64, scratch_operands = 1 : i64, tpu.core_type = #tpu.core_type<tc>, window_params = [{transform_indices = @transform_0, window_bounds = array<i64: 16, 64>}, {pipeline_mode = #tpu.pipeline_mode<synchronous>, transform_indices = @transform_1, window_bounds = array<i64: 1, 64>}, {transform_indices = @transform_2, window_bounds = array<i64: 64, 256>}, {transform_indices = @transform_3, window_bounds = array<i64: 16, 256>}]} {
    %c0_i32 = arith.constant 0 : i32
    %0 = arith.cmpi eq, %arg1, %c0_i32 : i32
    %1 = arith.extui %0 : i1 to i32
    %c0_i32_0 = arith.constant 0 : i32
    %2 = arith.cmpi ne, %1, %c0_i32_0 : i32
    scf.if %2 {
      %c0_6 = arith.constant 0 : index
      %c0_7 = arith.constant 0 : index
      %7 = vector.load %arg2[%c0_6, %c0_7] : memref<16x64xbf16, #tpu.memory_space<vmem>>, vector<16x64xbf16>
      %8 = arith.extf %7 : vector<16x64xbf16> to vector<16x64xf32>
      %9 = arith.mulf %8, %8 : vector<16x64xf32>
      %cst_8 = arith.constant dense<0.000000e+00> : vector<16xf32>
      %10 = vector.multi_reduction <add>, %9, %cst_8 [1] : vector<16x64xf32> to vector<16xf32>
      %11 = vector.shape_cast %10 : vector<16xf32> to vector<16x1xf32>
      %cst_9 = arith.constant 6.400000e+01 : f32
      %12 = vector.broadcast %cst_9 : f32 to vector<16x1xf32>
      %13 = arith.divf %11, %12 : vector<16x1xf32>
      %cst_10 = arith.constant 9.99999974E-6 : f32
      %14 = vector.broadcast %cst_10 : f32 to vector<16x1xf32>
      %15 = arith.addf %13, %14 : vector<16x1xf32>
      %16 = math.rsqrt %15 : vector<16x1xf32>
      %17 = vector.broadcast %16 : vector<16x1xf32> to vector<16x64xf32>
      %18 = arith.mulf %8, %17 : vector<16x64xf32>
      %c0_11 = arith.constant 0 : index
      %c0_12 = arith.constant 0 : index
      %19 = vector.load %arg3[%c0_11, %c0_12] : memref<1x64xf32, #tpu.memory_space<vmem>>, vector<1x64xf32>
      %20 = vector.broadcast %19 : vector<1x64xf32> to vector<16x64xf32>
      %21 = arith.mulf %18, %20 : vector<16x64xf32>
      %22 = arith.truncf %21 : vector<16x64xf32> to vector<16x64xbf16>
      %c0_13 = arith.constant 0 : index
      %c0_14 = arith.constant 0 : index
      %23 = vector.load %arg6[%c0_13, %c0_14] : memref<16x64xbf16, #tpu.memory_space<vmem>>, vector<16x64xbf16>
      tpu.vector_store %arg6[%c0_13, %c0_14], %22 {strides = array<i32>} : memref<16x64xbf16, #tpu.memory_space<vmem>>, vector<16x64xbf16>,
    } else {
    }
    %c0 = arith.constant 0 : index
    %c0_1 = arith.constant 0 : index
    %3 = vector.load %arg6[%c0, %c0_1] : memref<16x64xbf16, #tpu.memory_space<vmem>>, vector<16x64xbf16>
    %c0_2 = arith.constant 0 : index
    %c0_3 = arith.constant 0 : index
    %4 = vector.load %arg4[%c0_2, %c0_3] : memref<64x256xbf16, #tpu.memory_space<vmem>>, vector<64x256xbf16>
    %cst = arith.constant dense<0.000000e+00> : vector<16x256xf32>
    %5 = tpu.matmul %3, %4, %cst {dimension_numbers = #tpu.dot_dimension_numbers<[1], [0], [0], [1], [0, 0, 1, 1], [], []>} : vector<16x64xbf16>, vector<64x256xbf16>, vector<16x256xf32> -> vector<16x256xf32>
    %c0_4 = arith.constant 0 : index
    %c0_5 = arith.constant 0 : index
    %6 = vector.load %arg5[%c0_4, %c0_5] : memref<16x256xf32, #tpu.memory_space<vmem>>, vector<16x256xf32>
    tpu.vector_store %arg5[%c0_4, %c0_5], %5 {strides = array<i32>} : memref<16x256xf32, #tpu.memory_space<vmem>>, vector<16x256xf32>,
    return
  }
  func.func @transform_0(%arg0: i32, %arg1: i32) -> (i32, i32) {
    %c0_i32 = arith.constant 0 : i32
    %c0_i32_0 = arith.constant 0 : i32
    return %arg0, %c0_i32 : i32, i32
  }
  func.func @transform_1(%arg0: i32, %arg1: i32) -> (i32, i32) {
    %c0_i32 = arith.constant 0 : i32
    %c0_i32_0 = arith.constant 0 : i32
    %c0_i32_1 = arith.constant 0 : i32
    return %c0_i32, %c0_i32_0 : i32, i32
  }
  func.func @transform_2(%arg0: i32, %arg1: i32) -> (i32, i32) {
    %c0_i32 = arith.constant 0 : i32
    %c0_i32_0 = arith.constant 0 : i32
    return %c0_i32, %arg1 : i32, i32
  }
  func.func @transform_3(%arg0: i32, %arg1: i32) -> (i32, i32) {
    %c0_i32 = arith.constant 0 : i32
    return %arg0, %arg1 : i32, i32
  }
}

module attributes {stable_mosaic.version = 11 : i64} {
  func.func @_norm_qkv_rope_kernel(%arg0: i32, %arg1: i32, %arg2: memref<1x8x64xbf16, #tpu.memory_space<vmem>>, %arg3: memref<1x64xf32, #tpu.memory_space<vmem>>, %arg4: memref<64x64xbf16, #tpu.memory_space<vmem>>, %arg5: memref<64x32xbf16, #tpu.memory_space<vmem>>, %arg6: memref<64x32xbf16, #tpu.memory_space<vmem>>, %arg7: memref<8x8xf32, #tpu.memory_space<vmem>>, %arg8: memref<8x8xf32, #tpu.memory_space<vmem>>, %arg9: memref<1x4x8x16xbf16, #tpu.memory_space<vmem>>, %arg10: memref<1x2x8x16xbf16, #tpu.memory_space<vmem>>, %arg11: memref<1x2x8x16xbf16, #tpu.memory_space<vmem>>) attributes {dimension_semantics = [#tpu.dimension_semantics<parallel>, #tpu.dimension_semantics<parallel>], iteration_bounds = array<i64: 2, 1>, scalar_prefetch = 0 : i64, scratch_operands = 0 : i64, tpu.core_type = #tpu.core_type<tc>, window_params = [{transform_indices = @transform_0, window_bounds = array<i64: 1, 8, 64>}, {pipeline_mode = #tpu.pipeline_mode<synchronous>, transform_indices = @transform_1, window_bounds = array<i64: 1, 64>}, {pipeline_mode = #tpu.pipeline_mode<synchronous>, transform_indices = @transform_2, window_bounds = array<i64: 64, 64>}, {pipeline_mode = #tpu.pipeline_mode<synchronous>, transform_indices = @transform_3, window_bounds = array<i64: 64, 32>}, {pipeline_mode = #tpu.pipeline_mode<synchronous>, transform_indices = @transform_4, window_bounds = array<i64: 64, 32>}, {transform_indices = @transform_5, window_bounds = array<i64: 8, 8>}, {transform_indices = @transform_6, window_bounds = array<i64: 8, 8>}, {transform_indices = @transform_7, window_bounds = array<i64: 1, 4, 8, 16>}, {transform_indices = @transform_8, window_bounds = array<i64: 1, 2, 8, 16>}, {transform_indices = @transform_9, window_bounds = array<i64: 1, 2, 8, 16>}]} {
    %c0 = arith.constant 0 : index
    %c0_0 = arith.constant 0 : index
    %c0_1 = arith.constant 0 : index
    %0 = vector.load %arg2[%c0, %c0_0, %c0_1] : memref<1x8x64xbf16, #tpu.memory_space<vmem>>, vector<1x8x64xbf16>
    %1 = vector.shape_cast %0 : vector<1x8x64xbf16> to vector<8x64xbf16>
    %2 = arith.extf %1 : vector<8x64xbf16> to vector<8x64xf32>
    %3 = arith.mulf %2, %2 : vector<8x64xf32>
    %cst = arith.constant dense<0.000000e+00> : vector<8xf32>
    %4 = vector.multi_reduction <add>, %3, %cst [1] : vector<8x64xf32> to vector<8xf32>
    %5 = vector.shape_cast %4 : vector<8xf32> to vector<8x1xf32>
    %cst_2 = arith.constant 6.400000e+01 : f32
    %6 = vector.broadcast %cst_2 : f32 to vector<8x1xf32>
    %7 = arith.divf %5, %6 : vector<8x1xf32>
    %cst_3 = arith.constant 9.99999974E-6 : f32
    %8 = vector.broadcast %cst_3 : f32 to vector<8x1xf32>
    %9 = arith.addf %7, %8 : vector<8x1xf32>
    %10 = math.rsqrt %9 : vector<8x1xf32>
    %11 = vector.broadcast %10 : vector<8x1xf32> to vector<8x64xf32>
    %12 = arith.mulf %2, %11 : vector<8x64xf32>
    %c0_4 = arith.constant 0 : index
    %c0_5 = arith.constant 0 : index
    %13 = vector.load %arg3[%c0_4, %c0_5] : memref<1x64xf32, #tpu.memory_space<vmem>>, vector<1x64xf32>
    %14 = vector.broadcast %13 : vector<1x64xf32> to vector<8x64xf32>
    %15 = arith.mulf %12, %14 : vector<8x64xf32>
    %16 = arith.truncf %15 : vector<8x64xf32> to vector<8x64xbf16>
    %c0_6 = arith.constant 0 : index
    %c0_7 = arith.constant 0 : index
    %17 = vector.load %arg7[%c0_6, %c0_7] : memref<8x8xf32, #tpu.memory_space<vmem>>, vector<8x8xf32>
    %18 = vector.shape_cast %17 : vector<8x8xf32> to vector<1x8x8xf32>
    %c0_8 = arith.constant 0 : index
    %c0_9 = arith.constant 0 : index
    %19 = vector.load %arg8[%c0_8, %c0_9] : memref<8x8xf32, #tpu.memory_space<vmem>>, vector<8x8xf32>
    %20 = vector.shape_cast %19 : vector<8x8xf32> to vector<1x8x8xf32>
    %c0_10 = arith.constant 0 : index
    %c0_11 = arith.constant 0 : index
    %21 = vector.load %arg4[%c0_10, %c0_11] : memref<64x64xbf16, #tpu.memory_space<vmem>>, vector<64x64xbf16>
    %cst_12 = arith.constant dense<0.000000e+00> : vector<8x64xf32>
    %22 = tpu.matmul %16, %21, %cst_12 {dimension_numbers = #tpu.dot_dimension_numbers<[1], [0], [0], [1], [0, 0, 1, 1], [], []>} : vector<8x64xbf16>, vector<64x64xbf16>, vector<8x64xf32> -> vector<8x64xf32>
    %23 = vector.shape_cast %22 : vector<8x64xf32> to vector<8x4x16xf32>
    %24 = tpu.transpose %23, [1, 0, 2] : vector<8x4x16xf32> -> vector<4x8x16xf32>
    %25 = vector.extract_strided_slice %24 {offsets = [0, 0, 0], sizes = [4, 8, 8], strides = [1, 1, 1]} : vector<4x8x16xf32> to vector<4x8x8xf32>
    %26 = vector.extract_strided_slice %24 {offsets = [0, 0, 8], sizes = [4, 8, 8], strides = [1, 1, 1]} : vector<4x8x16xf32> to vector<4x8x8xf32>
    %27 = vector.broadcast %18 : vector<1x8x8xf32> to vector<4x8x8xf32>
    %28 = arith.mulf %25, %27 : vector<4x8x8xf32>
    %29 = vector.broadcast %20 : vector<1x8x8xf32> to vector<4x8x8xf32>
    %30 = arith.mulf %26, %29 : vector<4x8x8xf32>
    %31 = arith.subf %28, %30 : vector<4x8x8xf32>
    %32 = vector.broadcast %18 : vector<1x8x8xf32> to vector<4x8x8xf32>
    %33 = arith.mulf %26, %32 : vector<4x8x8xf32>
    %34 = vector.broadcast %20 : vector<1x8x8xf32> to vector<4x8x8xf32>
    %35 = arith.mulf %25, %34 : vector<4x8x8xf32>
    %36 = arith.addf %33, %35 : vector<4x8x8xf32>
    %37 = tpu.concatenate %31, %36 in 2 : vector<4x8x8xf32>, vector<4x8x8xf32> -> vector<4x8x16xf32>
    %38 = arith.truncf %37 : vector<4x8x16xf32> to vector<4x8x16xbf16>
    %c0_13 = arith.constant 0 : index
    %c0_14 = arith.constant 0 : index
    %c0_15 = arith.constant 0 : index
    %c0_16 = arith.constant 0 : index
    %39 = vector.load %arg9[%c0_13, %c0_14, %c0_15, %c0_16] : memref<1x4x8x16xbf16, #tpu.memory_space<vmem>>, vector<1x4x8x16xbf16>
    %40 = vector.shape_cast %39 : vector<1x4x8x16xbf16> to vector<4x8x16xbf16>
    %41 = vector.shape_cast %38 : vector<4x8x16xbf16> to vector<1x4x8x16xbf16>
    tpu.vector_store %arg9[%c0_13, %c0_14, %c0_15, %c0_16], %41 {strides = array<i32>} : memref<1x4x8x16xbf16, #tpu.memory_space<vmem>>, vector<1x4x8x16xbf16>,
    %c0_17 = arith.constant 0 : index
    %c0_18 = arith.constant 0 : index
    %42 = vector.load %arg5[%c0_17, %c0_18] : memref<64x32xbf16, #tpu.memory_space<vmem>>, vector<64x32xbf16>
    %cst_19 = arith.constant dense<0.000000e+00> : vector<8x32xf32>
    %43 = tpu.matmul %16, %42, %cst_19 {dimension_numbers = #tpu.dot_dimension_numbers<[1], [0], [0], [1], [0, 0, 1, 1], [], []>} : vector<8x64xbf16>, vector<64x32xbf16>, vector<8x32xf32> -> vector<8x32xf32>
    %44 = vector.shape_cast %43 : vector<8x32xf32> to vector<8x2x16xf32>
    %45 = tpu.transpose %44, [1, 0, 2] : vector<8x2x16xf32> -> vector<2x8x16xf32>
    %46 = vector.extract_strided_slice %45 {offsets = [0, 0, 0], sizes = [2, 8, 8], strides = [1, 1, 1]} : vector<2x8x16xf32> to vector<2x8x8xf32>
    %47 = vector.extract_strided_slice %45 {offsets = [0, 0, 8], sizes = [2, 8, 8], strides = [1, 1, 1]} : vector<2x8x16xf32> to vector<2x8x8xf32>
    %48 = vector.broadcast %18 : vector<1x8x8xf32> to vector<2x8x8xf32>
    %49 = arith.mulf %46, %48 : vector<2x8x8xf32>
    %50 = vector.broadcast %20 : vector<1x8x8xf32> to vector<2x8x8xf32>
    %51 = arith.mulf %47, %50 : vector<2x8x8xf32>
    %52 = arith.subf %49, %51 : vector<2x8x8xf32>
    %53 = vector.broadcast %18 : vector<1x8x8xf32> to vector<2x8x8xf32>
    %54 = arith.mulf %47, %53 : vector<2x8x8xf32>
    %55 = vector.broadcast %20 : vector<1x8x8xf32> to vector<2x8x8xf32>
    %56 = arith.mulf %46, %55 : vector<2x8x8xf32>
    %57 = arith.addf %54, %56 : vector<2x8x8xf32>
    %58 = tpu.concatenate %52, %57 in 2 : vector<2x8x8xf32>, vector<2x8x8xf32> -> vector<2x8x16xf32>
    %59 = arith.truncf %58 : vector<2x8x16xf32> to vector<2x8x16xbf16>
    %c0_20 = arith.constant 0 : index
    %c0_21 = arith.constant 0 : index
    %c0_22 = arith.constant 0 : index
    %c0_23 = arith.constant 0 : index
    %60 = vector.load %arg10[%c0_20, %c0_21, %c0_22, %c0_23] : memref<1x2x8x16xbf16, #tpu.memory_space<vmem>>, vector<1x2x8x16xbf16>
    %61 = vector.shape_cast %60 : vector<1x2x8x16xbf16> to vector<2x8x16xbf16>
    %62 = vector.shape_cast %59 : vector<2x8x16xbf16> to vector<1x2x8x16xbf16>
    tpu.vector_store %arg10[%c0_20, %c0_21, %c0_22, %c0_23], %62 {strides = array<i32>} : memref<1x2x8x16xbf16, #tpu.memory_space<vmem>>, vector<1x2x8x16xbf16>,
    %c0_24 = arith.constant 0 : index
    %c0_25 = arith.constant 0 : index
    %63 = vector.load %arg6[%c0_24, %c0_25] : memref<64x32xbf16, #tpu.memory_space<vmem>>, vector<64x32xbf16>
    %cst_26 = arith.constant dense<0.000000e+00> : vector<8x32xf32>
    %64 = tpu.matmul %16, %63, %cst_26 {dimension_numbers = #tpu.dot_dimension_numbers<[1], [0], [0], [1], [0, 0, 1, 1], [], []>} : vector<8x64xbf16>, vector<64x32xbf16>, vector<8x32xf32> -> vector<8x32xf32>
    %65 = vector.shape_cast %64 : vector<8x32xf32> to vector<8x2x16xf32>
    %66 = tpu.transpose %65, [1, 0, 2] : vector<8x2x16xf32> -> vector<2x8x16xf32>
    %67 = arith.truncf %66 : vector<2x8x16xf32> to vector<2x8x16xbf16>
    %c0_27 = arith.constant 0 : index
    %c0_28 = arith.constant 0 : index
    %c0_29 = arith.constant 0 : index
    %c0_30 = arith.constant 0 : index
    %68 = vector.load %arg11[%c0_27, %c0_28, %c0_29, %c0_30] : memref<1x2x8x16xbf16, #tpu.memory_space<vmem>>, vector<1x2x8x16xbf16>
    %69 = vector.shape_cast %68 : vector<1x2x8x16xbf16> to vector<2x8x16xbf16>
    %70 = vector.shape_cast %67 : vector<2x8x16xbf16> to vector<1x2x8x16xbf16>
    tpu.vector_store %arg11[%c0_27, %c0_28, %c0_29, %c0_30], %70 {strides = array<i32>} : memref<1x2x8x16xbf16, #tpu.memory_space<vmem>>, vector<1x2x8x16xbf16>,
    return
  }
  func.func @transform_0(%arg0: i32, %arg1: i32) -> (i32, i32, i32) {
    %c0_i32 = arith.constant 0 : i32
    %c0_i32_0 = arith.constant 0 : i32
    return %arg0, %arg1, %c0_i32 : i32, i32, i32
  }
  func.func @transform_1(%arg0: i32, %arg1: i32) -> (i32, i32) {
    %c0_i32 = arith.constant 0 : i32
    %c0_i32_0 = arith.constant 0 : i32
    %c0_i32_1 = arith.constant 0 : i32
    return %c0_i32, %c0_i32_0 : i32, i32
  }
  func.func @transform_2(%arg0: i32, %arg1: i32) -> (i32, i32) {
    %c0_i32 = arith.constant 0 : i32
    %c0_i32_0 = arith.constant 0 : i32
    %c0_i32_1 = arith.constant 0 : i32
    return %c0_i32, %c0_i32_0 : i32, i32
  }
  func.func @transform_3(%arg0: i32, %arg1: i32) -> (i32, i32) {
    %c0_i32 = arith.constant 0 : i32
    %c0_i32_0 = arith.constant 0 : i32
    %c0_i32_1 = arith.constant 0 : i32
    return %c0_i32, %c0_i32_0 : i32, i32
  }
  func.func @transform_4(%arg0: i32, %arg1: i32) -> (i32, i32) {
    %c0_i32 = arith.constant 0 : i32
    %c0_i32_0 = arith.constant 0 : i32
    %c0_i32_1 = arith.constant 0 : i32
    return %c0_i32, %c0_i32_0 : i32, i32
  }
  func.func @transform_5(%arg0: i32, %arg1: i32) -> (i32, i32) {
    %c0_i32 = arith.constant 0 : i32
    %c0_i32_0 = arith.constant 0 : i32
    return %arg1, %c0_i32 : i32, i32
  }
  func.func @transform_6(%arg0: i32, %arg1: i32) -> (i32, i32) {
    %c0_i32 = arith.constant 0 : i32
    %c0_i32_0 = arith.constant 0 : i32
    return %arg1, %c0_i32 : i32, i32
  }
  func.func @transform_7(%arg0: i32, %arg1: i32) -> (i32, i32, i32, i32) {
    %c0_i32 = arith.constant 0 : i32
    %c0_i32_0 = arith.constant 0 : i32
    %c0_i32_1 = arith.constant 0 : i32
    return %arg0, %c0_i32, %arg1, %c0_i32_0 : i32, i32, i32, i32
  }
  func.func @transform_8(%arg0: i32, %arg1: i32) -> (i32, i32, i32, i32) {
    %c0_i32 = arith.constant 0 : i32
    %c0_i32_0 = arith.constant 0 : i32
    %c0_i32_1 = arith.constant 0 : i32
    return %arg0, %c0_i32, %arg1, %c0_i32_0 : i32, i32, i32, i32
  }
  func.func @transform_9(%arg0: i32, %arg1: i32) -> (i32, i32, i32, i32) {
    %c0_i32 = arith.constant 0 : i32
    %c0_i32_0 = arith.constant 0 : i32
    %c0_i32_1 = arith.constant 0 : i32
    return %arg0, %c0_i32, %arg1, %c0_i32_0 : i32, i32, i32, i32
  }
}

module attributes {stable_mosaic.version = 11 : i64} {
  func.func @_flash_attn_wo_kernel(%arg0: i32, %arg1: i32, %arg2: i32, %arg3: memref<1x4x8x16xbf16, #tpu.memory_space<vmem>>, %arg4: memref<1x2x8x16xbf16, #tpu.memory_space<vmem>>, %arg5: memref<1x2x8x16xbf16, #tpu.memory_space<vmem>>, %arg6: memref<1x8x64xbf16, #tpu.memory_space<vmem>>, %arg7: memref<64x64xbf16, #tpu.memory_space<vmem>>, %arg8: memref<1x8x64xbf16, #tpu.memory_space<vmem>>, %arg9: memref<2x16x1xf32, #tpu.memory_space<vmem>>, %arg10: memref<2x16x1xf32, #tpu.memory_space<vmem>>, %arg11: memref<2x16x16xf32, #tpu.memory_space<vmem>>) attributes {dimension_semantics = [#tpu.dimension_semantics<parallel>, #tpu.dimension_semantics<parallel>, #tpu.dimension_semantics<arbitrary>], iteration_bounds = array<i64: 2, 1, 1>, scalar_prefetch = 0 : i64, scratch_operands = 3 : i64, tpu.core_type = #tpu.core_type<tc>, window_params = [{transform_indices = @transform_0, window_bounds = array<i64: 1, 4, 8, 16>}, {transform_indices = @transform_1, window_bounds = array<i64: 1, 2, 8, 16>}, {transform_indices = @transform_2, window_bounds = array<i64: 1, 2, 8, 16>}, {transform_indices = @transform_3, window_bounds = array<i64: 1, 8, 64>}, {pipeline_mode = #tpu.pipeline_mode<synchronous>, transform_indices = @transform_4, window_bounds = array<i64: 64, 64>}, {transform_indices = @transform_5, window_bounds = array<i64: 1, 8, 64>}]} {
    %c0_i32 = arith.constant 0 : i32
    %0 = arith.cmpi eq, %arg2, %c0_i32 : i32
    %1 = arith.extui %0 : i1 to i32
    %c0_i32_0 = arith.constant 0 : i32
    %2 = arith.cmpi ne, %1, %c0_i32_0 : i32
    scf.if %2 {
      %cst = arith.constant -1.000000e+30 : f32
      %12 = vector.broadcast %cst : f32 to vector<2x16x1xf32>
      %c0 = arith.constant 0 : index
      %c0_5 = arith.constant 0 : index
      %c0_6 = arith.constant 0 : index
      %13 = vector.load %arg9[%c0, %c0_5, %c0_6] : memref<2x16x1xf32, #tpu.memory_space<vmem>>, vector<2x16x1xf32>
      tpu.vector_store %arg9[%c0, %c0_5, %c0_6], %12 {strides = array<i32>} : memref<2x16x1xf32, #tpu.memory_space<vmem>>, vector<2x16x1xf32>,
      %cst_7 = arith.constant 0.000000e+00 : f32
      %14 = vector.broadcast %cst_7 : f32 to vector<2x16x1xf32>
      %c0_8 = arith.constant 0 : index
      %c0_9 = arith.constant 0 : index
      %c0_10 = arith.constant 0 : index
      %15 = vector.load %arg10[%c0_8, %c0_9, %c0_10] : memref<2x16x1xf32, #tpu.memory_space<vmem>>, vector<2x16x1xf32>
      tpu.vector_store %arg10[%c0_8, %c0_9, %c0_10], %14 {strides = array<i32>} : memref<2x16x1xf32, #tpu.memory_space<vmem>>, vector<2x16x1xf32>,
      %cst_11 = arith.constant 0.000000e+00 : f32
      %16 = vector.broadcast %cst_11 : f32 to vector<2x16x16xf32>
      %c0_12 = arith.constant 0 : index
      %c0_13 = arith.constant 0 : index
      %c0_14 = arith.constant 0 : index
      %17 = vector.load %arg11[%c0_12, %c0_13, %c0_14] : memref<2x16x16xf32, #tpu.memory_space<vmem>>, vector<2x16x16xf32>
      tpu.vector_store %arg11[%c0_12, %c0_13, %c0_14], %16 {strides = array<i32>} : memref<2x16x16xf32, #tpu.memory_space<vmem>>, vector<2x16x16xf32>,
    } else {
    }
    %c8_i32 = arith.constant 8 : i32
    %3 = arith.muli %arg1, %c8_i32 : i32
    %c7_i32 = arith.constant 7 : i32
    %4 = arith.addi %3, %c7_i32 : i32
    %c8_i32_1 = arith.constant 8 : i32
    %5 = arith.muli %arg2, %c8_i32_1 : i32
    %6 = arith.cmpi sge, %4, %5 : i32
    %7 = arith.extui %6 : i1 to i32
    %c0_i32_2 = arith.constant 0 : i32
    %8 = arith.cmpi ne, %7, %c0_i32_2 : i32
    scf.if %8 {
      %c0 = arith.constant 0 : index
      %c0_5 = arith.constant 0 : index
      %c0_6 = arith.constant 0 : index
      %c0_7 = arith.constant 0 : index
      %12 = vector.load %arg3[%c0, %c0_5, %c0_6, %c0_7] : memref<1x4x8x16xbf16, #tpu.memory_space<vmem>>, vector<1x4x8x16xbf16>
      %13 = vector.shape_cast %12 : vector<1x4x8x16xbf16> to vector<4x8x16xbf16>
      %14 = vector.shape_cast %13 : vector<4x8x16xbf16> to vector<2x16x16xbf16>
      %c0_8 = arith.constant 0 : index
      %c0_9 = arith.constant 0 : index
      %c0_10 = arith.constant 0 : index
      %c0_11 = arith.constant 0 : index
      %15 = vector.load %arg4[%c0_8, %c0_9, %c0_10, %c0_11] : memref<1x2x8x16xbf16, #tpu.memory_space<vmem>>, vector<1x2x8x16xbf16>
      %16 = vector.shape_cast %15 : vector<1x2x8x16xbf16> to vector<2x8x16xbf16>
      %c0_12 = arith.constant 0 : index
      %c0_13 = arith.constant 0 : index
      %c0_14 = arith.constant 0 : index
      %c0_15 = arith.constant 0 : index
      %17 = vector.load %arg5[%c0_12, %c0_13, %c0_14, %c0_15] : memref<1x2x8x16xbf16, #tpu.memory_space<vmem>>, vector<1x2x8x16xbf16>
      %18 = vector.shape_cast %17 : vector<1x2x8x16xbf16> to vector<2x8x16xbf16>
      "tpu.trace_start"() <{level = 10 : i32, message = "gqd,gkd->gqk"}> : () -> ()
      %cst = arith.constant dense<0.000000e+00> : vector<2x16x8xf32>
      %19 = tpu.matmul %14, %16, %cst {dimension_numbers = #tpu.dot_dimension_numbers<[2], [2], [1], [1], [0, 0, 0, 1, 1, 1], [0], [0]>} : vector<2x16x16xbf16>, vector<2x8x16xbf16>, vector<2x16x8xf32> -> vector<2x16x8xf32>
      "tpu.trace_stop"() : () -> ()
      %cst_16 = arith.constant 2.500000e-01 : f32
      %20 = vector.broadcast %cst_16 : f32 to vector<2x16x8xf32>
      %21 = arith.mulf %19, %20 : vector<2x16x8xf32>
      %22 = tpu.iota {dimensions = array<i32: 1>} : vector<2x8x8xi32>
      %c8_i32_17 = arith.constant 8 : i32
      %23 = arith.muli %arg1, %c8_i32_17 : i32
      %24 = vector.shape_cast %22 : vector<2x8x8xi32> to vector<16x8xi32>
      %25 = vector.broadcast %23 : i32 to vector<16x8xi32>
      %26 = arith.addi %25, %24 : vector<16x8xi32>
      %c8_i32_18 = arith.constant 8 : i32
      %27 = arith.muli %arg2, %c8_i32_18 : i32
      %28 = tpu.iota {dimensions = array<i32: 1>} : vector<16x8xi32>
      %29 = vector.broadcast %27 : i32 to vector<16x8xi32>
      %30 = arith.addi %29, %28 : vector<16x8xi32>
      %31 = arith.cmpi sge, %26, %30 : vector<16x8xi32>
      %32 = vector.shape_cast %31 : vector<16x8xi1> to vector<1x16x8xi1>
      %cst_19 = arith.constant -1.000000e+30 : f32
      %33 = vector.shape_cast %32 : vector<1x16x8xi1> to vector<1x16x8xi1>
      %34 = vector.broadcast %33 : vector<1x16x8xi1> to vector<2x16x8xi1>
      %35 = vector.broadcast %cst_19 : f32 to vector<2x16x8xf32>
      %36 = arith.select %34, %21, %35 : vector<2x16x8xi1>, vector<2x16x8xf32>
      %c0_20 = arith.constant 0 : index
      %c0_21 = arith.constant 0 : index
      %c0_22 = arith.constant 0 : index
      %37 = vector.load %arg9[%c0_20, %c0_21, %c0_22] : memref<2x16x1xf32, #tpu.memory_space<vmem>>, vector<2x16x1xf32>
      %cst_23 = arith.constant dense<0xFF800000> : vector<2x16xf32>
      %38 = vector.multi_reduction <maximumf>, %36, %cst_23 [2] : vector<2x16x8xf32> to vector<2x16xf32>
      %39 = vector.shape_cast %38 : vector<2x16xf32> to vector<2x16x1xf32>
      %40 = arith.maximumf %37, %39 : vector<2x16x1xf32>
      %41 = arith.subf %37, %40 : vector<2x16x1xf32>
      %42 = math.exp %41 : vector<2x16x1xf32>
      %43 = vector.broadcast %40 : vector<2x16x1xf32> to vector<2x16x8xf32>
      %44 = arith.subf %36, %43 : vector<2x16x8xf32>
      %45 = math.exp %44 : vector<2x16x8xf32>
      %c0_24 = arith.constant 0 : index
      %c0_25 = arith.constant 0 : index
      %c0_26 = arith.constant 0 : index
      %46 = vector.load %arg10[%c0_24, %c0_25, %c0_26] : memref<2x16x1xf32, #tpu.memory_space<vmem>>, vector<2x16x1xf32>
      %47 = arith.mulf %42, %46 : vector<2x16x1xf32>
      %cst_27 = arith.constant dense<0.000000e+00> : vector<2x16xf32>
      %48 = vector.multi_reduction <add>, %45, %cst_27 [2] : vector<2x16x8xf32> to vector<2x16xf32>
      %49 = vector.shape_cast %48 : vector<2x16xf32> to vector<2x16x1xf32>
      %50 = arith.addf %47, %49 : vector<2x16x1xf32>
      %c0_28 = arith.constant 0 : index
      %c0_29 = arith.constant 0 : index
      %c0_30 = arith.constant 0 : index
      %51 = vector.load %arg10[%c0_28, %c0_29, %c0_30] : memref<2x16x1xf32, #tpu.memory_space<vmem>>, vector<2x16x1xf32>
      tpu.vector_store %arg10[%c0_28, %c0_29, %c0_30], %50 {strides = array<i32>} : memref<2x16x1xf32, #tpu.memory_space<vmem>>, vector<2x16x1xf32>,
      %c0_31 = arith.constant 0 : index
      %c0_32 = arith.constant 0 : index
      %c0_33 = arith.constant 0 : index
      %52 = vector.load %arg11[%c0_31, %c0_32, %c0_33] : memref<2x16x16xf32, #tpu.memory_space<vmem>>, vector<2x16x16xf32>
      %53 = vector.broadcast %42 : vector<2x16x1xf32> to vector<2x16x16xf32>
      %54 = arith.mulf %53, %52 : vector<2x16x16xf32>
      %55 = arith.truncf %45 : vector<2x16x8xf32> to vector<2x16x8xbf16>
      "tpu.trace_start"() <{level = 10 : i32, message = "gqk,gkd->gqd"}> : () -> ()
      %cst_34 = arith.constant dense<0.000000e+00> : vector<2x16x16xf32>
      %56 = tpu.matmul %55, %18, %cst_34 {dimension_numbers = #tpu.dot_dimension_numbers<[2], [1], [1], [2], [0, 0, 0, 1, 1, 2], [0], [0]>} : vector<2x16x8xbf16>, vector<2x8x16xbf16>, vector<2x16x16xf32> -> vector<2x16x16xf32>
      "tpu.trace_stop"() : () -> ()
      %57 = arith.addf %54, %56 : vector<2x16x16xf32>
      %c0_35 = arith.constant 0 : index
      %c0_36 = arith.constant 0 : index
      %c0_37 = arith.constant 0 : index
      %58 = vector.load %arg11[%c0_35, %c0_36, %c0_37] : memref<2x16x16xf32, #tpu.memory_space<vmem>>, vector<2x16x16xf32>
      tpu.vector_store %arg11[%c0_35, %c0_36, %c0_37], %57 {strides = array<i32>} : memref<2x16x16xf32, #tpu.memory_space<vmem>>, vector<2x16x16xf32>,
      %c0_38 = arith.constant 0 : index
      %c0_39 = arith.constant 0 : index
      %c0_40 = arith.constant 0 : index
      %59 = vector.load %arg9[%c0_38, %c0_39, %c0_40] : memref<2x16x1xf32, #tpu.memory_space<vmem>>, vector<2x16x1xf32>
      tpu.vector_store %arg9[%c0_38, %c0_39, %c0_40], %40 {strides = array<i32>} : memref<2x16x1xf32, #tpu.memory_space<vmem>>, vector<2x16x1xf32>,
    } else {
    }
    %c0_i32_3 = arith.constant 0 : i32
    %9 = arith.cmpi eq, %arg2, %c0_i32_3 : i32
    %10 = arith.extui %9 : i1 to i32
    %c0_i32_4 = arith.constant 0 : i32
    %11 = arith.cmpi ne, %10, %c0_i32_4 : i32
    scf.if %11 {
      %c0 = arith.constant 0 : index
      %c0_5 = arith.constant 0 : index
      %c0_6 = arith.constant 0 : index
      %12 = vector.load %arg11[%c0, %c0_5, %c0_6] : memref<2x16x16xf32, #tpu.memory_space<vmem>>, vector<2x16x16xf32>
      %c0_7 = arith.constant 0 : index
      %c0_8 = arith.constant 0 : index
      %c0_9 = arith.constant 0 : index
      %13 = vector.load %arg10[%c0_7, %c0_8, %c0_9] : memref<2x16x1xf32, #tpu.memory_space<vmem>>, vector<2x16x1xf32>
      %14 = vector.broadcast %13 : vector<2x16x1xf32> to vector<2x16x16xf32>
      %15 = arith.divf %12, %14 : vector<2x16x16xf32>
      %16 = vector.shape_cast %15 : vector<2x16x16xf32> to vector<4x8x16xf32>
      %17 = tpu.transpose %16, [1, 0, 2] : vector<4x8x16xf32> -> vector<8x4x16xf32>
      %18 = vector.shape_cast %17 : vector<8x4x16xf32> to vector<8x64xf32>
      %19 = arith.truncf %18 : vector<8x64xf32> to vector<8x64xbf16>
      %c0_10 = arith.constant 0 : index
      %c0_11 = arith.constant 0 : index
      %20 = vector.load %arg7[%c0_10, %c0_11] : memref<64x64xbf16, #tpu.memory_space<vmem>>, vector<64x64xbf16>
      %cst = arith.constant dense<0.000000e+00> : vector<8x64xf32>
      %21 = tpu.matmul %19, %20, %cst {dimension_numbers = #tpu.dot_dimension_numbers<[1], [0], [0], [1], [0, 0, 1, 1], [], []>} : vector<8x64xbf16>, vector<64x64xbf16>, vector<8x64xf32> -> vector<8x64xf32>
      %c0_12 = arith.constant 0 : index
      %c0_13 = arith.constant 0 : index
      %c0_14 = arith.constant 0 : index
      %22 = vector.load %arg6[%c0_12, %c0_13, %c0_14] : memref<1x8x64xbf16, #tpu.memory_space<vmem>>, vector<1x8x64xbf16>
      %23 = vector.shape_cast %22 : vector<1x8x64xbf16> to vector<8x64xbf16>
      %24 = arith.extf %23 : vector<8x64xbf16> to vector<8x64xf32>
      %25 = arith.addf %21, %24 : vector<8x64xf32>
      %26 = arith.truncf %25 : vector<8x64xf32> to vector<8x64xbf16>
      %c0_15 = arith.constant 0 : index
      %c0_16 = arith.constant 0 : index
      %c0_17 = arith.constant 0 : index
      %27 = vector.load %arg8[%c0_15, %c0_16, %c0_17] : memref<1x8x64xbf16, #tpu.memory_space<vmem>>, vector<1x8x64xbf16>
      %28 = vector.shape_cast %27 : vector<1x8x64xbf16> to vector<8x64xbf16>
      %29 = vector.shape_cast %26 : vector<8x64xbf16> to vector<1x8x64xbf16>
      tpu.vector_store %arg8[%c0_15, %c0_16, %c0_17], %29 {strides = array<i32>} : memref<1x8x64xbf16, #tpu.memory_space<vmem>>, vector<1x8x64xbf16>,
    } else {
    }
    return
  }
  func.func @transform_0(%arg0: i32, %arg1: i32, %arg2: i32) -> (i32, i32, i32, i32) {
    %c0_i32 = arith.constant 0 : i32
    %c0_i32_0 = arith.constant 0 : i32
    %c0_i32_1 = arith.constant 0 : i32
    return %arg0, %c0_i32, %arg1, %c0_i32_0 : i32, i32, i32, i32
  }
  func.func @transform_1(%arg0: i32, %arg1: i32, %arg2: i32) -> (i32, i32, i32, i32) {
    %c0_i32 = arith.constant 0 : i32
    %c0_i32_0 = arith.constant 0 : i32
    %c0_i32_1 = arith.constant 0 : i32
    return %arg0, %c0_i32, %arg2, %c0_i32_0 : i32, i32, i32, i32
  }
  func.func @transform_2(%arg0: i32, %arg1: i32, %arg2: i32) -> (i32, i32, i32, i32) {
    %c0_i32 = arith.constant 0 : i32
    %c0_i32_0 = arith.constant 0 : i32
    %c0_i32_1 = arith.constant 0 : i32
    return %arg0, %c0_i32, %arg2, %c0_i32_0 : i32, i32, i32, i32
  }
  func.func @transform_3(%arg0: i32, %arg1: i32, %arg2: i32) -> (i32, i32, i32) {
    %c0_i32 = arith.constant 0 : i32
    %c0_i32_0 = arith.constant 0 : i32
    return %arg0, %arg1, %c0_i32 : i32, i32, i32
  }
  func.func @transform_4(%arg0: i32, %arg1: i32, %arg2: i32) -> (i32, i32) {
    %c0_i32 = arith.constant 0 : i32
    %c0_i32_0 = arith.constant 0 : i32
    %c0_i32_1 = arith.constant 0 : i32
    return %c0_i32, %c0_i32_0 : i32, i32
  }
  func.func @transform_5(%arg0: i32, %arg1: i32, %arg2: i32) -> (i32, i32, i32) {
    %c0_i32 = arith.constant 0 : i32
    %c0_i32_0 = arith.constant 0 : i32
    return %arg0, %arg1, %c0_i32 : i32, i32, i32
  }
}

module attributes {stable_mosaic.version = 11 : i64} {
  func.func @_ffn_kernel(%arg0: i32, %arg1: i32, %arg2: memref<16x64xbf16, #tpu.memory_space<vmem>>, %arg3: memref<1x64xf32, #tpu.memory_space<vmem>>, %arg4: memref<64x128xbf16, #tpu.memory_space<vmem>>, %arg5: memref<64x128xbf16, #tpu.memory_space<vmem>>, %arg6: memref<128x64xbf16, #tpu.memory_space<vmem>>, %arg7: memref<16x64xbf16, #tpu.memory_space<vmem>>, %arg8: memref<16x64xbf16, #tpu.memory_space<vmem>>, %arg9: memref<16x64xf32, #tpu.memory_space<vmem>>) attributes {dimension_semantics = [#tpu.dimension_semantics<parallel>, #tpu.dimension_semantics<arbitrary>], iteration_bounds = array<i64: 1, 1>, scalar_prefetch = 0 : i64, scratch_operands = 2 : i64, tpu.core_type = #tpu.core_type<tc>, window_params = [{transform_indices = @transform_0, window_bounds = array<i64: 16, 64>}, {pipeline_mode = #tpu.pipeline_mode<synchronous>, transform_indices = @transform_1, window_bounds = array<i64: 1, 64>}, {transform_indices = @transform_2, window_bounds = array<i64: 64, 128>}, {transform_indices = @transform_3, window_bounds = array<i64: 64, 128>}, {transform_indices = @transform_4, window_bounds = array<i64: 128, 64>}, {transform_indices = @transform_5, window_bounds = array<i64: 16, 64>}]} {
    %c0_i32 = arith.constant 0 : i32
    %0 = arith.cmpi eq, %arg1, %c0_i32 : i32
    %1 = arith.extui %0 : i1 to i32
    %c0_i32_0 = arith.constant 0 : i32
    %2 = arith.cmpi ne, %1, %c0_i32_0 : i32
    scf.if %2 {
      %c0_19 = arith.constant 0 : index
      %c0_20 = arith.constant 0 : index
      %26 = vector.load %arg2[%c0_19, %c0_20] : memref<16x64xbf16, #tpu.memory_space<vmem>>, vector<16x64xbf16>
      %27 = arith.extf %26 : vector<16x64xbf16> to vector<16x64xf32>
      %28 = arith.mulf %27, %27 : vector<16x64xf32>
      %cst_21 = arith.constant dense<0.000000e+00> : vector<16xf32>
      %29 = vector.multi_reduction <add>, %28, %cst_21 [1] : vector<16x64xf32> to vector<16xf32>
      %30 = vector.shape_cast %29 : vector<16xf32> to vector<16x1xf32>
      %cst_22 = arith.constant 6.400000e+01 : f32
      %31 = vector.broadcast %cst_22 : f32 to vector<16x1xf32>
      %32 = arith.divf %30, %31 : vector<16x1xf32>
      %cst_23 = arith.constant 9.99999974E-6 : f32
      %33 = vector.broadcast %cst_23 : f32 to vector<16x1xf32>
      %34 = arith.addf %32, %33 : vector<16x1xf32>
      %35 = math.rsqrt %34 : vector<16x1xf32>
      %36 = vector.broadcast %35 : vector<16x1xf32> to vector<16x64xf32>
      %37 = arith.mulf %27, %36 : vector<16x64xf32>
      %c0_24 = arith.constant 0 : index
      %c0_25 = arith.constant 0 : index
      %38 = vector.load %arg3[%c0_24, %c0_25] : memref<1x64xf32, #tpu.memory_space<vmem>>, vector<1x64xf32>
      %39 = vector.broadcast %38 : vector<1x64xf32> to vector<16x64xf32>
      %40 = arith.mulf %37, %39 : vector<16x64xf32>
      %41 = arith.truncf %40 : vector<16x64xf32> to vector<16x64xbf16>
      %c0_26 = arith.constant 0 : index
      %c0_27 = arith.constant 0 : index
      %42 = vector.load %arg8[%c0_26, %c0_27] : memref<16x64xbf16, #tpu.memory_space<vmem>>, vector<16x64xbf16>
      tpu.vector_store %arg8[%c0_26, %c0_27], %41 {strides = array<i32>} : memref<16x64xbf16, #tpu.memory_space<vmem>>, vector<16x64xbf16>,
      %cst_28 = arith.constant 0.000000e+00 : f32
      %43 = vector.broadcast %cst_28 : f32 to vector<16x64xf32>
      %c0_29 = arith.constant 0 : index
      %c0_30 = arith.constant 0 : index
      %44 = vector.load %arg9[%c0_29, %c0_30] : memref<16x64xf32, #tpu.memory_space<vmem>>, vector<16x64xf32>
      tpu.vector_store %arg9[%c0_29, %c0_30], %43 {strides = array<i32>} : memref<16x64xf32, #tpu.memory_space<vmem>>, vector<16x64xf32>,
    } else {
    }
    %c0 = arith.constant 0 : index
    %c0_1 = arith.constant 0 : index
    %3 = vector.load %arg8[%c0, %c0_1] : memref<16x64xbf16, #tpu.memory_space<vmem>>, vector<16x64xbf16>
    %c0_2 = arith.constant 0 : index
    %c0_3 = arith.constant 0 : index
    %4 = vector.load %arg4[%c0_2, %c0_3] : memref<64x128xbf16, #tpu.memory_space<vmem>>, vector<64x128xbf16>
    %cst = arith.constant dense<0.000000e+00> : vector<16x128xf32>
    %5 = tpu.matmul %3, %4, %cst {dimension_numbers = #tpu.dot_dimension_numbers<[1], [0], [0], [1], [0, 0, 1, 1], [], []>} : vector<16x64xbf16>, vector<64x128xbf16>, vector<16x128xf32> -> vector<16x128xf32>
    %c0_4 = arith.constant 0 : index
    %c0_5 = arith.constant 0 : index
    %6 = vector.load %arg5[%c0_4, %c0_5] : memref<64x128xbf16, #tpu.memory_space<vmem>>, vector<64x128xbf16>
    %cst_6 = arith.constant dense<0.000000e+00> : vector<16x128xf32>
    %7 = tpu.matmul %3, %6, %cst_6 {dimension_numbers = #tpu.dot_dimension_numbers<[1], [0], [0], [1], [0, 0, 1, 1], [], []>} : vector<16x64xbf16>, vector<64x128xbf16>, vector<16x128xf32> -> vector<16x128xf32>
    %cst_7 = arith.constant 0.000000e+00 : f32
    %8 = vector.broadcast %cst_7 : f32 to vector<16x128xf32>
    %9 = arith.subf %8, %5 : vector<16x128xf32>
    %10 = math.exp %9 : vector<16x128xf32>
    %cst_8 = arith.constant 1.000000e+00 : f32
    %11 = vector.broadcast %cst_8 : f32 to vector<16x128xf32>
    %12 = arith.addf %11, %10 : vector<16x128xf32>
    %cst_9 = arith.constant 1.000000e+00 : f32
    %13 = vector.broadcast %cst_9 : f32 to vector<16x128xf32>
    %14 = arith.divf %13, %12 : vector<16x128xf32>
    %15 = arith.mulf %5, %14 : vector<16x128xf32>
    %16 = arith.mulf %15, %7 : vector<16x128xf32>
    %17 = arith.truncf %16 : vector<16x128xf32> to vector<16x128xbf16>
    %c0_10 = arith.constant 0 : index
    %c0_11 = arith.constant 0 : index
    %18 = vector.load %arg9[%c0_10, %c0_11] : memref<16x64xf32, #tpu.memory_space<vmem>>, vector<16x64xf32>
    %c0_12 = arith.constant 0 : index
    %c0_13 = arith.constant 0 : index
    %19 = vector.load %arg6[%c0_12, %c0_13] : memref<128x64xbf16, #tpu.memory_space<vmem>>, vector<128x64xbf16>
    %cst_14 = arith.constant dense<0.000000e+00> : vector<16x64xf32>
    %20 = tpu.matmul %17, %19, %cst_14 {dimension_numbers = #tpu.dot_dimension_numbers<[1], [0], [0], [1], [0, 0, 1, 1], [], []>} : vector<16x128xbf16>, vector<128x64xbf16>, vector<16x64xf32> -> vector<16x64xf32>
    %21 = arith.addf %18, %20 : vector<16x64xf32>
    %c0_15 = arith.constant 0 : index
    %c0_16 = arith.constant 0 : index
    %22 = vector.load %arg9[%c0_15, %c0_16] : memref<16x64xf32, #tpu.memory_space<vmem>>, vector<16x64xf32>
    tpu.vector_store %arg9[%c0_15, %c0_16], %21 {strides = array<i32>} : memref<16x64xf32, #tpu.memory_space<vmem>>, vector<16x64xf32>,
    %c0_i32_17 = arith.constant 0 : i32
    %23 = arith.cmpi eq, %arg1, %c0_i32_17 : i32
    %24 = arith.extui %23 : i1 to i32
    %c0_i32_18 = arith.constant 0 : i32
    %25 = arith.cmpi ne, %24, %c0_i32_18 : i32
    scf.if %25 {
      %c0_19 = arith.constant 0 : index
      %c0_20 = arith.constant 0 : index
      %26 = vector.load %arg9[%c0_19, %c0_20] : memref<16x64xf32, #tpu.memory_space<vmem>>, vector<16x64xf32>
      %c0_21 = arith.constant 0 : index
      %c0_22 = arith.constant 0 : index
      %27 = vector.load %arg2[%c0_21, %c0_22] : memref<16x64xbf16, #tpu.memory_space<vmem>>, vector<16x64xbf16>
      %28 = arith.extf %27 : vector<16x64xbf16> to vector<16x64xf32>
      %29 = arith.addf %26, %28 : vector<16x64xf32>
      %30 = arith.truncf %29 : vector<16x64xf32> to vector<16x64xbf16>
      %c0_23 = arith.constant 0 : index
      %c0_24 = arith.constant 0 : index
      %31 = vector.load %arg7[%c0_23, %c0_24] : memref<16x64xbf16, #tpu.memory_space<vmem>>, vector<16x64xbf16>
      tpu.vector_store %arg7[%c0_23, %c0_24], %30 {strides = array<i32>} : memref<16x64xbf16, #tpu.memory_space<vmem>>, vector<16x64xbf16>,
    } else {
    }
    return
  }
  func.func @transform_0(%arg0: i32, %arg1: i32) -> (i32, i32) {
    %c0_i32 = arith.constant 0 : i32
    %c0_i32_0 = arith.constant 0 : i32
    return %arg0, %c0_i32 : i32, i32
  }
  func.func @transform_1(%arg0: i32, %arg1: i32) -> (i32, i32) {
    %c0_i32 = arith.constant 0 : i32
    %c0_i32_0 = arith.constant 0 : i32
    %c0_i32_1 = arith.constant 0 : i32
    return %c0_i32, %c0_i32_0 : i32, i32
  }
  func.func @transform_2(%arg0: i32, %arg1: i32) -> (i32, i32) {
    %c0_i32 = arith.constant 0 : i32
    %c0_i32_0 = arith.constant 0 : i32
    return %c0_i32, %arg1 : i32, i32
  }
  func.func @transform_3(%arg0: i32, %arg1: i32) -> (i32, i32) {
    %c0_i32 = arith.constant 0 : i32
    %c0_i32_0 = arith.constant 0 : i32
    return %c0_i32, %arg1 : i32, i32
  }
  func.func @transform_4(%arg0: i32, %arg1: i32) -> (i32, i32) {
    %c0_i32 = arith.constant 0 : i32
    %c0_i32_0 = arith.constant 0 : i32
    return %arg1, %c0_i32 : i32, i32
  }
  func.func @transform_5(%arg0: i32, %arg1: i32) -> (i32, i32) {
    %c0_i32 = arith.constant 0 : i32
    %c0_i32_0 = arith.constant 0 : i32
    return %arg0, %c0_i32 : i32, i32
  }
}

</mosaic_0001>

<llo_original>
// kernel: fwd.9
$region0: #{fwd.9}
  #allocation0 [shape = 'u32[]', space=smem, size = 0x4, offset = 0x4, fixed_abs, tag = 'smem constant byte address 0x4 - core index']
  #allocation1 [shape = 'u32[72,128]{1,0:T(1,128)}', space=vmem, size = 0x9000, scoped, tag = 'internal scratch']
  #allocation2 [shape = 'bf16[16,64]{1,0:T(8,128)(2,1)}', space=vmem, size = 0x1000, scoped, tag = 'scratch operand']
  #allocation3 [shape = 'f32[16,64]{1,0:T(8,128)}', space=vmem, size = 0x2000, scoped, tag = 'scratch operand']
  %s0 = inlined_call_operand.vmem [shape: bf16[16,64], index: 0, kind: input, shape index: {}]
  %s1 = inlined_call_operand.vmem [shape: f32[1,64], index: 1, kind: input, shape index: {}]
  %s2 = inlined_call_operand.vmem [shape: bf16[64,128], index: 2, kind: input, shape index: {}]
  %s3 = inlined_call_operand.vmem [shape: bf16[64,128], index: 3, kind: input, shape index: {}]
  %s4 = inlined_call_operand.vmem [shape: bf16[128,64], index: 4, kind: input, shape index: {}]
  %s5 = inlined_call_operand.vmem [shape: bf16[16,64], index: 5, kind: output, shape index: {}]
  %s6 = sld [smem:[#allocation0]]
  $region38: #{fwd.9} parent=0
    _
  %s8 = ssub.s32 1, %s6
  %s9 = scalar_select 0, %s8, %s6
  // Predicated region
  $region2: #{fwd.9} parent=0 // pred_check
    _
  $region3: #{fwd.9} parent=0 // pred_check_branch
    %11 = sbr.rel (0) target = $region5
  $region4: #{fwd.9} parent=0 // pred_region
    _
  $region5: #{fwd.9} parent=0 // pred_fallthru
    _
  // Predicated region
  $region6: #{fwd.9} parent=0 // pred_check
    _
  $region7: #{fwd.9} parent=0 // pred_check_branch
    %13 = sbr.rel (0) target = $region9
  $region8: #{fwd.9} parent=0 // pred_region
    _
  $region9: #{fwd.9} parent=0 // pred_fallthru
    _
  // Predicated region
  $region10: #{fwd.9} parent=0 // pred_check
    _
  $region11: #{fwd.9} parent=0 // pred_check_branch
    %15 = sbr.rel (0) target = $region13
  $region12: #{fwd.9} parent=0 // pred_region
    _
  $region13: #{fwd.9} parent=0 // pred_fallthru
    _
  // Predicated region
  $region14: #{fwd.9} parent=0 // pred_check
    _
  $region15: #{fwd.9} parent=0 // pred_check_branch
    %17 = sbr.rel (0) target = $region17
  $region16: #{fwd.9} parent=0 // pred_region
    _
  $region17: #{fwd.9} parent=0 // pred_fallthru
    _
  // Predicated region
  $region18: #{fwd.9} parent=0 // pred_check
    _
  $region19: #{fwd.9} parent=0 // pred_check_branch
    %19 = sbr.rel (0) target = $region21
  $region20: #{fwd.9} parent=0 // pred_region
    _
  $region21: #{fwd.9} parent=0 // pred_fallthru
    _
  %p21 = scmp.eq.s32.totalorder 0, 0
  // Predicated region
  $region22: #{fwd.9} parent=0 // pred_check
    %p22 = pneg %p21
  $region23: #{fwd.9} parent=0 // pred_check_branch
    %24 = sbr.rel (%p22) target = $region25
  $region24: #{fwd.9} parent=0 // pred_region
    %v25 = vld [vmem:[%s0] sm:$0xf]
    %v26 = vld [vmem:[%s0 + $0x4] sm:$0xf]
    %v27 = vunpack.c.l.bf16 %v25
    %v28 = vunpack.c.l.bf16 %v26
    %v29 = vmul.f32 %v27, %v27
    %v30 = vmul.f32 %v28, %v28
    %vm31 = vcmask 523264
    %v32 = vsel %vm31, %v29, 0.0
    %33 = vadd.xlane.f32.xlu0 %v32
    %v34 = vpop.xlane.xlu0 %33
    %v35 = vsel %vm31, %v30, 0.0
    %36 = vadd.xlane.f32.xlu0 %v35
    %v37 = vpop.xlane.xlu0 %36
    %v38 = vrcp.pop 64.0
    %v39 = vmul.f32 64.0, %v38
    %v40 = vsub.f32 1.0, %v39
    %v41 = vmul.f32 %v38, %v40
    %v42 = vadd.f32 %v38, %v41
    %vm43 = vweird.f32 %v38
    %v44 = vsel %vm43, %v38, %v42
    %v45 = vmul.f32 %v34, %v44
    %v46 = vmul.f32 %v37, %v44
    %v47 = vadd.f32 %v45, 1e-05
    %v48 = vadd.f32 %v46, 1e-05
    %v49 = vrsqrt.pop %v47
    %v50 = vmul.f32 %v49, %v47
    %v51 = vmul.f32 %v50, %v49
    %v52 = vmul.f32 0.5, %v51
    %v53 = vsub.f32 1.5, %v52
    %v54 = vmul.f32 %v49, %v53
    %vm55 = vweird.f32 %v47
    %vm56 = vweird.f32 %v49
    %vm57 = vmor %vm55, %vm56
    %v58 = vsel %vm57, %v49, %v54
    %v59 = vrsqrt.pop %v48
    %v60 = vmul.f32 %v59, %v48
    %v61 = vmul.f32 %v60, %v59
    %v62 = vmul.f32 0.5, %v61
    %v63 = vsub.f32 1.5, %v62
    %v64 = vmul.f32 %v59, %v63
    %vm65 = vweird.f32 %v48
    %vm66 = vweird.f32 %v59
    %vm67 = vmor %vm65, %vm66
    %v68 = vsel %vm67, %v59, %v64
    %v69 = vmul.f32 %v27, %v58
    %v70 = vmul.f32 %v28, %v68
    %v71 = vld [vmem:[%s1] sm:$0x1]
    %v73 = vperm.slane %v71, 0
    %v75 = vmul.f32 %v69, %v73
    %v76 = vmul.f32 %v70, %v73
    %v77 = vpack.c.bf16 %v75, %v75
    %v78 = vpack.c.bf16 %v76, %v76
    %vm79 = vcmask 519168
    %80 = vst.msk [vmem:[#allocation2] sm:$0xf] %vm79, %v77
    %81 = vst.msk [vmem:[#allocation2 + $0x4] sm:$0xf] %vm79, %v78
    %82 = vst.msk [vmem:[#allocation3] sm:$0xff] %vm31, 0.0
    %83 = vst.msk [vmem:[#allocation3 + $0x8] sm:$0xff] %vm31, 0.0
  $region25: #{fwd.9} parent=0 // pred_fallthru
    _
  %v84 = vld [vmem:[#allocation2] sm:$0xf]
  %v85 = vld [vmem:[#allocation2 + $0x4] sm:$0xf]
  %v86 = vld [vmem:[%s2] sm:$0xf]
  %v87 = vld [vmem:[%s2 + $0x4] sm:$0xf]
  %v88 = vld [vmem:[%s2 + $0x8] sm:$0xf]
  %v89 = vld [vmem:[%s2 + $0xc] sm:$0xf]
  %v90 = vld [vmem:[%s2 + $0x10] sm:$0xf]
  %v91 = vld [vmem:[%s2 + $0x14] sm:$0xf]
  %v92 = vld [vmem:[%s2 + $0x18] sm:$0xf]
  %v93 = vld [vmem:[%s2 + $0x1c] sm:$0xf]
  %v96 = vunpack.c.l.b16 %v84
  %v97 = vunpack.c.l.b16 %v85
  %v98 = vpack.c.b16 %v97, %v96
  %v107 = vunpack.c.l.b16 %v86
  %v108 = vunpack.c.l.b16 %v87
  %v109 = vunpack.c.l.b16 %v88
  %v110 = vunpack.c.l.b16 %v89
  %v111 = vunpack.c.l.b16 %v90
  %v112 = vunpack.c.l.b16 %v91
  %v113 = vunpack.c.l.b16 %v92
  %v114 = vunpack.c.l.b16 %v93
  %v115 = vpack.c.b16 %v108, %v107
  %v116 = vpack.c.b16 %v110, %v109
  %v117 = vpack.c.b16 %v112, %v111
  %v118 = vpack.c.b16 %v114, %v113
  %vm123 = vcmask 523264
  %v125 = vsel %vm123, %v98, 0
  %127 = vmatpush.bf16.msra.mxu0 0
  %128 = vmatpush.bf16.msra.mxu0 0
  %129 = vmatpush.bf16.msra.mxu0 0
  %130 = vmatpush.bf16.msra.mxu0 0
  %131 = vmatpush.bf16.msra.mxu0 %v118
  %132 = vmatpush.bf16.msra.mxu0 %v117
  %133 = vmatpush.bf16.msra.mxu0 %v116
  %134 = vmatpush.bf16.msra.mxu0 %v115
  %135 = vmatmul.bf16.gmra.mxu0 %v125
  %v136 = vpop.f32.mrf.mxu0
  %v137 = vadd.f32 0.0, %v136
  %v138 = vpop.f32.mrf.mxu0
  %v139 = vadd.f32 0.0, %v138
  %140 = vdwg.mxu0
  %v141 = vld [vmem:[%s3] sm:$0xf]
  %v142 = vld [vmem:[%s3 + $0x4] sm:$0xf]
  %v143 = vld [vmem:[%s3 + $0x8] sm:$0xf]
  %v144 = vld [vmem:[%s3 + $0xc] sm:$0xf]
  %v145 = vld [vmem:[%s3 + $0x10] sm:$0xf]
  %v146 = vld [vmem:[%s3 + $0x14] sm:$0xf]
  %v147 = vld [vmem:[%s3 + $0x18] sm:$0xf]
  %v148 = vld [vmem:[%s3 + $0x1c] sm:$0xf]
  %v157 = vunpack.c.l.b16 %v141
  %v158 = vunpack.c.l.b16 %v142
  %v159 = vunpack.c.l.b16 %v143
  %v160 = vunpack.c.l.b16 %v144
  %v161 = vunpack.c.l.b16 %v145
  %v162 = vunpack.c.l.b16 %v146
  %v163 = vunpack.c.l.b16 %v147
  %v164 = vunpack.c.l.b16 %v148
  %v165 = vpack.c.b16 %v158, %v157
  %v166 = vpack.c.b16 %v160, %v159
  %v167 = vpack.c.b16 %v162, %v161
  %v168 = vpack.c.b16 %v164, %v163
  %173 = vmatpush.bf16.msra.mxu0 0
  %174 = vmatpush.bf16.msra.mxu0 0
  %175 = vmatpush.bf16.msra.mxu0 0
  %176 = vmatpush.bf16.msra.mxu0 0
  %177 = vmatpush.bf16.msra.mxu0 %v168
  %178 = vmatpush.bf16.msra.mxu0 %v167
  %179 = vmatpush.bf16.msra.mxu0 %v166
  %180 = vmatpush.bf16.msra.mxu0 %v165
  %181 = vmatmul.bf16.gmra.mxu0 %v125
  %v182 = vpop.f32.mrf.mxu0
  %v183 = vadd.f32 0.0, %v182
  %v184 = vpop.f32.mrf.mxu0
  %v185 = vadd.f32 0.0, %v184
  %186 = vdwg.mxu0
  %v187 = vsub.f32 0.0, %v137
  %v188 = vsub.f32 0.0, %v139
  %v189 = vmul.f32 %v187, 1.442695
  %v190 = vpow.pop %v189
  %v191 = vmul.f32 %v188, 1.442695
  %v192 = vpow.pop %v191
  %v193 = vadd.f32 %v190, 1.0
  %v194 = vadd.f32 %v192, 1.0
  %v195 = vrcp.pop %v193
  %v196 = vmul.f32 %v193, %v195
  %v197 = vsub.f32 1.0, %v196
  %v198 = vmul.f32 %v195, %v197
  %v199 = vadd.f32 %v195, %v198
  %vm200 = vweird.f32 %v193
  %vm201 = vweird.f32 %v195
  %vm202 = vmor %vm200, %vm201
  %v203 = vsel %vm202, %v195, %v199
  %v204 = vand.u32 2147483647, %v193
  %vm205 = vcmp.eq.f32.partialorder %v204, 8.507059e+37
  %v206 = vand.u32 %v193, 2147483648
  %v207 = vor.u32 1.1754944e-38, %v206
  %v208 = vsel %vm205, %v207, %v203
  %v209 = vmul.f32 1.0, %v208
  %v210 = vrcp.pop %v194
  %v211 = vmul.f32 %v194, %v210
  %v212 = vsub.f32 1.0, %v211
  %v213 = vmul.f32 %v210, %v212
  %v214 = vadd.f32 %v210, %v213
  %vm215 = vweird.f32 %v194
  %vm216 = vweird.f32 %v210
  %vm217 = vmor %vm215, %vm216
  %v218 = vsel %vm217, %v210, %v214
  %v219 = vand.u32 2147483647, %v194
  %vm220 = vcmp.eq.f32.partialorder %v219, 8.507059e+37
  %v221 = vand.u32 %v194, 2147483648
  %v222 = vor.u32 1.1754944e-38, %v221
  %v223 = vsel %vm220, %v222, %v218
  %v224 = vmul.f32 1.0, %v223
  %v225 = vmul.f32 %v137, %v209
  %v226 = vmul.f32 %v139, %v224
  %v227 = vmul.f32 %v225, %v183
  %v228 = vmul.f32 %v226, %v185
  %v229 = vpack.c.bf16 %v228, %v227
  %v230 = vld [vmem:[#allocation3] sm:$0xff]
  %v231 = vld [vmem:[#allocation3 + $0x8] sm:$0xff]
  %v232 = vld [vmem:[%s4] sm:$0xf]
  %v233 = vld [vmem:[%s4 + $0x4] sm:$0xf]
  %v234 = vld [vmem:[%s4 + $0x8] sm:$0xf]
  %v235 = vld [vmem:[%s4 + $0xc] sm:$0xf]
  %v236 = vld [vmem:[%s4 + $0x10] sm:$0xf]
  %v237 = vld [vmem:[%s4 + $0x14] sm:$0xf]
  %v238 = vld [vmem:[%s4 + $0x18] sm:$0xf]
  %v239 = vld [vmem:[%s4 + $0x1c] sm:$0xf]
  %v240 = vld [vmem:[%s4 + $0x20] sm:$0xf]
  %v241 = vld [vmem:[%s4 + $0x24] sm:$0xf]
  %v242 = vld [vmem:[%s4 + $0x28] sm:$0xf]
  %v243 = vld [vmem:[%s4 + $0x2c] sm:$0xf]
  %v244 = vld [vmem:[%s4 + $0x30] sm:$0xf]
  %v245 = vld [vmem:[%s4 + $0x34] sm:$0xf]
  %v246 = vld [vmem:[%s4 + $0x38] sm:$0xf]
  %v247 = vld [vmem:[%s4 + $0x3c] sm:$0xf]
  %v264 = vunpack.c.l.b16 %v232
  %v265 = vunpack.c.l.b16 %v233
  %v266 = vunpack.c.l.b16 %v234
  %v267 = vunpack.c.l.b16 %v235
  %v268 = vunpack.c.l.b16 %v236
  %v269 = vunpack.c.l.b16 %v237
  %v270 = vunpack.c.l.b16 %v238
  %v271 = vunpack.c.l.b16 %v239
  %v272 = vunpack.c.l.b16 %v240
  %v273 = vunpack.c.l.b16 %v241
  %v274 = vunpack.c.l.b16 %v242
  %v275 = vunpack.c.l.b16 %v243
  %v276 = vunpack.c.l.b16 %v244
  %v277 = vunpack.c.l.b16 %v245
  %v278 = vunpack.c.l.b16 %v246
  %v279 = vunpack.c.l.b16 %v247
  %v280 = vpack.c.b16 %v265, %v264
  %v281 = vpack.c.b16 %v267, %v266
  %v282 = vpack.c.b16 %v269, %v268
  %v283 = vpack.c.b16 %v271, %v270
  %v284 = vpack.c.b16 %v273, %v272
  %v285 = vpack.c.b16 %v275, %v274
  %v286 = vpack.c.b16 %v277, %v276
  %v287 = vpack.c.b16 %v279, %v278
  %296 = vmatpush.bf16.msra.mxu0 %v287
  %297 = vmatpush.bf16.msra.mxu0 %v286
  %298 = vmatpush.bf16.msra.mxu0 %v285
  %299 = vmatpush.bf16.msra.mxu0 %v284
  %300 = vmatpush.bf16.msra.mxu0 %v283
  %301 = vmatpush.bf16.msra.mxu0 %v282
  %302 = vmatpush.bf16.msra.mxu0 %v281
  %303 = vmatpush.bf16.msra.mxu0 %v280
  %304 = vmatmul.bf16.gmra.mxu0 %v229
  %v305 = vpop.f32.mrf.mxu0
  %v306 = vadd.f32 0.0, %v305
  %v307 = vpop.f32.mrf.mxu0
  %v308 = vadd.f32 0.0, %v307
  %309 = vdwg.mxu0
  %v310 = vadd.f32 %v230, %v306
  %v311 = vadd.f32 %v231, %v308
  %312 = vst.msk [vmem:[#allocation3] sm:$0xff] %vm123, %v310
  %313 = vst.msk [vmem:[#allocation3 + $0x8] sm:$0xff] %vm123, %v311
  // Predicated region
  $region26: #{fwd.9} parent=0 // pred_check
    %p314 = pneg %p21
  $region27: #{fwd.9} parent=0 // pred_check_branch
    %316 = sbr.rel (%p314) target = $region29
  $region28: #{fwd.9} parent=0 // pred_region
    %v317 = vld [vmem:[#allocation3] sm:$0xff]
    %v318 = vld [vmem:[#allocation3 + $0x8] sm:$0xff]
    %v319 = vld [vmem:[%s0] sm:$0xf]
    %v320 = vld [vmem:[%s0 + $0x4] sm:$0xf]
    %v321 = vunpack.c.l.bf16 %v319
    %v322 = vunpack.c.l.bf16 %v320
    %v323 = vadd.f32 %v317, %v321
    %v324 = vadd.f32 %v318, %v322
    %v325 = vpack.c.bf16 %v323, %v323
    %v326 = vpack.c.bf16 %v324, %v324
    %vm327 = vcmask 519168
    %328 = vst.msk [vmem:[%s5] sm:$0xf] %vm327, %v325
    %329 = vst.msk [vmem:[%s5 + $0x4] sm:$0xf] %vm327, %v326
  $region29: #{fwd.9} parent=0 // pred_fallthru
    _
  // Predicated region
  $region30: #{fwd.9} parent=0 // pred_check
    _
  $region31: #{fwd.9} parent=0 // pred_check_branch
    %331 = sbr.rel (0) target = $region33
  $region32: #{fwd.9} parent=0 // pred_region
    _
  $region33: #{fwd.9} parent=0 // pred_fallthru
    _
  // Predicated region
  $region34: #{fwd.9} parent=0 // pred_check
    _
  $region35: #{fwd.9} parent=0 // pred_check_branch
    %333 = sbr.rel (0) target = $region37
  $region36: #{fwd.9} parent=0 // pred_region
    _
  $region37: #{fwd.9} parent=0 // pred_fallthru
    _

// kernel: fwd.7
$region0: #{fwd.7}
  #allocation0 [shape = 'u32[]', space=smem, size = 0x4, offset = 0x4, fixed_abs, tag = 'smem constant byte address 0x4 - core index']
  #allocation1 [shape = 'u32[72,128]{1,0:T(1,128)}', space=vmem, size = 0x9000, scoped, tag = 'internal scratch']
  %s0 = inlined_call_operand.vmem [shape: bf16[2,8,64], index: 0, kind: input, shape index: {}]
  %s1 = inlined_call_operand.vmem [shape: f32[1,64], index: 1, kind: input, shape index: {}]
  %s2 = inlined_call_operand.vmem [shape: bf16[64,64], index: 2, kind: input, shape index: {}]
  %s3 = inlined_call_operand.vmem [shape: bf16[64,32], index: 3, kind: input, shape index: {}]
  %s4 = inlined_call_operand.vmem [shape: bf16[64,32], index: 4, kind: input, shape index: {}]
  %s5 = inlined_call_operand.vmem [shape: f32[8,8], index: 5, kind: input, shape index: {}]
  %s6 = inlined_call_operand.vmem [shape: f32[8,8], index: 6, kind: input, shape index: {}]
  %s7 = inlined_call_operand.vmem [shape: bf16[2,4,8,16], index: 7, kind: output, shape index: {0}]
  %s8 = inlined_call_operand.vmem [shape: bf16[2,2,8,16], index: 8, kind: output, shape index: {1}]
  %s9 = inlined_call_operand.vmem [shape: bf16[2,2,8,16], index: 9, kind: output, shape index: {2}]
  %10 = xla_tuple %s7, %s8, %s9
  %s11 = sld [smem:[#allocation0]]
  $region77: #{fwd.7} parent=0
    _
  %s13 = ssub.s32 1, %s11
  %s14 = scalar_select 0, %s13, %s11
  loop: start=0, step=1, limit=4
  $region2: #{fwd.7} parent=0 // loop_pre_header
    _
  $region3: #{fwd.7} parent=0 // loop_header
    %s16 = sphi 0, %s20
    %p17 = scmp.ge.s32.totalorder %s16, 4
    %s23 = sphi 0, %s35
    %s24 = sphi 0, %s31
    %s25 = sphi 0, %s23
    %s26 = sphi 0, %s24
    %s27 = sphi 0, %s25
    %s28 = sphi 0, %s26
    %s40 = sphi 0, %s42
    %s43 = sphi 0, %s40
    %s44 = sphi 0, %s43
    %s60 = sphi 0, %s44
    %s64 = sphi 0, %s64
    %s66 = sphi 0, %s64
    %s67 = sphi 0, %s66
    %s81 = sphi 0, %s67
    %s85 = sphi 0, %s85
    %s87 = sphi 0, %s85
    %s88 = sphi 0, %s87
    %s102 = sphi 0, %s88
    %s106 = sphi 0, %s106
    %s108 = sphi 0, %s106
    %s109 = sphi 0, %s108
    %s123 = sphi 0, %s109
    %s127 = sphi 0, %s127
    %s129 = sphi 0, %s127
    %s130 = sphi 0, %s129
    %s144 = sphi 0, %s130
    %s150 = sphi 0, %s152
    %s153 = sphi 0, %s150
    %s154 = sphi 0, %s153
    %s170 = sphi 0, %s154
    %s176 = sphi 0, %s178
    %s179 = sphi 0, %s176
    %s180 = sphi 0, %s179
    %s196 = sphi 0, %s180
    %s204 = sphi 0, %s206
    %s207 = sphi 0, %s204
    %s208 = sphi 0, %s207
    %s224 = sphi 0, %s208
    %s232 = sphi 0, %s234
    %s235 = sphi 0, %s232
    %s236 = sphi 0, %s235
    %s252 = sphi 0, %s236
    %s260 = sphi 0, %s262
    %s263 = sphi 0, %s260
    %s264 = sphi 0, %s263
    %s280 = sphi 0, %s264
  $region4: #{fwd.7} parent=0 // loop_header_branch
    %19 = sbr.rel (%p17) target = $region8
  $region5: #{fwd.7} parent=0 // loop_body
    %s21 = ssub.s32 %s16, 1
    %s22 = ssub.s32 %s16, 2
    %s29 = sadd.s32 1, %s24
    %p30 = scmp.ge.s32.totalorder %s29, 1
    %s31 = scalar_select %p30, 0, %s29
    %s32 = sadd.s32 1, %s23
    %s33 = scalar_select %p30, %s32, %s23
    %p34 = scmp.ge.s32.totalorder %s33, 2
    %s35 = scalar_select %p34, 0, %s33
    %s36 = ssub.s32 %s23, %s35
    %s37 = ssub.s32 %s24, %s31
    %s38 = sor.u32 %s36, %s37
    %p39 = scmp.eq.s32.totalorder %s38, 0
    %s41 = sadd.s32 %s40, 1
    %s42 = scalar_select %p39, %s40, %s41
    %p45 = pneg %p39
    %p46 = scmp.eq.s32.totalorder %s16, 1
    %p47 = por %p45, %p46
    %p48 = scmp.ne.s32.totalorder %s40, %s43
    %p49 = scmp.eq.s32.totalorder %s16, 0
    %p50 = por %p48, %p49
    %p51 = scmp.ne.s32.totalorder %s40, %s43
    %p52 = scmp.eq.s32.totalorder %s21, 1
    %p53 = por %p51, %p52
    %p54 = scmp.ne.s32.totalorder %s43, %s44
    %p55 = scmp.eq.s32.totalorder %s21, 0
    %p56 = por %p54, %p55
    %p57 = scmp.ne.s32.totalorder %s43, %s44
    %p58 = scmp.eq.s32.totalorder %s22, 1
    %p59 = por %p57, %p58
    %p61 = scmp.ne.s32.totalorder %s44, %s60
    %p62 = scmp.eq.s32.totalorder %s22, 0
    %p63 = por %p61, %p62
    %s65 = sadd.s32 %s64, 1
    %p68 = scmp.eq.s32.totalorder %s16, 1
    %p69 = scmp.ne.s32.totalorder %s64, %s66
    %p70 = scmp.eq.s32.totalorder %s16, 0
    %p71 = por %p69, %p70
    %p72 = scmp.ne.s32.totalorder %s64, %s66
    %p73 = scmp.eq.s32.totalorder %s21, 1
    %p74 = por %p72, %p73
    %p75 = scmp.ne.s32.totalorder %s66, %s67
    %p76 = scmp.eq.s32.totalorder %s21, 0
    %p77 = por %p75, %p76
    %p78 = scmp.ne.s32.totalorder %s66, %s67
    %p79 = scmp.eq.s32.totalorder %s22, 1
    %p80 = por %p78, %p79
    %p82 = scmp.ne.s32.totalorder %s67, %s81
    %p83 = scmp.eq.s32.totalorder %s22, 0
    %p84 = por %p82, %p83
    %s86 = sadd.s32 %s85, 1
    %p89 = scmp.eq.s32.totalorder %s16, 1
    %p90 = scmp.ne.s32.totalorder %s85, %s87
    %p91 = scmp.eq.s32.totalorder %s16, 0
    %p92 = por %p90, %p91
    %p93 = scmp.ne.s32.totalorder %s85, %s87
    %p94 = scmp.eq.s32.totalorder %s21, 1
    %p95 = por %p93, %p94
    %p96 = scmp.ne.s32.totalorder %s87, %s88
    %p97 = scmp.eq.s32.totalorder %s21, 0
    %p98 = por %p96, %p97
    %p99 = scmp.ne.s32.totalorder %s87, %s88
    %p100 = scmp.eq.s32.totalorder %s22, 1
    %p101 = por %p99, %p100
    %p103 = scmp.ne.s32.totalorder %s88, %s102
    %p104 = scmp.eq.s32.totalorder %s22, 0
    %p105 = por %p103, %p104
    %s107 = sadd.s32 %s106, 1
    %p110 = scmp.eq.s32.totalorder %s16, 1
    %p111 = scmp.ne.s32.totalorder %s106, %s108
    %p112 = scmp.eq.s32.totalorder %s16, 0
    %p113 = por %p111, %p112
    %p114 = scmp.ne.s32.totalorder %s106, %s108
    %p115 = scmp.eq.s32.totalorder %s21, 1
    %p116 = por %p114, %p115
    %p117 = scmp.ne.s32.totalorder %s108, %s109
    %p118 = scmp.eq.s32.totalorder %s21, 0
    %p119 = por %p117, %p118
    %p120 = scmp.ne.s32.totalorder %s108, %s109
    %p121 = scmp.eq.s32.totalorder %s22, 1
    %p122 = por %p120, %p121
    %p124 = scmp.ne.s32.totalorder %s109, %s123
    %p125 = scmp.eq.s32.totalorder %s22, 0
    %p126 = por %p124, %p125
    %s128 = sadd.s32 %s127, 1
    %p131 = scmp.eq.s32.totalorder %s16, 1
    %p132 = scmp.ne.s32.totalorder %s127, %s129
    %p133 = scmp.eq.s32.totalorder %s16, 0
    %p134 = por %p132, %p133
    %p135 = scmp.ne.s32.totalorder %s127, %s129
    %p136 = scmp.eq.s32.totalorder %s21, 1
    %p137 = por %p135, %p136
    %p138 = scmp.ne.s32.totalorder %s129, %s130
    %p139 = scmp.eq.s32.totalorder %s21, 0
    %p140 = por %p138, %p139
    %p141 = scmp.ne.s32.totalorder %s129, %s130
    %p142 = scmp.eq.s32.totalorder %s22, 1
    %p143 = por %p141, %p142
    %p145 = scmp.ne.s32.totalorder %s130, %s144
    %p146 = scmp.eq.s32.totalorder %s22, 0
    %p147 = por %p145, %p146
    %s148 = ssub.s32 %s24, %s31
    %p149 = scmp.eq.s32.totalorder %s148, 0
    %s151 = sadd.s32 %s150, 1
    %s152 = scalar_select %p149, %s150, %s151
    %p155 = pneg %p149
    %p156 = scmp.eq.s32.totalorder %s16, 1
    %p157 = por %p155, %p156
    %p158 = scmp.ne.s32.totalorder %s150, %s153
    %p159 = scmp.eq.s32.totalorder %s16, 0
    %p160 = por %p158, %p159
    %p161 = scmp.ne.s32.totalorder %s150, %s153
    %p162 = scmp.eq.s32.totalorder %s21, 1
    %p163 = por %p161, %p162
    %p164 = scmp.ne.s32.totalorder %s153, %s154
    %p165 = scmp.eq.s32.totalorder %s21, 0
    %p166 = por %p164, %p165
    %p167 = scmp.ne.s32.totalorder %s153, %s154
    %p168 = scmp.eq.s32.totalorder %s22, 1
    %p169 = por %p167, %p168
    %p171 = scmp.ne.s32.totalorder %s154, %s170
    %p172 = scmp.eq.s32.totalorder %s22, 0
    %p173 = por %p171, %p172
    %s174 = ssub.s32 %s24, %s31
    %p175 = scmp.eq.s32.totalorder %s174, 0
    %s177 = sadd.s32 %s176, 1
    %s178 = scalar_select %p175, %s176, %s177
    %p181 = pneg %p175
    %p182 = scmp.eq.s32.totalorder %s16, 1
    %p183 = por %p181, %p182
    %p184 = scmp.ne.s32.totalorder %s176, %s179
    %p185 = scmp.eq.s32.totalorder %s16, 0
    %p186 = por %p184, %p185
    %p187 = scmp.ne.s32.totalorder %s176, %s179
    %p188 = scmp.eq.s32.totalorder %s21, 1
    %p189 = por %p187, %p188
    %p190 = scmp.ne.s32.totalorder %s179, %s180
    %p191 = scmp.eq.s32.totalorder %s21, 0
    %p192 = por %p190, %p191
    %p193 = scmp.ne.s32.totalorder %s179, %s180
    %p194 = scmp.eq.s32.totalorder %s22, 1
    %p195 = por %p193, %p194
    %p197 = scmp.ne.s32.totalorder %s180, %s196
    %p198 = scmp.eq.s32.totalorder %s22, 0
    %p199 = por %p197, %p198
    %s200 = ssub.s32 %s23, %s35
    %s201 = ssub.s32 %s24, %s31
    %s202 = sor.u32 %s200, %s201
    %p203 = scmp.eq.s32.totalorder %s202, 0
    %s205 = sadd.s32 %s204, 1
    %s206 = scalar_select %p203, %s204, %s205
    %p209 = pneg %p203
    %p210 = scmp.eq.s32.totalorder %s16, 1
    %p211 = por %p209, %p210
    %p212 = scmp.ne.s32.totalorder %s204, %s207
    %p213 = scmp.eq.s32.totalorder %s16, 0
    %p214 = por %p212, %p213
    %p215 = scmp.ne.s32.totalorder %s204, %s207
    %p216 = scmp.eq.s32.totalorder %s21, 1
    %p217 = por %p215, %p216
    %p218 = scmp.ne.s32.totalorder %s207, %s208
    %p219 = scmp.eq.s32.totalorder %s21, 0
    %p220 = por %p218, %p219
    %p221 = scmp.ne.s32.totalorder %s207, %s208
    %p222 = scmp.eq.s32.totalorder %s22, 1
    %p223 = por %p221, %p222
    %p225 = scmp.ne.s32.totalorder %s208, %s224
    %p226 = scmp.eq.s32.totalorder %s22, 0
    %p227 = por %p225, %p226
    %s228 = ssub.s32 %s23, %s35
    %s229 = ssub.s32 %s24, %s31
    %s230 = sor.u32 %s228, %s229
    %p231 = scmp.eq.s32.totalorder %s230, 0
    %s233 = sadd.s32 %s232, 1
    %s234 = scalar_select %p231, %s232, %s233
    %p237 = pneg %p231
    %p238 = scmp.eq.s32.totalorder %s16, 1
    %p239 = por %p237, %p238
    %p240 = scmp.ne.s32.totalorder %s232, %s235
    %p241 = scmp.eq.s32.totalorder %s16, 0
    %p242 = por %p240, %p241
    %p243 = scmp.ne.s32.totalorder %s232, %s235
    %p244 = scmp.eq.s32.totalorder %s21, 1
    %p245 = por %p243, %p244
    %p246 = scmp.ne.s32.totalorder %s235, %s236
    %p247 = scmp.eq.s32.totalorder %s21, 0
    %p248 = por %p246, %p247
    %p249 = scmp.ne.s32.totalorder %s235, %s236
    %p250 = scmp.eq.s32.totalorder %s22, 1
    %p251 = por %p249, %p250
    %p253 = scmp.ne.s32.totalorder %s236, %s252
    %p254 = scmp.eq.s32.totalorder %s22, 0
    %p255 = por %p253, %p254
    %s256 = ssub.s32 %s23, %s35
    %s257 = ssub.s32 %s24, %s31
    %s258 = sor.u32 %s256, %s257
    %p259 = scmp.eq.s32.totalorder %s258, 0
    %s261 = sadd.s32 %s260, 1
    %s262 = scalar_select %p259, %s260, %s261
    %p265 = pneg %p259
    %p266 = scmp.eq.s32.totalorder %s16, 1
    %p267 = por %p265, %p266
    %p268 = scmp.ne.s32.totalorder %s260, %s263
    %p269 = scmp.eq.s32.totalorder %s16, 0
    %p270 = por %p268, %p269
    %p271 = scmp.ne.s32.totalorder %s260, %s263
    %p272 = scmp.eq.s32.totalorder %s21, 1
    %p273 = por %p271, %p272
    %p274 = scmp.ne.s32.totalorder %s263, %s264
    %p275 = scmp.eq.s32.totalorder %s21, 0
    %p276 = por %p274, %p275
    %p277 = scmp.ne.s32.totalorder %s263, %s264
    %p278 = scmp.eq.s32.totalorder %s22, 1
    %p279 = por %p277, %p278
    %p281 = scmp.ne.s32.totalorder %s264, %s280
    %p282 = scmp.eq.s32.totalorder %s22, 0
    %p283 = por %p281, %p282
    %p284 = scmp.le.s32.totalorder 1, %s16
    %p285 = scmp.lt.s32.totalorder %s16, 3
    %p286 = pnand %p284, %p285
    %p287 = pneg %p286
    // Predicated region
    $region9: #{fwd.7} parent=5 // pred_check
      _
    $region10: #{fwd.7} parent=5 // pred_check_branch
      %289 = sbr.rel (%p286) target = $region12
    $region11: #{fwd.7} parent=5 // pred_region
      %s290 = ssub.s32 %s16, 1
      // Predicated region
      $region13: #{fwd.7} parent=11 // pred_check
        %p291 = pneg %p77
      $region14: #{fwd.7} parent=11 // pred_check_branch
        %293 = sbr.rel (%p291) target = $region16
      $region15: #{fwd.7} parent=11 // pred_region
        _
      $region16: #{fwd.7} parent=11 // pred_fallthru
        _
      // Predicated region
      $region17: #{fwd.7} parent=11 // pred_check
        %p294 = pneg %p98
      $region18: #{fwd.7} parent=11 // pred_check_branch
        %296 = sbr.rel (%p294) target = $region20
      $region19: #{fwd.7} parent=11 // pred_region
        _
      $region20: #{fwd.7} parent=11 // pred_fallthru
        _
      // Predicated region
      $region21: #{fwd.7} parent=11 // pred_check
        %p297 = pneg %p119
      $region22: #{fwd.7} parent=11 // pred_check_branch
        %299 = sbr.rel (%p297) target = $region24
      $region23: #{fwd.7} parent=11 // pred_region
        _
      $region24: #{fwd.7} parent=11 // pred_fallthru
        _
      // Predicated region
      $region25: #{fwd.7} parent=11 // pred_check
        %p300 = pneg %p140
      $region26: #{fwd.7} parent=11 // pred_check_branch
        %302 = sbr.rel (%p300) target = $region28
      $region27: #{fwd.7} parent=11 // pred_region
        _
      $region28: #{fwd.7} parent=11 // pred_fallthru
        _
      // Predicated region
      $region29: #{fwd.7} parent=11 // pred_check
        %p303 = pneg %p166
      $region30: #{fwd.7} parent=11 // pred_check_branch
        %305 = sbr.rel (%p303) target = $region32
      $region31: #{fwd.7} parent=11 // pred_region
        %p306 = scmp.lt.s32.totalorder %s26, 0
        %s307 = scalar_select %p306, %s26, 0
        %s308 = smul.addr %s307, 8
        %s309 = scalar_lea.vmem %s5, %s308
      $region32: #{fwd.7} parent=11 // pred_fallthru
        _
      // Predicated region
      $region33: #{fwd.7} parent=11 // pred_check
        %p310 = pneg %p192
      $region34: #{fwd.7} parent=11 // pred_check_branch
        %312 = sbr.rel (%p310) target = $region36
      $region35: #{fwd.7} parent=11 // pred_region
        %p313 = scmp.lt.s32.totalorder %s26, 0
        %s314 = scalar_select %p313, %s26, 0
        %s315 = smul.addr %s314, 8
        %s316 = scalar_lea.vmem %s6, %s315
      $region36: #{fwd.7} parent=11 // pred_fallthru
        _
    $region12: #{fwd.7} parent=5 // pred_fallthru
      _
    %p317 = scmp.lt.s32.totalorder %s16, 2
    // Predicated region
    $region37: #{fwd.7} parent=5 // pred_check
      %p318 = pneg %p317
    $region38: #{fwd.7} parent=5 // pred_check_branch
      %320 = sbr.rel (%p318) target = $region40
    $region39: #{fwd.7} parent=5 // pred_region
      // Predicated region
      $region41: #{fwd.7} parent=39 // pred_check
        %p321 = pneg %p50
      $region42: #{fwd.7} parent=39 // pred_check_branch
        %323 = sbr.rel (%p321) target = $region44
      $region43: #{fwd.7} parent=39 // pred_region
        %p324 = scmp.lt.s32.totalorder %s23, 1
        %s325 = scalar_select %p324, %s23, 1
        %p326 = scmp.lt.s32.totalorder %s24, 0
        %s327 = scalar_select %p326, %s24, 0
        %s328 = sadd.s32 %s327, %s325
        %s329 = smul.addr %s328, 4
        %s330 = scalar_lea.vmem %s0, %s329
      $region44: #{fwd.7} parent=39 // pred_fallthru
        _
    $region40: #{fwd.7} parent=5 // pred_fallthru
      _
    %p331 = scmp.le.s32.totalorder 1, %s16
    %p332 = scmp.lt.s32.totalorder %s16, 3
    %p333 = pnand %p331, %p332
    %p334 = pneg %p333
    // Predicated region
    $region45: #{fwd.7} parent=5 // pred_check
      _
    $region46: #{fwd.7} parent=5 // pred_check_branch
      %336 = sbr.rel (%p333) target = $region48
    $region47: #{fwd.7} parent=5 // pred_region
      %s337 = ssub.s32 %s16, 1
      %p338 = scmp.lt.s32.totalorder %s25, 1
      %s339 = scalar_select %p338, %s25, 1
      %p340 = scmp.lt.s32.totalorder %s26, 0
      %s341 = scalar_select %p340, %s26, 0
      %s342 = sadd.s32 %s341, %s339
      %s343 = smul.addr %s342, 4
      %s344 = scalar_lea.vmem %s0, %s343
      %p345 = pneg %p56
      %p346 = pneg %p53
      %p347 = pneg %p77
      %p348 = pneg %p74
      %p349 = pneg %p98
      %p350 = pneg %p95
      %p351 = pneg %p119
      %p352 = pneg %p116
      %p353 = pneg %p140
      %p354 = pneg %p137
      %p355 = scmp.lt.s32.totalorder %s26, 0
      %s356 = scalar_select %p355, %s26, 0
      %s357 = smul.addr %s356, 8
      %s358 = scalar_lea.vmem %s5, %s357
      %p359 = pneg %p166
      %p360 = pneg %p163
      %p361 = scmp.lt.s32.totalorder %s26, 0
      %s362 = scalar_select %p361, %s26, 0
      %s363 = smul.addr %s362, 8
      %s364 = scalar_lea.vmem %s6, %s363
      %p365 = pneg %p192
      %p366 = pneg %p189
      %p367 = pneg %p220
      %p368 = pneg %p217
      %p369 = scmp.lt.s32.totalorder %s25, 1
      %s370 = scalar_select %p369, %s25, 1
      %p371 = scmp.lt.s32.totalorder %s26, 0
      %s372 = scalar_select %p371, %s26, 0
      %s373 = smul.addr %s370, 4
      %s374 = sadd.s32 %s372, %s373
      %s375 = smul.addr %s374, 4
      %s376 = scalar_lea.vmem %s7, %s375
      %p377 = pneg %p248
      %p378 = pneg %p245
      %p379 = scmp.lt.s32.totalorder %s25, 1
      %s380 = scalar_select %p379, %s25, 1
      %p381 = scmp.lt.s32.totalorder %s26, 0
      %s382 = scalar_select %p381, %s26, 0
      %s383 = smul.addr %s380, 2
      %s384 = sadd.s32 %s382, %s383
      %s385 = smul.addr %s384, 4
      %s386 = scalar_lea.vmem %s8, %s385
      %p387 = pneg %p276
      %p388 = pneg %p273
      %p389 = scmp.lt.s32.totalorder %s25, 1
      %s390 = scalar_select %p389, %s25, 1
      %p391 = scmp.lt.s32.totalorder %s26, 0
      %s392 = scalar_select %p391, %s26, 0
      %s393 = smul.addr %s390, 2
      %s394 = sadd.s32 %s392, %s393
      %s395 = smul.addr %s394, 4
      %s396 = scalar_lea.vmem %s9, %s395
      %p397 = scmp.lt.s32.totalorder %s25, 1
      %s398 = scalar_select %p397, %s25, 1
      %p399 = scmp.lt.s32.totalorder %s26, 0
      %s400 = scalar_select %p399, %s26, 0
      %s401 = sadd.s32 %s400, %s398
      %s402 = smul.addr %s401, 4
      %s403 = scalar_lea.vmem %s0, %s402
      %p404 = scmp.lt.s32.totalorder %s26, 0
      %s405 = scalar_select %p404, %s26, 0
      %s406 = smul.addr %s405, 8
      %s407 = scalar_lea.vmem %s5, %s406
      %p408 = scmp.lt.s32.totalorder %s26, 0
      %s409 = scalar_select %p408, %s26, 0
      %s410 = smul.addr %s409, 8
      %s411 = scalar_lea.vmem %s6, %s410
      %p412 = scmp.lt.s32.totalorder %s25, 1
      %s413 = scalar_select %p412, %s25, 1
      %p414 = scmp.lt.s32.totalorder %s26, 0
      %s415 = scalar_select %p414, %s26, 0
      %s416 = smul.addr %s413, 4
      %s417 = sadd.s32 %s415, %s416
      %s418 = smul.addr %s417, 4
      %s419 = scalar_lea.vmem %s7, %s418
      %p420 = scmp.lt.s32.totalorder %s25, 1
      %s421 = scalar_select %p420, %s25, 1
      %p422 = scmp.lt.s32.totalorder %s26, 0
      %s423 = scalar_select %p422, %s26, 0
      %s424 = smul.addr %s421, 2
      %s425 = sadd.s32 %s423, %s424
      %s426 = smul.addr %s425, 4
      %s427 = scalar_lea.vmem %s8, %s426
      %p428 = scmp.lt.s32.totalorder %s25, 1
      %s429 = scalar_select %p428, %s25, 1
      %p430 = scmp.lt.s32.totalorder %s26, 0
      %s431 = scalar_select %p430, %s26, 0
      %s432 = smul.addr %s429, 2
      %s433 = sadd.s32 %s431, %s432
      %s434 = smul.addr %s433, 4
      %s435 = scalar_lea.vmem %s9, %s434
      %v437 = vld [vmem:[%s403] sm:$0xf]
      %v438 = vunpack.c.l.bf16 %v437
      %v439 = vmul.f32 %v438, %v438
      %vm440 = vcmask 523264
      %v441 = vsel %vm440, %v439, 0.0
      %442 = vadd.xlane.f32.xlu0 %v441
      %v443 = vpop.xlane.xlu0 %442
      %v444 = vrcp.pop 64.0
      %v445 = vmul.f32 64.0, %v444
      %v446 = vsub.f32 1.0, %v445
      %v447 = vmul.f32 %v444, %v446
      %v448 = vadd.f32 %v444, %v447
      %vm449 = vweird.f32 %v444
      %v450 = vsel %vm449, %v444, %v448
      %v451 = vmul.f32 %v443, %v450
      %v452 = vadd.f32 %v451, 1e-05
      %v453 = vrsqrt.pop %v452
      %v454 = vmul.f32 %v453, %v452
      %v455 = vmul.f32 %v454, %v453
      %v456 = vmul.f32 0.5, %v455
      %v457 = vsub.f32 1.5, %v456
      %v458 = vmul.f32 %v453, %v457
      %vm459 = vweird.f32 %v452
      %vm460 = vweird.f32 %v453
      %vm461 = vmor %vm459, %vm460
      %v462 = vsel %vm461, %v453, %v458
      %v463 = vmul.f32 %v438, %v462
      %v464 = vld [vmem:[%s1] sm:$0x1]
      %v466 = vperm.slane %v464, 0
      %v468 = vmul.f32 %v463, %v466
      %v469 = vpack.c.bf16 %v468, %v468
      %v470 = vld [vmem:[%s407] sm:$0xff]
      %v471 = vld [vmem:[%s411] sm:$0xff]
      %v472 = vld [vmem:[%s2] sm:$0xf]
      %v473 = vld [vmem:[%s2 + $0x4] sm:$0xf]
      %v474 = vld [vmem:[%s2 + $0x8] sm:$0xf]
      %v475 = vld [vmem:[%s2 + $0xc] sm:$0xf]
      %v476 = vld [vmem:[%s2 + $0x10] sm:$0xf]
      %v477 = vld [vmem:[%s2 + $0x14] sm:$0xf]
      %v478 = vld [vmem:[%s2 + $0x18] sm:$0xf]
      %v479 = vld [vmem:[%s2 + $0x1c] sm:$0xf]
      %v488 = vunpack.c.l.b16 %v472
      %v489 = vunpack.c.l.b16 %v473
      %v490 = vunpack.c.l.b16 %v474
      %v491 = vunpack.c.l.b16 %v475
      %v492 = vunpack.c.l.b16 %v476
      %v493 = vunpack.c.l.b16 %v477
      %v494 = vunpack.c.l.b16 %v478
      %v495 = vunpack.c.l.b16 %v479
      %v496 = vpack.c.b16 %v489, %v488
      %v497 = vpack.c.b16 %v491, %v490
      %v498 = vpack.c.b16 %v493, %v492
      %v499 = vpack.c.b16 %v495, %v494
      %v505 = vsel %vm440, %v469, 0
      %507 = vmatpush.bf16.msra.mxu0 0
      %508 = vmatpush.bf16.msra.mxu0 0
      %509 = vmatpush.bf16.msra.mxu0 0
      %510 = vmatpush.bf16.msra.mxu0 0
      %511 = vmatpush.bf16.msra.mxu0 %v499
      %512 = vmatpush.bf16.msra.mxu0 %v498
      %513 = vmatpush.bf16.msra.mxu0 %v497
      %514 = vmatpush.bf16.msra.mxu0 %v496
      %515 = vmatmul.bf16.gmra.mxu0 %v505
      %v516 = vpop.f32.mrf.mxu0
      %v517 = vadd.f32 0.0, %v516
      %v518 = vpop.f32.mrf.mxu0
      %519 = vdwg.mxu0
      %521 = vrot.lane.b32.xlu0 %v517, 112
      %v522 = vpop.permute.xlu0 %521
      %524 = vrot.lane.b32.xlu0 %v517, 96
      %v525 = vpop.permute.xlu0 %524
      %527 = vrot.lane.b32.xlu0 %v517, 80
      %v528 = vpop.permute.xlu0 %527
      %v530 = vrot.slane %v525, 4
      %vm531 = vcmask 1047556
      %v532 = vsel %vm531, %v530, %v517
      %v533 = vrot.slane %v517, 4
      %v534 = vsel %vm531, %v525, %v533
      %v536 = vunpack.c.l.s4 1983009808
      %v537 = vunpack.c.0.s8 %v536
      %v538 = vperm.slane %v532, %v537
      %v540 = vunpack.c.l.s4 1983009808
      %v541 = vunpack.c.0.s8 %v540
      %v542 = vperm.slane %v534, %v541
      %v543 = vrot.slane %v528, 4
      %v544 = vsel %vm531, %v543, %v522
      %v545 = vrot.slane %v522, 4
      %v546 = vsel %vm531, %v528, %v545
      %v548 = vunpack.c.l.s4 1983009808
      %v549 = vunpack.c.0.s8 %v548
      %v550 = vperm.slane %v544, %v549
      %v552 = vunpack.c.l.s4 1983009808
      %v553 = vunpack.c.0.s8 %v552
      %v554 = vperm.slane %v546, %v553
      %v555 = vrot.slane %v550, 4
      %v556 = vsel %vm531, %v555, %v538
      %v557 = vrot.slane %v538, 4
      %v558 = vsel %vm531, %v550, %v557
      %v560 = vunpack.c.l.s4 1934713408
      %v561 = vunpack.c.0.s8 %v560
      %v562 = vperm.slane %v556, %v561
      %v564 = vunpack.c.l.s4 1934713408
      %v565 = vunpack.c.0.s8 %v564
      %v566 = vperm.slane %v558, %v565
      %v567 = vrot.slane %v554, 4
      %v568 = vsel %vm531, %v567, %v542
      %v569 = vrot.slane %v542, 4
      %v570 = vsel %vm531, %v554, %v569
      %v572 = vunpack.c.l.s4 1934713408
      %v573 = vunpack.c.0.s8 %v572
      %v574 = vperm.slane %v568, %v573
      %v576 = vunpack.c.l.s4 1934713408
      %v577 = vunpack.c.0.s8 %v576
      %v578 = vperm.slane %v570, %v577
      %v579 = vrot.slane %v562, 4
      %v580 = vsel %vm531, 0.0, %v579
      %v581 = vrot.slane %v566, 4
      %v582 = vsel %vm531, 0.0, %v581
      %v583 = vrot.slane %v574, 4
      %v584 = vsel %vm531, 0.0, %v583
      %v585 = vrot.slane %v578, 4
      %v586 = vsel %vm531, 0.0, %v585
      %v587 = vsel %vm531, %v581, %v562
      %v589 = vunpack.c.l.s4 1983009808
      %v590 = vunpack.c.0.s8 %v589
      %v591 = vperm.slane %v587, %v590
      %v592 = vrot.slane %v582, 4
      %v593 = vsel %vm531, %v592, %v580
      %v595 = vunpack.c.l.s4 1983009808
      %v596 = vunpack.c.0.s8 %v595
      %v597 = vperm.slane %v593, %v596
      %v598 = vsel %vm531, %v585, %v574
      %v600 = vunpack.c.l.s4 1983009808
      %v601 = vunpack.c.0.s8 %v600
      %v602 = vperm.slane %v598, %v601
      %v603 = vrot.slane %v586, 4
      %v604 = vsel %vm531, %v603, %v584
      %v606 = vunpack.c.l.s4 1983009808
      %v607 = vunpack.c.0.s8 %v606
      %v608 = vperm.slane %v604, %v607
      %v609 = vrot.slane %v597, 4
      %v610 = vsel %vm531, %v609, %v591
      %v611 = vrot.slane %v591, 4
      %v612 = vsel %vm531, %v597, %v611
      %v614 = vunpack.c.l.s4 1934713408
      %v615 = vunpack.c.0.s8 %v614
      %v616 = vperm.slane %v610, %v615
      %v618 = vunpack.c.l.s4 1934713408
      %v619 = vunpack.c.0.s8 %v618
      %v620 = vperm.slane %v612, %v619
      %v621 = vrot.slane %v608, 4
      %v622 = vsel %vm531, %v621, %v602
      %v623 = vrot.slane %v602, 4
      %v624 = vsel %vm531, %v608, %v623
      %v626 = vunpack.c.l.s4 1934713408
      %v627 = vunpack.c.0.s8 %v626
      %v628 = vperm.slane %v622, %v627
      %v630 = vunpack.c.l.s4 1934713408
      %v631 = vunpack.c.0.s8 %v630
      %v632 = vperm.slane %v624, %v631
      %v633 = vrot.slane %v628, 4
      %v634 = vsel %vm531, %v633, %v616
      %v635 = vrot.slane %v616, 4
      %v636 = vsel %vm531, %v628, %v635
      %v637 = vrot.slane %v632, 4
      %v638 = vsel %vm531, %v637, %v620
      %v639 = vrot.slane %v620, 4
      %v640 = vsel %vm531, %v632, %v639
      %v641 = vmul.f32 %v634, %v470
      %v642 = vmul.f32 %v636, %v470
      %v643 = vmul.f32 %v638, %v470
      %v644 = vmul.f32 %v640, %v470
      %646 = vrot.lane.b32.xlu0 %v471, 8
      %v647 = vpop.permute.xlu0 %646
      %v649 = vmul.f32 %v634, %v647
      %v650 = vmul.f32 %v636, %v647
      %v651 = vmul.f32 %v638, %v647
      %v652 = vmul.f32 %v640, %v647
      %657 = vrot.lane.b32.xlu0 %v649, 120
      %v658 = vpop.permute.xlu0 %657
      %659 = vrot.lane.b32.xlu0 %v650, 120
      %v660 = vpop.permute.xlu0 %659
      %661 = vrot.lane.b32.xlu0 %v651, 120
      %v662 = vpop.permute.xlu0 %661
      %663 = vrot.lane.b32.xlu0 %v652, 120
      %v664 = vpop.permute.xlu0 %663
      %v669 = vsub.f32 %v641, %v658
      %v670 = vsub.f32 %v642, %v660
      %v671 = vsub.f32 %v643, %v662
      %v672 = vsub.f32 %v644, %v664
      %674 = vrot.lane.b32.xlu0 %v470, 8
      %v675 = vpop.permute.xlu0 %674
      %v677 = vmul.f32 %v634, %v675
      %v678 = vmul.f32 %v636, %v675
      %v679 = vmul.f32 %v638, %v675
      %v680 = vmul.f32 %v640, %v675
      %v681 = vmul.f32 %v634, %v471
      %v682 = vmul.f32 %v636, %v471
      %v683 = vmul.f32 %v638, %v471
      %v684 = vmul.f32 %v640, %v471
      %689 = vrot.lane.b32.xlu0 %v681, 8
      %v690 = vpop.permute.xlu0 %689
      %691 = vrot.lane.b32.xlu0 %v682, 8
      %v692 = vpop.permute.xlu0 %691
      %693 = vrot.lane.b32.xlu0 %v683, 8
      %v694 = vpop.permute.xlu0 %693
      %695 = vrot.lane.b32.xlu0 %v684, 8
      %v696 = vpop.permute.xlu0 %695
      %v701 = vadd.f32 %v677, %v690
      %v702 = vadd.f32 %v678, %v692
      %v703 = vadd.f32 %v679, %v694
      %v704 = vadd.f32 %v680, %v696
      %vm705 = vcmask 64512
      %v706 = vsel %vm705, %v669, %v701
      %v707 = vsel %vm705, %v670, %v702
      %v708 = vsel %vm705, %v671, %v703
      %v709 = vsel %vm705, %v672, %v704
      %v710 = vpack.c.bf16 %v706, %v706
      %v711 = vpack.c.bf16 %v707, %v707
      %v712 = vpack.c.bf16 %v708, %v708
      %v713 = vpack.c.bf16 %v709, %v709
      %vm714 = vcmask 125952
      %715 = vst.msk [vmem:[%s419] sm:$0xf] %vm714, %v710
      %716 = vst.msk [vmem:[%s419 + $0x4] sm:$0xf] %vm714, %v711
      %717 = vst.msk [vmem:[%s419 + $0x8] sm:$0xf] %vm714, %v712
      %718 = vst.msk [vmem:[%s419 + $0xc] sm:$0xf] %vm714, %v713
      %v719 = vld [vmem:[%s3] sm:$0xf]
      %v720 = vld [vmem:[%s3 + $0x4] sm:$0xf]
      %v721 = vld [vmem:[%s3 + $0x8] sm:$0xf]
      %v722 = vld [vmem:[%s3 + $0xc] sm:$0xf]
      %v723 = vld [vmem:[%s3 + $0x10] sm:$0xf]
      %v724 = vld [vmem:[%s3 + $0x14] sm:$0xf]
      %v725 = vld [vmem:[%s3 + $0x18] sm:$0xf]
      %v726 = vld [vmem:[%s3 + $0x1c] sm:$0xf]
      %v735 = vunpack.c.l.b16 %v719
      %v736 = vunpack.c.l.b16 %v720
      %v737 = vunpack.c.l.b16 %v721
      %v738 = vunpack.c.l.b16 %v722
      %v739 = vunpack.c.l.b16 %v723
      %v740 = vunpack.c.l.b16 %v724
      %v741 = vunpack.c.l.b16 %v725
      %v742 = vunpack.c.l.b16 %v726
      %v743 = vpack.c.b16 %v736, %v735
      %v744 = vpack.c.b16 %v738, %v737
      %v745 = vpack.c.b16 %v740, %v739
      %v746 = vpack.c.b16 %v742, %v741
      %751 = vmatpush.bf16.msra.mxu0 0
      %752 = vmatpush.bf16.msra.mxu0 0
      %753 = vmatpush.bf16.msra.mxu0 0
      %754 = vmatpush.bf16.msra.mxu0 0
      %755 = vmatpush.bf16.msra.mxu0 %v746
      %756 = vmatpush.bf16.msra.mxu0 %v745
      %757 = vmatpush.bf16.msra.mxu0 %v744
      %758 = vmatpush.bf16.msra.mxu0 %v743
      %759 = vmatmul.bf16.gmra.mxu0 %v505
      %v760 = vpop.f32.mrf.mxu0
      %v761 = vadd.f32 0.0, %v760
      %v762 = vpop.f32.mrf.mxu0
      %763 = vdwg.mxu0
      %765 = vrot.lane.b32.xlu0 %v761, 112
      %v766 = vpop.permute.xlu0 %765
      %v768 = vrot.slane %v761, 4
      %v769 = vsel %vm531, 0.0, %v768
      %v771 = vunpack.c.l.s4 1983009808
      %v772 = vunpack.c.0.s8 %v771
      %v773 = vperm.slane %v761, %v772
      %v775 = vunpack.c.l.s4 1983009808
      %v776 = vunpack.c.0.s8 %v775
      %v777 = vperm.slane %v769, %v776
      %v778 = vrot.slane %v766, 4
      %v779 = vsel %vm531, 0.0, %v778
      %v781 = vunpack.c.l.s4 1983009808
      %v782 = vunpack.c.0.s8 %v781
      %v783 = vperm.slane %v766, %v782
      %v785 = vunpack.c.l.s4 1983009808
      %v786 = vunpack.c.0.s8 %v785
      %v787 = vperm.slane %v779, %v786
      %v788 = vrot.slane %v783, 4
      %v789 = vsel %vm531, %v788, %v773
      %v790 = vrot.slane %v773, 4
      %v791 = vsel %vm531, %v783, %v790
      %v793 = vunpack.c.l.s4 1934713408
      %v794 = vunpack.c.0.s8 %v793
      %v795 = vperm.slane %v789, %v794
      %v797 = vunpack.c.l.s4 1934713408
      %v798 = vunpack.c.0.s8 %v797
      %v799 = vperm.slane %v791, %v798
      %v800 = vrot.slane %v787, 4
      %v801 = vsel %vm531, %v800, %v777
      %v802 = vrot.slane %v777, 4
      %v803 = vsel %vm531, %v787, %v802
      %v805 = vunpack.c.l.s4 1934713408
      %v806 = vunpack.c.0.s8 %v805
      %v807 = vperm.slane %v801, %v806
      %v809 = vunpack.c.l.s4 1934713408
      %v810 = vunpack.c.0.s8 %v809
      %v811 = vperm.slane %v803, %v810
      %v812 = vrot.slane %v795, 4
      %v813 = vsel %vm531, 0.0, %v812
      %v814 = vrot.slane %v799, 4
      %v815 = vsel %vm531, 0.0, %v814
      %v816 = vrot.slane %v807, 4
      %v817 = vsel %vm531, 0.0, %v816
      %v818 = vrot.slane %v811, 4
      %v819 = vsel %vm531, 0.0, %v818
      %v820 = vsel %vm531, %v814, %v795
      %v822 = vunpack.c.l.s4 1983009808
      %v823 = vunpack.c.0.s8 %v822
      %v824 = vperm.slane %v820, %v823
      %v825 = vrot.slane %v815, 4
      %v826 = vsel %vm531, %v825, %v813
      %v828 = vunpack.c.l.s4 1983009808
      %v829 = vunpack.c.0.s8 %v828
      %v830 = vperm.slane %v826, %v829
      %v831 = vsel %vm531, %v818, %v807
      %v833 = vunpack.c.l.s4 1983009808
      %v834 = vunpack.c.0.s8 %v833
      %v835 = vperm.slane %v831, %v834
      %v836 = vrot.slane %v819, 4
      %v837 = vsel %vm531, %v836, %v817
      %v839 = vunpack.c.l.s4 1983009808
      %v840 = vunpack.c.0.s8 %v839
      %v841 = vperm.slane %v837, %v840
      %v842 = vrot.slane %v830, 4
      %v843 = vsel %vm531, %v842, %v824
      %v845 = vunpack.c.l.s4 1934713408
      %v846 = vunpack.c.0.s8 %v845
      %v847 = vperm.slane %v843, %v846
      %v848 = vrot.slane %v841, 4
      %v849 = vsel %vm531, %v848, %v835
      %v851 = vunpack.c.l.s4 1934713408
      %v852 = vunpack.c.0.s8 %v851
      %v853 = vperm.slane %v849, %v852
      %v854 = vrot.slane %v853, 4
      %v855 = vsel %vm531, %v854, %v847
      %v856 = vrot.slane %v847, 4
      %v857 = vsel %vm531, %v853, %v856
      %v858 = vmul.f32 %v855, %v470
      %v859 = vmul.f32 %v857, %v470
      %v860 = vmul.f32 %v855, %v647
      %v861 = vmul.f32 %v857, %v647
      %864 = vrot.lane.b32.xlu0 %v860, 120
      %v865 = vpop.permute.xlu0 %864
      %866 = vrot.lane.b32.xlu0 %v861, 120
      %v867 = vpop.permute.xlu0 %866
      %v870 = vsub.f32 %v858, %v865
      %v871 = vsub.f32 %v859, %v867
      %v872 = vmul.f32 %v855, %v675
      %v873 = vmul.f32 %v857, %v675
      %v874 = vmul.f32 %v855, %v471
      %v875 = vmul.f32 %v857, %v471
      %878 = vrot.lane.b32.xlu0 %v874, 8
      %v879 = vpop.permute.xlu0 %878
      %880 = vrot.lane.b32.xlu0 %v875, 8
      %v881 = vpop.permute.xlu0 %880
      %v884 = vadd.f32 %v872, %v879
      %v885 = vadd.f32 %v873, %v881
      %v886 = vsel %vm705, %v870, %v884
      %v887 = vsel %vm705, %v871, %v885
      %v888 = vpack.c.bf16 %v886, %v886
      %v889 = vpack.c.bf16 %v887, %v887
      %890 = vst.msk [vmem:[%s427] sm:$0xf] %vm714, %v888
      %891 = vst.msk [vmem:[%s427 + $0x4] sm:$0xf] %vm714, %v889
      %v892 = vld [vmem:[%s4] sm:$0xf]
      %v893 = vld [vmem:[%s4 + $0x4] sm:$0xf]
      %v894 = vld [vmem:[%s4 + $0x8] sm:$0xf]
      %v895 = vld [vmem:[%s4 + $0xc] sm:$0xf]
      %v896 = vld [vmem:[%s4 + $0x10] sm:$0xf]
      %v897 = vld [vmem:[%s4 + $0x14] sm:$0xf]
      %v898 = vld [vmem:[%s4 + $0x18] sm:$0xf]
      %v899 = vld [vmem:[%s4 + $0x1c] sm:$0xf]
      %v908 = vunpack.c.l.b16 %v892
      %v909 = vunpack.c.l.b16 %v893
      %v910 = vunpack.c.l.b16 %v894
      %v911 = vunpack.c.l.b16 %v895
      %v912 = vunpack.c.l.b16 %v896
      %v913 = vunpack.c.l.b16 %v897
      %v914 = vunpack.c.l.b16 %v898
      %v915 = vunpack.c.l.b16 %v899
      %v916 = vpack.c.b16 %v909, %v908
      %v917 = vpack.c.b16 %v911, %v910
      %v918 = vpack.c.b16 %v913, %v912
      %v919 = vpack.c.b16 %v915, %v914
      %924 = vmatpush.bf16.msra.mxu0 0
      %925 = vmatpush.bf16.msra.mxu0 0
      %926 = vmatpush.bf16.msra.mxu0 0
      %927 = vmatpush.bf16.msra.mxu0 0
      %928 = vmatpush.bf16.msra.mxu0 %v919
      %929 = vmatpush.bf16.msra.mxu0 %v918
      %930 = vmatpush.bf16.msra.mxu0 %v917
      %931 = vmatpush.bf16.msra.mxu0 %v916
      %932 = vmatmul.bf16.gmra.mxu0 %v505
      %v933 = vpop.f32.mrf.mxu0
      %v934 = vadd.f32 0.0, %v933
      %v935 = vpop.f32.mrf.mxu0
      %936 = vdwg.mxu0
      %938 = vrot.lane.b32.xlu0 %v934, 112
      %v939 = vpop.permute.xlu0 %938
      %v941 = vrot.slane %v934, 4
      %v942 = vsel %vm531, 0.0, %v941
      %v944 = vunpack.c.l.s4 1983009808
      %v945 = vunpack.c.0.s8 %v944
      %v946 = vperm.slane %v934, %v945
      %v948 = vunpack.c.l.s4 1983009808
      %v949 = vunpack.c.0.s8 %v948
      %v950 = vperm.slane %v942, %v949
      %v951 = vrot.slane %v939, 4
      %v952 = vsel %vm531, 0.0, %v951
      %v954 = vunpack.c.l.s4 1983009808
      %v955 = vunpack.c.0.s8 %v954
      %v956 = vperm.slane %v939, %v955
      %v958 = vunpack.c.l.s4 1983009808
      %v959 = vunpack.c.0.s8 %v958
      %v960 = vperm.slane %v952, %v959
      %v961 = vrot.slane %v956, 4
      %v962 = vsel %vm531, %v961, %v946
      %v963 = vrot.slane %v946, 4
      %v964 = vsel %vm531, %v956, %v963
      %v966 = vunpack.c.l.s4 1934713408
      %v967 = vunpack.c.0.s8 %v966
      %v968 = vperm.slane %v962, %v967
      %v970 = vunpack.c.l.s4 1934713408
      %v971 = vunpack.c.0.s8 %v970
      %v972 = vperm.slane %v964, %v971
      %v973 = vrot.slane %v960, 4
      %v974 = vsel %vm531, %v973, %v950
      %v975 = vrot.slane %v950, 4
      %v976 = vsel %vm531, %v960, %v975
      %v978 = vunpack.c.l.s4 1934713408
      %v979 = vunpack.c.0.s8 %v978
      %v980 = vperm.slane %v974, %v979
      %v982 = vunpack.c.l.s4 1934713408
      %v983 = vunpack.c.0.s8 %v982
      %v984 = vperm.slane %v976, %v983
      %v985 = vrot.slane %v968, 4
      %v986 = vsel %vm531, 0.0, %v985
      %v987 = vrot.slane %v972, 4
      %v988 = vsel %vm531, 0.0, %v987
      %v989 = vrot.slane %v980, 4
      %v990 = vsel %vm531, 0.0, %v989
      %v991 = vrot.slane %v984, 4
      %v992 = vsel %vm531, 0.0, %v991
      %v993 = vsel %vm531, %v987, %v968
      %v995 = vunpack.c.l.s4 1983009808
      %v996 = vunpack.c.0.s8 %v995
      %v997 = vperm.slane %v993, %v996
      %v998 = vrot.slane %v988, 4
      %v999 = vsel %vm531, %v998, %v986
      %v1001 = vunpack.c.l.s4 1983009808
      %v1002 = vunpack.c.0.s8 %v1001
      %v1003 = vperm.slane %v999, %v1002
      %v1004 = vsel %vm531, %v991, %v980
      %v1006 = vunpack.c.l.s4 1983009808
      %v1007 = vunpack.c.0.s8 %v1006
      %v1008 = vperm.slane %v1004, %v1007
      %v1009 = vrot.slane %v992, 4
      %v1010 = vsel %vm531, %v1009, %v990
      %v1012 = vunpack.c.l.s4 1983009808
      %v1013 = vunpack.c.0.s8 %v1012
      %v1014 = vperm.slane %v1010, %v1013
      %v1015 = vrot.slane %v1003, 4
      %v1016 = vsel %vm531, %v1015, %v997
      %v1018 = vunpack.c.l.s4 1934713408
      %v1019 = vunpack.c.0.s8 %v1018
      %v1020 = vperm.slane %v1016, %v1019
      %v1021 = vrot.slane %v1014, 4
      %v1022 = vsel %vm531, %v1021, %v1008
      %v1024 = vunpack.c.l.s4 1934713408
      %v1025 = vunpack.c.0.s8 %v1024
      %v1026 = vperm.slane %v1022, %v1025
      %v1027 = vrot.slane %v1026, 4
      %v1028 = vsel %vm531, %v1027, %v1020
      %v1029 = vrot.slane %v1020, 4
      %v1030 = vsel %vm531, %v1026, %v1029
      %v1031 = vpack.c.bf16 %v1028, %v1028
      %v1032 = vpack.c.bf16 %v1030, %v1030
      %1033 = vst.msk [vmem:[%s435] sm:$0xf] %vm714, %v1031
      %1034 = vst.msk [vmem:[%s435 + $0x4] sm:$0xf] %vm714, %v1032
      %p1035 = scmp.lt.s32.totalorder %s25, 1
      %s1036 = scalar_select %p1035, %s25, 1
      %p1037 = scmp.lt.s32.totalorder %s26, 0
      %s1038 = scalar_select %p1037, %s26, 0
      %s1039 = smul.addr %s1036, 4
      %s1040 = sadd.s32 %s1038, %s1039
      %s1041 = smul.addr %s1040, 4
      %s1042 = scalar_lea.vmem %s7, %s1041
      %p1043 = scmp.lt.s32.totalorder %s25, 1
      %s1044 = scalar_select %p1043, %s25, 1
      %p1045 = scmp.lt.s32.totalorder %s26, 0
      %s1046 = scalar_select %p1045, %s26, 0
      %s1047 = smul.addr %s1044, 2
      %s1048 = sadd.s32 %s1046, %s1047
      %s1049 = smul.addr %s1048, 4
      %s1050 = scalar_lea.vmem %s8, %s1049
      %p1051 = scmp.lt.s32.totalorder %s25, 1
      %s1052 = scalar_select %p1051, %s25, 1
      %p1053 = scmp.lt.s32.totalorder %s26, 0
      %s1054 = scalar_select %p1053, %s26, 0
      %s1055 = smul.addr %s1052, 2
      %s1056 = sadd.s32 %s1054, %s1055
      %s1057 = smul.addr %s1056, 4
      %s1058 = scalar_lea.vmem %s9, %s1057
      // Predicated region
      $region49: #{fwd.7} parent=47 // pred_check
        %p1059 = pneg %p217
      $region50: #{fwd.7} parent=47 // pred_check_branch
        %1061 = sbr.rel (%p1059) target = $region52
      $region51: #{fwd.7} parent=47 // pred_region
        _
      $region52: #{fwd.7} parent=47 // pred_fallthru
        _
      // Predicated region
      $region53: #{fwd.7} parent=47 // pred_check
        %p1062 = pneg %p245
      $region54: #{fwd.7} parent=47 // pred_check_branch
        %1064 = sbr.rel (%p1062) target = $region56
      $region55: #{fwd.7} parent=47 // pred_region
        _
      $region56: #{fwd.7} parent=47 // pred_fallthru
        _
      // Predicated region
      $region57: #{fwd.7} parent=47 // pred_check
        %p1065 = pneg %p273
      $region58: #{fwd.7} parent=47 // pred_check_branch
        %1067 = sbr.rel (%p1065) target = $region60
      $region59: #{fwd.7} parent=47 // pred_region
        _
      $region60: #{fwd.7} parent=47 // pred_fallthru
        _
    $region48: #{fwd.7} parent=5 // pred_fallthru
      _
    %p1068 = scmp.le.s32.totalorder 2, %s16
    // Predicated region
    $region61: #{fwd.7} parent=5 // pred_check
      %p1069 = pneg %p1068
    $region62: #{fwd.7} parent=5 // pred_check_branch
      %1071 = sbr.rel (%p1069) target = $region64
    $region63: #{fwd.7} parent=5 // pred_region
      %s1072 = ssub.s32 %s16, 2
      // Predicated region
      $region65: #{fwd.7} parent=63 // pred_check
        %p1073 = pneg %p223
      $region66: #{fwd.7} parent=63 // pred_check_branch
        %1075 = sbr.rel (%p1073) target = $region68
      $region67: #{fwd.7} parent=63 // pred_region
        %p1076 = scmp.lt.s32.totalorder %s27, 1
        %s1077 = scalar_select %p1076, %s27, 1
        %p1078 = scmp.lt.s32.totalorder %s28, 0
        %s1079 = scalar_select %p1078, %s28, 0
        %s1080 = smul.addr %s1077, 4
        %s1081 = sadd.s32 %s1079, %s1080
        %s1082 = smul.addr %s1081, 4
        %s1083 = scalar_lea.vmem %s7, %s1082
      $region68: #{fwd.7} parent=63 // pred_fallthru
        _
      // Predicated region
      $region69: #{fwd.7} parent=63 // pred_check
        %p1084 = pneg %p251
      $region70: #{fwd.7} parent=63 // pred_check_branch
        %1086 = sbr.rel (%p1084) target = $region72
      $region71: #{fwd.7} parent=63 // pred_region
        %p1087 = scmp.lt.s32.totalorder %s27, 1
        %s1088 = scalar_select %p1087, %s27, 1
        %p1089 = scmp.lt.s32.totalorder %s28, 0
        %s1090 = scalar_select %p1089, %s28, 0
        %s1091 = smul.addr %s1088, 2
        %s1092 = sadd.s32 %s1090, %s1091
        %s1093 = smul.addr %s1092, 4
        %s1094 = scalar_lea.vmem %s8, %s1093
      $region72: #{fwd.7} parent=63 // pred_fallthru
        _
      // Predicated region
      $region73: #{fwd.7} parent=63 // pred_check
        %p1095 = pneg %p279
      $region74: #{fwd.7} parent=63 // pred_check_branch
        %1097 = sbr.rel (%p1095) target = $region76
      $region75: #{fwd.7} parent=63 // pred_region
        %p1098 = scmp.lt.s32.totalorder %s27, 1
        %s1099 = scalar_select %p1098, %s27, 1
        %p1100 = scmp.lt.s32.totalorder %s28, 0
        %s1101 = scalar_select %p1100, %s28, 0
        %s1102 = smul.addr %s1099, 2
        %s1103 = sadd.s32 %s1101, %s1102
        %s1104 = smul.addr %s1103, 4
        %s1105 = scalar_lea.vmem %s9, %s1104
      $region76: #{fwd.7} parent=63 // pred_fallthru
        _
    $region64: #{fwd.7} parent=5 // pred_fallthru
      _
  $region6: #{fwd.7} parent=0 // loop_footer
    %s20 = sadd.s32 1, %s16
  $region7: #{fwd.7} parent=0 // loop_footer_branch
    %15 = sbr.rel target = $region3
  $region8: #{fwd.7} parent=0 // loop_exit
    _

// kernel: fwd.13
$region0: #{fwd.13}
  #allocation0 [shape = 'u32[]', space=smem, size = 0x4, offset = 0x4, fixed_abs, tag = 'smem constant byte address 0x4 - core index']
  #allocation1 [shape = 'u32[72,128]{1,0:T(1,128)}', space=vmem, size = 0x9000, scoped, tag = 'internal scratch']
  #allocation2 [shape = 'bf16[16,64]{1,0:T(8,128)(2,1)}', space=vmem, size = 0x1000, scoped, tag = 'scratch operand']
  %s0 = inlined_call_operand.vmem [shape: bf16[16,64], index: 0, kind: input, shape index: {}]
  %s1 = inlined_call_operand.vmem [shape: f32[1,64], index: 1, kind: input, shape index: {}]
  %s2 = inlined_call_operand.vmem [shape: bf16[64,256], index: 2, kind: input, shape index: {}]
  %s3 = inlined_call_operand.hbm [shape: f32[16,256], index: 3, kind: output, shape index: {}]
  %s4 = sld [smem:[#allocation0]]
  $region26: #{fwd.13} parent=0
    _
  %s6 = ssub.s32 1, %s4
  %s7 = scalar_select 0, %s6, %s4
  $region1: #{fwd.13} parent=0
    #allocation3 [shape = 'u8[16384]{0}', space=vmem, size = 0x4000, scoped, tag = 'output window, operand 0, single buffered']
    #allocation4 [shape = 's32[1]{0}', space=sflag, size = 0x4, scoped, tag = 'scoped memory for fwd.13']
    %8 = vsyncpa [#allocation4], 0
    // Predicated region
    $region2: #{fwd.13} parent=1 // pred_check
      _
    $region3: #{fwd.13} parent=1 // pred_check_branch
      %10 = sbr.rel (0) target = $region5
    $region4: #{fwd.13} parent=1 // pred_region
      _
    $region5: #{fwd.13} parent=1 // pred_fallthru
      _
    // Predicated region
    $region6: #{fwd.13} parent=1 // pred_check
      _
    $region7: #{fwd.13} parent=1 // pred_check_branch
      %12 = sbr.rel (0) target = $region9
    $region8: #{fwd.13} parent=1 // pred_region
      _
    $region9: #{fwd.13} parent=1 // pred_fallthru
      _
    // Predicated region
    $region10: #{fwd.13} parent=1 // pred_check
      _
    $region11: #{fwd.13} parent=1 // pred_check_branch
      %14 = sbr.rel (0) target = $region13
    $region12: #{fwd.13} parent=1 // pred_region
      _
    $region13: #{fwd.13} parent=1 // pred_fallthru
      _
    %p16 = scmp.eq.s32.totalorder 0, 0
    // Predicated region
    $region14: #{fwd.13} parent=1 // pred_check
      %p17 = pneg %p16
    $region15: #{fwd.13} parent=1 // pred_check_branch
      %19 = sbr.rel (%p17) target = $region17
    $region16: #{fwd.13} parent=1 // pred_region
      %v20 = vld [vmem:[%s0] sm:$0xf]
      %v21 = vld [vmem:[%s0 + $0x4] sm:$0xf]
      %v22 = vunpack.c.l.bf16 %v20
      %v23 = vunpack.c.l.bf16 %v21
      %v24 = vmul.f32 %v22, %v22
      %v25 = vmul.f32 %v23, %v23
      %vm26 = vcmask 523264
      %v27 = vsel %vm26, %v24, 0.0
      %28 = vadd.xlane.f32.xlu0 %v27
      %v29 = vpop.xlane.xlu0 %28
      %v30 = vsel %vm26, %v25, 0.0
      %31 = vadd.xlane.f32.xlu0 %v30
      %v32 = vpop.xlane.xlu0 %31
      %v33 = vrcp.pop 64.0
      %v34 = vmul.f32 64.0, %v33
      %v35 = vsub.f32 1.0, %v34
      %v36 = vmul.f32 %v33, %v35
      %v37 = vadd.f32 %v33, %v36
      %vm38 = vweird.f32 %v33
      %v39 = vsel %vm38, %v33, %v37
      %v40 = vmul.f32 %v29, %v39
      %v41 = vmul.f32 %v32, %v39
      %v42 = vadd.f32 %v40, 1e-05
      %v43 = vadd.f32 %v41, 1e-05
      %v44 = vrsqrt.pop %v42
      %v45 = vmul.f32 %v44, %v42
      %v46 = vmul.f32 %v45, %v44
      %v47 = vmul.f32 0.5, %v46
      %v48 = vsub.f32 1.5, %v47
      %v49 = vmul.f32 %v44, %v48
      %vm50 = vweird.f32 %v42
      %vm51 = vweird.f32 %v44
      %vm52 = vmor %vm50, %vm51
      %v53 = vsel %vm52, %v44, %v49
      %v54 = vrsqrt.pop %v43
      %v55 = vmul.f32 %v54, %v43
      %v56 = vmul.f32 %v55, %v54
      %v57 = vmul.f32 0.5, %v56
      %v58 = vsub.f32 1.5, %v57
      %v59 = vmul.f32 %v54, %v58
      %vm60 = vweird.f32 %v43
      %vm61 = vweird.f32 %v54
      %vm62 = vmor %vm60, %vm61
      %v63 = vsel %vm62, %v54, %v59
      %v64 = vmul.f32 %v22, %v53
      %v65 = vmul.f32 %v23, %v63
      %v66 = vld [vmem:[%s1] sm:$0x1]
      %v68 = vperm.slane %v66, 0
      %v70 = vmul.f32 %v64, %v68
      %v71 = vmul.f32 %v65, %v68
      %v72 = vpack.c.bf16 %v70, %v70
      %v73 = vpack.c.bf16 %v71, %v71
      %vm74 = vcmask 519168
      %75 = vst.msk [vmem:[#allocation2] sm:$0xf] %vm74, %v72
      %76 = vst.msk [vmem:[#allocation2 + $0x4] sm:$0xf] %vm74, %v73
    $region17: #{fwd.13} parent=1 // pred_fallthru
      _
    %v77 = vld [vmem:[#allocation2] sm:$0xf]
    %v78 = vld [vmem:[#allocation2 + $0x4] sm:$0xf]
    %v79 = vld [vmem:[%s2] sm:$0xff]
    %v80 = vld [vmem:[%s2 + $0x8] sm:$0xff]
    %v81 = vld [vmem:[%s2 + $0x10] sm:$0xff]
    %v82 = vld [vmem:[%s2 + $0x18] sm:$0xff]
    %v83 = vld [vmem:[%s2 + $0x20] sm:$0xff]
    %v84 = vld [vmem:[%s2 + $0x28] sm:$0xff]
    %v85 = vld [vmem:[%s2 + $0x30] sm:$0xff]
    %v86 = vld [vmem:[%s2 + $0x38] sm:$0xff]
    %v89 = vunpack.c.l.b16 %v77
    %v90 = vunpack.c.l.b16 %v78
    %v91 = vpack.c.b16 %v90, %v89
    %v100 = vunpack.c.l.b16 %v79
    %v101 = vunpack.c.h.b16 %v79
    %v102 = vunpack.c.l.b16 %v80
    %v103 = vunpack.c.h.b16 %v80
    %v104 = vunpack.c.l.b16 %v81
    %v105 = vunpack.c.h.b16 %v81
    %v106 = vunpack.c.l.b16 %v82
    %v107 = vunpack.c.h.b16 %v82
    %v108 = vunpack.c.l.b16 %v83
    %v109 = vunpack.c.h.b16 %v83
    %v110 = vunpack.c.l.b16 %v84
    %v111 = vunpack.c.h.b16 %v84
    %v112 = vunpack.c.l.b16 %v85
    %v113 = vunpack.c.h.b16 %v85
    %v114 = vunpack.c.l.b16 %v86
    %v115 = vunpack.c.h.b16 %v86
    %v116 = vpack.c.b16 %v102, %v100
    %v117 = vpack.c.b16 %v103, %v101
    %v118 = vpack.c.b16 %v106, %v104
    %v119 = vpack.c.b16 %v107, %v105
    %v120 = vpack.c.b16 %v110, %v108
    %v121 = vpack.c.b16 %v111, %v109
    %v122 = vpack.c.b16 %v114, %v112
    %v123 = vpack.c.b16 %v115, %v113
    %vm132 = vcmask 523264
    %v134 = vsel %vm132, %v91, 0
    %136 = vmatpush.bf16.msra.mxu0 0
    %137 = vmatpush.bf16.msra.mxu0 0
    %138 = vmatpush.bf16.msra.mxu0 0
    %139 = vmatpush.bf16.msra.mxu0 0
    %140 = vmatpush.bf16.msra.mxu0 %v122
    %141 = vmatpush.bf16.msra.mxu0 %v120
    %142 = vmatpush.bf16.msra.mxu0 %v118
    %143 = vmatpush.bf16.msra.mxu0 %v116
    %144 = vmatmul.bf16.gmra.mxu0 %v134
    %v145 = vpop.f32.mrf.mxu0
    %v146 = vadd.f32 0.0, %v145
    %v147 = vpop.f32.mrf.mxu0
    %v148 = vadd.f32 0.0, %v147
    %149 = vdwg.mxu0
    %150 = vmatpush.bf16.msra.mxu0 0
    %151 = vmatpush.bf16.msra.mxu0 0
    %152 = vmatpush.bf16.msra.mxu0 0
    %153 = vmatpush.bf16.msra.mxu0 0
    %154 = vmatpush.bf16.msra.mxu0 %v123
    %155 = vmatpush.bf16.msra.mxu0 %v121
    %156 = vmatpush.bf16.msra.mxu0 %v119
    %157 = vmatpush.bf16.msra.mxu0 %v117
    %158 = vmatmul.bf16.gmra.mxu0 %v134
    %v159 = vpop.f32.mrf.mxu0
    %v160 = vadd.f32 0.0, %v159
    %v161 = vpop.f32.mrf.mxu0
    %v162 = vadd.f32 0.0, %v161
    %163 = vdwg.mxu0
    %164 = vst [vmem:[#allocation3] sm:$0xff] %v146
    %165 = vst [vmem:[#allocation3 + $0x8] sm:$0xff] %v160
    %166 = vst [vmem:[#allocation3 + $0x10] sm:$0xff] %v148
    %167 = vst [vmem:[#allocation3 + $0x18] sm:$0xff] %v162
    // Predicated region
    $region18: #{fwd.13} parent=1 // pred_check
      _
    $region19: #{fwd.13} parent=1 // pred_check_branch
      %169 = sbr.rel (0) target = $region21
    $region20: #{fwd.13} parent=1 // pred_region
      %171 = vsyncadd [#allocation4], 0
      %s172 = sshll.u32 [#allocation3], 4
      %s173 = int_to_ptr.vmem [resolvable:$true] %s172
      %s174 = sshll.u32 %s3, 4
      %s175 = int_to_ptr.hbm [resolvable:$true] %s174
      %180 = dma.vmem_to_hbm [thread:$0]  %s173, 512, %s175, [#allocation4], 256, 256, 16
    $region21: #{fwd.13} parent=1 // pred_fallthru
      _
    // Predicated region
    $region22: #{fwd.13} parent=1 // pred_check
      _
    $region23: #{fwd.13} parent=1 // pred_check_branch
      %182 = sbr.rel (0) target = $region25
    $region24: #{fwd.13} parent=1 // pred_region
      %184 = dma.done [#allocation4], 512
    $region25: #{fwd.13} parent=1 // pred_fallthru
      _
    %185 = vsyncpa [#allocation4], 1

// kernel: fwd.8
$region0: #{fwd.8}
  #allocation0 [shape = 'u32[]', space=smem, size = 0x4, offset = 0x4, fixed_abs, tag = 'smem constant byte address 0x4 - core index']
  #allocation1 [shape = 'u32[72,128]{1,0:T(1,128)}', space=vmem, size = 0x9000, scoped, tag = 'internal scratch']
  #allocation2 [shape = 'f32[2,16,1]{2,1,0:T(8,128)}', space=vmem, size = 0x4000, scoped, tag = 'scratch operand']
  #allocation3 [shape = 'f32[2,16,1]{2,1,0:T(8,128)}', space=vmem, size = 0x4000, scoped, tag = 'scratch operand']
  #allocation4 [shape = 'f32[2,16,16]{2,1,0:T(8,128)}', space=vmem, size = 0x4000, scoped, tag = 'scratch operand']
  %s0 = inlined_call_operand.vmem [shape: bf16[2,4,8,16], index: 0, kind: input, shape index: {}]
  %s1 = inlined_call_operand.vmem [shape: bf16[2,2,8,16], index: 1, kind: input, shape index: {}]
  %s2 = inlined_call_operand.vmem [shape: bf16[2,2,8,16], index: 2, kind: input, shape index: {}]
  %s3 = inlined_call_operand.vmem [shape: bf16[2,8,64], index: 3, kind: input, shape index: {}]
  %s4 = inlined_call_operand.vmem [shape: bf16[64,64], index: 4, kind: input, shape index: {}]
  %s5 = inlined_call_operand.vmem [shape: bf16[2,8,64], index: 5, kind: output, shape index: {}]
  %s6 = sld [smem:[#allocation0]]
  $region65: #{fwd.8} parent=0
    _
  %s8 = ssub.s32 1, %s6
  %s9 = scalar_select 0, %s8, %s6
  loop: start=0, step=1, limit=4
  $region2: #{fwd.8} parent=0 // loop_pre_header
    _
  $region3: #{fwd.8} parent=0 // loop_header
    %s11 = sphi 0, %s15
    %p12 = scmp.ge.s32.totalorder %s11, 4
    %s18 = sphi 0, %s37
    %s19 = sphi 0, %s33
    %s20 = sphi 0, %s29
    %s21 = sphi 0, %s18
    %s22 = sphi 0, %s19
    %s23 = sphi 0, %s20
    %s24 = sphi 0, %s21
    %s25 = sphi 0, %s22
    %s26 = sphi 0, %s23
    %s42 = sphi 0, %s44
    %s45 = sphi 0, %s42
    %s46 = sphi 0, %s45
    %s62 = sphi 0, %s46
    %s70 = sphi 0, %s72
    %s73 = sphi 0, %s70
    %s74 = sphi 0, %s73
    %s90 = sphi 0, %s74
    %s98 = sphi 0, %s100
    %s101 = sphi 0, %s98
    %s102 = sphi 0, %s101
    %s118 = sphi 0, %s102
    %s126 = sphi 0, %s128
    %s129 = sphi 0, %s126
    %s130 = sphi 0, %s129
    %s146 = sphi 0, %s130
    %s150 = sphi 0, %s150
    %s152 = sphi 0, %s150
    %s153 = sphi 0, %s152
    %s167 = sphi 0, %s153
    %s175 = sphi 0, %s177
    %s178 = sphi 0, %s175
    %s179 = sphi 0, %s178
    %s195 = sphi 0, %s179
  $region4: #{fwd.8} parent=0 // loop_header_branch
    %14 = sbr.rel (%p12) target = $region8
  $region5: #{fwd.8} parent=0 // loop_body
    %s16 = ssub.s32 %s11, 1
    %s17 = ssub.s32 %s11, 2
    %s27 = sadd.s32 1, %s20
    %p28 = scmp.ge.s32.totalorder %s27, 1
    %s29 = scalar_select %p28, 0, %s27
    %s30 = sadd.s32 1, %s19
    %s31 = scalar_select %p28, %s30, %s19
    %p32 = scmp.ge.s32.totalorder %s31, 1
    %s33 = scalar_select %p32, 0, %s31
    %s34 = sadd.s32 1, %s18
    %s35 = scalar_select %p32, %s34, %s18
    %p36 = scmp.ge.s32.totalorder %s35, 2
    %s37 = scalar_select %p36, 0, %s35
    %s38 = ssub.s32 %s18, %s37
    %s39 = ssub.s32 %s19, %s33
    %s40 = sor.u32 %s38, %s39
    %p41 = scmp.eq.s32.totalorder %s40, 0
    %s43 = sadd.s32 %s42, 1
    %s44 = scalar_select %p41, %s42, %s43
    %p47 = pneg %p41
    %p48 = scmp.eq.s32.totalorder %s11, 1
    %p49 = por %p47, %p48
    %p50 = scmp.ne.s32.totalorder %s42, %s45
    %p51 = scmp.eq.s32.totalorder %s11, 0
    %p52 = por %p50, %p51
    %p53 = scmp.ne.s32.totalorder %s42, %s45
    %p54 = scmp.eq.s32.totalorder %s16, 1
    %p55 = por %p53, %p54
    %p56 = scmp.ne.s32.totalorder %s45, %s46
    %p57 = scmp.eq.s32.totalorder %s16, 0
    %p58 = por %p56, %p57
    %p59 = scmp.ne.s32.totalorder %s45, %s46
    %p60 = scmp.eq.s32.totalorder %s17, 1
    %p61 = por %p59, %p60
    %p63 = scmp.ne.s32.totalorder %s46, %s62
    %p64 = scmp.eq.s32.totalorder %s17, 0
    %p65 = por %p63, %p64
    %s66 = ssub.s32 %s18, %s37
    %s67 = ssub.s32 %s20, %s29
    %s68 = sor.u32 %s66, %s67
    %p69 = scmp.eq.s32.totalorder %s68, 0
    %s71 = sadd.s32 %s70, 1
    %s72 = scalar_select %p69, %s70, %s71
    %p75 = pneg %p69
    %p76 = scmp.eq.s32.totalorder %s11, 1
    %p77 = por %p75, %p76
    %p78 = scmp.ne.s32.totalorder %s70, %s73
    %p79 = scmp.eq.s32.totalorder %s11, 0
    %p80 = por %p78, %p79
    %p81 = scmp.ne.s32.totalorder %s70, %s73
    %p82 = scmp.eq.s32.totalorder %s16, 1
    %p83 = por %p81, %p82
    %p84 = scmp.ne.s32.totalorder %s73, %s74
    %p85 = scmp.eq.s32.totalorder %s16, 0
    %p86 = por %p84, %p85
    %p87 = scmp.ne.s32.totalorder %s73, %s74
    %p88 = scmp.eq.s32.totalorder %s17, 1
    %p89 = por %p87, %p88
    %p91 = scmp.ne.s32.totalorder %s74, %s90
    %p92 = scmp.eq.s32.totalorder %s17, 0
    %p93 = por %p91, %p92
    %s94 = ssub.s32 %s18, %s37
    %s95 = ssub.s32 %s20, %s29
    %s96 = sor.u32 %s94, %s95
    %p97 = scmp.eq.s32.totalorder %s96, 0
    %s99 = sadd.s32 %s98, 1
    %s100 = scalar_select %p97, %s98, %s99
    %p103 = pneg %p97
    %p104 = scmp.eq.s32.totalorder %s11, 1
    %p105 = por %p103, %p104
    %p106 = scmp.ne.s32.totalorder %s98, %s101
    %p107 = scmp.eq.s32.totalorder %s11, 0
    %p108 = por %p106, %p107
    %p109 = scmp.ne.s32.totalorder %s98, %s101
    %p110 = scmp.eq.s32.totalorder %s16, 1
    %p111 = por %p109, %p110
    %p112 = scmp.ne.s32.totalorder %s101, %s102
    %p113 = scmp.eq.s32.totalorder %s16, 0
    %p114 = por %p112, %p113
    %p115 = scmp.ne.s32.totalorder %s101, %s102
    %p116 = scmp.eq.s32.totalorder %s17, 1
    %p117 = por %p115, %p116
    %p119 = scmp.ne.s32.totalorder %s102, %s118
    %p120 = scmp.eq.s32.totalorder %s17, 0
    %p121 = por %p119, %p120
    %s122 = ssub.s32 %s18, %s37
    %s123 = ssub.s32 %s19, %s33
    %s124 = sor.u32 %s122, %s123
    %p125 = scmp.eq.s32.totalorder %s124, 0
    %s127 = sadd.s32 %s126, 1
    %s128 = scalar_select %p125, %s126, %s127
    %p131 = pneg %p125
    %p132 = scmp.eq.s32.totalorder %s11, 1
    %p133 = por %p131, %p132
    %p134 = scmp.ne.s32.totalorder %s126, %s129
    %p135 = scmp.eq.s32.totalorder %s11, 0
    %p136 = por %p134, %p135
    %p137 = scmp.ne.s32.totalorder %s126, %s129
    %p138 = scmp.eq.s32.totalorder %s16, 1
    %p139 = por %p137, %p138
    %p140 = scmp.ne.s32.totalorder %s129, %s130
    %p141 = scmp.eq.s32.totalorder %s16, 0
    %p142 = por %p140, %p141
    %p143 = scmp.ne.s32.totalorder %s129, %s130
    %p144 = scmp.eq.s32.totalorder %s17, 1
    %p145 = por %p143, %p144
    %p147 = scmp.ne.s32.totalorder %s130, %s146
    %p148 = scmp.eq.s32.totalorder %s17, 0
    %p149 = por %p147, %p148
    %s151 = sadd.s32 %s150, 1
    %p154 = scmp.eq.s32.totalorder %s11, 1
    %p155 = scmp.ne.s32.totalorder %s150, %s152
    %p156 = scmp.eq.s32.totalorder %s11, 0
    %p157 = por %p155, %p156
    %p158 = scmp.ne.s32.totalorder %s150, %s152
    %p159 = scmp.eq.s32.totalorder %s16, 1
    %p160 = por %p158, %p159
    %p161 = scmp.ne.s32.totalorder %s152, %s153
    %p162 = scmp.eq.s32.totalorder %s16, 0
    %p163 = por %p161, %p162
    %p164 = scmp.ne.s32.totalorder %s152, %s153
    %p165 = scmp.eq.s32.totalorder %s17, 1
    %p166 = por %p164, %p165
    %p168 = scmp.ne.s32.totalorder %s153, %s167
    %p169 = scmp.eq.s32.totalorder %s17, 0
    %p170 = por %p168, %p169
    %s171 = ssub.s32 %s18, %s37
    %s172 = ssub.s32 %s19, %s33
    %s173 = sor.u32 %s171, %s172
    %p174 = scmp.eq.s32.totalorder %s173, 0
    %s176 = sadd.s32 %s175, 1
    %s177 = scalar_select %p174, %s175, %s176
    %p180 = pneg %p174
    %p181 = scmp.eq.s32.totalorder %s11, 1
    %p182 = por %p180, %p181
    %p183 = scmp.ne.s32.totalorder %s175, %s178
    %p184 = scmp.eq.s32.totalorder %s11, 0
    %p185 = por %p183, %p184
    %p186 = scmp.ne.s32.totalorder %s175, %s178
    %p187 = scmp.eq.s32.totalorder %s16, 1
    %p188 = por %p186, %p187
    %p189 = scmp.ne.s32.totalorder %s178, %s179
    %p190 = scmp.eq.s32.totalorder %s16, 0
    %p191 = por %p189, %p190
    %p192 = scmp.ne.s32.totalorder %s178, %s179
    %p193 = scmp.eq.s32.totalorder %s17, 1
    %p194 = por %p192, %p193
    %p196 = scmp.ne.s32.totalorder %s179, %s195
    %p197 = scmp.eq.s32.totalorder %s17, 0
    %p198 = por %p196, %p197
    %p199 = scmp.le.s32.totalorder 1, %s11
    %p200 = scmp.lt.s32.totalorder %s11, 3
    %p201 = pnand %p199, %p200
    %p202 = pneg %p201
    // Predicated region
    $region9: #{fwd.8} parent=5 // pred_check
      _
    $region10: #{fwd.8} parent=5 // pred_check_branch
      %204 = sbr.rel (%p201) target = $region12
    $region11: #{fwd.8} parent=5 // pred_region
      %s205 = ssub.s32 %s11, 1
      // Predicated region
      $region13: #{fwd.8} parent=11 // pred_check
        %p206 = pneg %p163
      $region14: #{fwd.8} parent=11 // pred_check_branch
        %208 = sbr.rel (%p206) target = $region16
      $region15: #{fwd.8} parent=11 // pred_region
        _
      $region16: #{fwd.8} parent=11 // pred_fallthru
        _
    $region12: #{fwd.8} parent=5 // pred_fallthru
      _
    %p209 = scmp.lt.s32.totalorder %s11, 2
    // Predicated region
    $region17: #{fwd.8} parent=5 // pred_check
      %p210 = pneg %p209
    $region18: #{fwd.8} parent=5 // pred_check_branch
      %212 = sbr.rel (%p210) target = $region20
    $region19: #{fwd.8} parent=5 // pred_region
      // Predicated region
      $region21: #{fwd.8} parent=19 // pred_check
        %p213 = pneg %p52
      $region22: #{fwd.8} parent=19 // pred_check_branch
        %215 = sbr.rel (%p213) target = $region24
      $region23: #{fwd.8} parent=19 // pred_region
        %p216 = scmp.lt.s32.totalorder %s18, 1
        %s217 = scalar_select %p216, %s18, 1
        %p218 = scmp.lt.s32.totalorder %s19, 0
        %s219 = scalar_select %p218, %s19, 0
        %s220 = smul.addr %s217, 4
        %s221 = sadd.s32 %s219, %s220
        %s222 = smul.addr %s221, 4
        %s223 = scalar_lea.vmem %s0, %s222
      $region24: #{fwd.8} parent=19 // pred_fallthru
        _
      // Predicated region
      $region25: #{fwd.8} parent=19 // pred_check
        %p224 = pneg %p80
      $region26: #{fwd.8} parent=19 // pred_check_branch
        %226 = sbr.rel (%p224) target = $region28
      $region27: #{fwd.8} parent=19 // pred_region
        %p227 = scmp.lt.s32.totalorder %s18, 1
        %s228 = scalar_select %p227, %s18, 1
        %p229 = scmp.lt.s32.totalorder %s20, 0
        %s230 = scalar_select %p229, %s20, 0
        %s231 = smul.addr %s228, 2
        %s232 = sadd.s32 %s230, %s231
        %s233 = smul.addr %s232, 4
        %s234 = scalar_lea.vmem %s1, %s233
      $region28: #{fwd.8} parent=19 // pred_fallthru
        _
      // Predicated region
      $region29: #{fwd.8} parent=19 // pred_check
        %p235 = pneg %p108
      $region30: #{fwd.8} parent=19 // pred_check_branch
        %237 = sbr.rel (%p235) target = $region32
      $region31: #{fwd.8} parent=19 // pred_region
        %p238 = scmp.lt.s32.totalorder %s18, 1
        %s239 = scalar_select %p238, %s18, 1
        %p240 = scmp.lt.s32.totalorder %s20, 0
        %s241 = scalar_select %p240, %s20, 0
        %s242 = smul.addr %s239, 2
        %s243 = sadd.s32 %s241, %s242
        %s244 = smul.addr %s243, 4
        %s245 = scalar_lea.vmem %s2, %s244
      $region32: #{fwd.8} parent=19 // pred_fallthru
        _
      // Predicated region
      $region33: #{fwd.8} parent=19 // pred_check
        %p246 = pneg %p136
      $region34: #{fwd.8} parent=19 // pred_check_branch
        %248 = sbr.rel (%p246) target = $region36
      $region35: #{fwd.8} parent=19 // pred_region
        %p249 = scmp.lt.s32.totalorder %s18, 1
        %s250 = scalar_select %p249, %s18, 1
        %p251 = scmp.lt.s32.totalorder %s19, 0
        %s252 = scalar_select %p251, %s19, 0
        %s253 = sadd.s32 %s252, %s250
        %s254 = smul.addr %s253, 4
        %s255 = scalar_lea.vmem %s3, %s254
      $region36: #{fwd.8} parent=19 // pred_fallthru
        _
    $region20: #{fwd.8} parent=5 // pred_fallthru
      _
    %p256 = scmp.le.s32.totalorder 1, %s11
    %p257 = scmp.lt.s32.totalorder %s11, 3
    %p258 = pnand %p256, %p257
    %p259 = pneg %p258
    // Predicated region
    $region37: #{fwd.8} parent=5 // pred_check
      _
    $region38: #{fwd.8} parent=5 // pred_check_branch
      %261 = sbr.rel (%p258) target = $region40
    $region39: #{fwd.8} parent=5 // pred_region
      %s262 = ssub.s32 %s11, 1
      %p263 = scmp.lt.s32.totalorder %s21, 1
      %s264 = scalar_select %p263, %s21, 1
      %p265 = scmp.lt.s32.totalorder %s22, 0
      %s266 = scalar_select %p265, %s22, 0
      %s267 = smul.addr %s264, 4
      %s268 = sadd.s32 %s266, %s267
      %s269 = smul.addr %s268, 4
      %s270 = scalar_lea.vmem %s0, %s269
      %p271 = pneg %p58
      %p272 = pneg %p55
      %p273 = scmp.lt.s32.totalorder %s21, 1
      %s274 = scalar_select %p273, %s21, 1
      %p275 = scmp.lt.s32.totalorder %s23, 0
      %s276 = scalar_select %p275, %s23, 0
      %s277 = smul.addr %s274, 2
      %s278 = sadd.s32 %s276, %s277
      %s279 = smul.addr %s278, 4
      %s280 = scalar_lea.vmem %s1, %s279
      %p281 = pneg %p86
      %p282 = pneg %p83
      %p283 = scmp.lt.s32.totalorder %s21, 1
      %s284 = scalar_select %p283, %s21, 1
      %p285 = scmp.lt.s32.totalorder %s23, 0
      %s286 = scalar_select %p285, %s23, 0
      %s287 = smul.addr %s284, 2
      %s288 = sadd.s32 %s286, %s287
      %s289 = smul.addr %s288, 4
      %s290 = scalar_lea.vmem %s2, %s289
      %p291 = pneg %p114
      %p292 = pneg %p111
      %p293 = scmp.lt.s32.totalorder %s21, 1
      %s294 = scalar_select %p293, %s21, 1
      %p295 = scmp.lt.s32.totalorder %s22, 0
      %s296 = scalar_select %p295, %s22, 0
      %s297 = sadd.s32 %s296, %s294
      %s298 = smul.addr %s297, 4
      %s299 = scalar_lea.vmem %s3, %s298
      %p300 = pneg %p142
      %p301 = pneg %p139
      %p302 = pneg %p163
      %p303 = pneg %p160
      %p304 = pneg %p191
      %p305 = pneg %p188
      %p306 = scmp.lt.s32.totalorder %s21, 1
      %s307 = scalar_select %p306, %s21, 1
      %p308 = scmp.lt.s32.totalorder %s22, 0
      %s309 = scalar_select %p308, %s22, 0
      %s310 = sadd.s32 %s309, %s307
      %s311 = smul.addr %s310, 4
      %s312 = scalar_lea.vmem %s5, %s311
      %p313 = scmp.lt.s32.totalorder %s21, 1
      %s314 = scalar_select %p313, %s21, 1
      %p315 = scmp.lt.s32.totalorder %s22, 0
      %s316 = scalar_select %p315, %s22, 0
      %s317 = smul.addr %s314, 4
      %s318 = sadd.s32 %s316, %s317
      %s319 = smul.addr %s318, 4
      %s320 = scalar_lea.vmem %s0, %s319
      %p321 = scmp.lt.s32.totalorder %s21, 1
      %s322 = scalar_select %p321, %s21, 1
      %p323 = scmp.lt.s32.totalorder %s23, 0
      %s324 = scalar_select %p323, %s23, 0
      %s325 = smul.addr %s322, 2
      %s326 = sadd.s32 %s324, %s325
      %s327 = smul.addr %s326, 4
      %s328 = scalar_lea.vmem %s1, %s327
      %p329 = scmp.lt.s32.totalorder %s21, 1
      %s330 = scalar_select %p329, %s21, 1
      %p331 = scmp.lt.s32.totalorder %s23, 0
      %s332 = scalar_select %p331, %s23, 0
      %s333 = smul.addr %s330, 2
      %s334 = sadd.s32 %s332, %s333
      %s335 = smul.addr %s334, 4
      %s336 = scalar_lea.vmem %s2, %s335
      %p337 = scmp.lt.s32.totalorder %s21, 1
      %s338 = scalar_select %p337, %s21, 1
      %p339 = scmp.lt.s32.totalorder %s22, 0
      %s340 = scalar_select %p339, %s22, 0
      %s341 = sadd.s32 %s340, %s338
      %s342 = smul.addr %s341, 4
      %s343 = scalar_lea.vmem %s3, %s342
      %p344 = scmp.lt.s32.totalorder %s21, 1
      %s345 = scalar_select %p344, %s21, 1
      %p346 = scmp.lt.s32.totalorder %s22, 0
      %s347 = scalar_select %p346, %s22, 0
      %s348 = sadd.s32 %s347, %s345
      %s349 = smul.addr %s348, 4
      %s350 = scalar_lea.vmem %s5, %s349
      %p352 = scmp.eq.s32.totalorder %s23, 0
      // Predicated region
      $region41: #{fwd.8} parent=39 // pred_check
        %p353 = pneg %p352
      $region42: #{fwd.8} parent=39 // pred_check_branch
        %355 = sbr.rel (%p353) target = $region44
      $region43: #{fwd.8} parent=39 // pred_region
        %vm356 = vcmask 7168
        %357 = vst.msk [vmem:[#allocation2] sm:$0xff] %vm356, -1e+30
        %358 = vst.msk [vmem:[#allocation2 + $0x8] sm:$0xff] %vm356, -1e+30
        %359 = vst.msk [vmem:[#allocation2 + $0x10] sm:$0xff] %vm356, -1e+30
        %360 = vst.msk [vmem:[#allocation2 + $0x18] sm:$0xff] %vm356, -1e+30
        %361 = vst.msk [vmem:[#allocation3] sm:$0xff] %vm356, 0.0
        %362 = vst.msk [vmem:[#allocation3 + $0x8] sm:$0xff] %vm356, 0.0
        %363 = vst.msk [vmem:[#allocation3 + $0x10] sm:$0xff] %vm356, 0.0
        %364 = vst.msk [vmem:[#allocation3 + $0x18] sm:$0xff] %vm356, 0.0
        %vm365 = vcmask 130048
        %366 = vst.msk [vmem:[#allocation4] sm:$0xff] %vm365, 0.0
        %367 = vst.msk [vmem:[#allocation4 + $0x8] sm:$0xff] %vm365, 0.0
        %368 = vst.msk [vmem:[#allocation4 + $0x10] sm:$0xff] %vm365, 0.0
        %369 = vst.msk [vmem:[#allocation4 + $0x18] sm:$0xff] %vm365, 0.0
      $region44: #{fwd.8} parent=39 // pred_fallthru
        _
      %s370 = smul.u32 %s22, 8
      %s371 = sadd.s32 %s370, 7
      %s372 = smul.u32 %s23, 8
      %p373 = scmp.ge.s32.totalorder %s371, %s372
      // Predicated region
      $region45: #{fwd.8} parent=39 // pred_check
        %p374 = pneg %p373
      $region46: #{fwd.8} parent=39 // pred_check_branch
        %376 = sbr.rel (%p374) target = $region48
      $region47: #{fwd.8} parent=39 // pred_region
        %v377 = vld [vmem:[%s320] sm:$0xf]
        %v378 = vld [vmem:[%s320 + $0x4] sm:$0xf]
        %v379 = vld [vmem:[%s320 + $0x8] sm:$0xf]
        %v380 = vld [vmem:[%s320 + $0xc] sm:$0xf]
        %v381 = vld [vmem:[%s328] sm:$0xf]
        %v382 = vld [vmem:[%s328 + $0x4] sm:$0xf]
        %v383 = vld [vmem:[%s336] sm:$0xf]
        %v384 = vld [vmem:[%s336 + $0x4] sm:$0xf]
        %v387 = vunpack.c.l.b16 %v377
        %v388 = vunpack.c.l.b16 %v378
        %v389 = vpack.c.b16 %v388, %v387
        %vm390 = vcmask 130048
        %v392 = vsel %vm390, %v389, 0
        %v395 = vsel %vm390, %v381, 0
        %397 = vmatpush.bf16.xpose.msra.mxu0 0
        %398 = vmatpush.bf16.xpose.msra.mxu0 0
        %399 = vmatpush.bf16.xpose.msra.mxu0 0
        %400 = vmatpush.bf16.xpose.msra.mxu0 0
        %401 = vmatpush.bf16.xpose.msra.mxu0 0
        %402 = vmatpush.bf16.xpose.msra.mxu0 0
        %403 = vmatpush.bf16.xpose.msra.mxu0 0
        %404 = vmatpush.bf16.xpose.msra.mxu0 %v395
        %405 = vmatmul.bf16.gmra.mxu0 %v392
        %v406 = vpop.f32.mrf.mxu0
        %v407 = vadd.f32 0.0, %v406
        %v408 = vpop.f32.mrf.mxu0
        %v409 = vadd.f32 0.0, %v408
        %410 = vdwg.mxu0
        %v413 = vunpack.c.l.b16 %v379
        %v414 = vunpack.c.l.b16 %v380
        %v415 = vpack.c.b16 %v414, %v413
        %v417 = vsel %vm390, %v415, 0
        %v420 = vsel %vm390, %v382, 0
        %422 = vmatpush.bf16.xpose.msra.mxu0 0
        %423 = vmatpush.bf16.xpose.msra.mxu0 0
        %424 = vmatpush.bf16.xpose.msra.mxu0 0
        %425 = vmatpush.bf16.xpose.msra.mxu0 0
        %426 = vmatpush.bf16.xpose.msra.mxu0 0
        %427 = vmatpush.bf16.xpose.msra.mxu0 0
        %428 = vmatpush.bf16.xpose.msra.mxu0 0
        %429 = vmatpush.bf16.xpose.msra.mxu0 %v420
        %430 = vmatmul.bf16.gmra.mxu0 %v417
        %v431 = vpop.f32.mrf.mxu0
        %v432 = vadd.f32 0.0, %v431
        %v433 = vpop.f32.mrf.mxu0
        %v434 = vadd.f32 0.0, %v433
        %435 = vdwg.mxu0
        %v436 = vmul.f32 %v407, 0.25
        %v437 = vmul.f32 %v409, 0.25
        %v438 = vmul.f32 %v432, 0.25
        %v439 = vmul.f32 %v434, 0.25
        %v440 = vlaneseq
        %v441 = vshrl.u32 %v440, 7
        %v442 = vstv %s370
        %v443 = vadd.s32 %v442, %v441
        %v444 = vlaneseq
        %v445 = vand.u32 %v444, 127
        %v446 = vstv %s372
        %v447 = vadd.s32 %v446, %v445
        %vm448 = vcmp.ge.s32.totalorder %v443, %v447
        %v449 = vsel %vm448, 1, 0
        %vm450 = vcmp.eq.s32.totalorder %v449, 1
        %v451 = vsel %vm450, %v436, -1e+30
        %v452 = vsel %vm450, %v437, -1e+30
        %v453 = vsel %vm450, %v438, -1e+30
        %v454 = vsel %vm450, %v439, -1e+30
        %v455 = vld [vmem:[#allocation2] sm:$0xff]
        %v456 = vld [vmem:[#allocation2 + $0x8] sm:$0xff]
        %v457 = vld [vmem:[#allocation2 + $0x10] sm:$0xff]
        %v458 = vld [vmem:[#allocation2 + $0x18] sm:$0xff]
        %vm459 = vcmask 64512
        %v460 = vsel %vm459, %v451, -inf
        %461 = vmax.xlane.f32.xlu0 %v460
        %v462 = vpop.xlane.xlu0 %461
        %v463 = vsel %vm459, %v452, -inf
        %464 = vmax.xlane.f32.xlu0 %v463
        %v465 = vpop.xlane.xlu0 %464
        %v466 = vsel %vm459, %v453, -inf
        %467 = vmax.xlane.f32.xlu0 %v466
        %v468 = vpop.xlane.xlu0 %467
        %v469 = vsel %vm459, %v454, -inf
        %470 = vmax.xlane.f32.xlu0 %v469
        %v471 = vpop.xlane.xlu0 %470
        %v472 = vmax.f32 %v455, %v462
        %v473 = vmax.f32 %v456, %v465
        %v474 = vmax.f32 %v457, %v468
        %v475 = vmax.f32 %v458, %v471
        %v476 = vsub.f32 %v455, %v472
        %v477 = vsub.f32 %v456, %v473
        %v478 = vsub.f32 %v457, %v474
        %v479 = vsub.f32 %v458, %v475
        %v480 = vmul.f32 %v476, 1.442695
        %v481 = vpow.pop %v480
        %v482 = vmul.f32 %v477, 1.442695
        %v483 = vpow.pop %v482
        %v484 = vmul.f32 %v478, 1.442695
        %v485 = vpow.pop %v484
        %v486 = vmul.f32 %v479, 1.442695
        %v487 = vpow.pop %v486
        %489 = vset.pattern.permute.xlu0 0
        %490 = vperm.xlu0 %489, %v472
        %v491 = vpop.permute.xlu0 %490
        %494 = vset.pattern.permute.xlu0 0
        %495 = vperm.xlu0 %494, %v473
        %v496 = vpop.permute.xlu0 %495
        %499 = vset.pattern.permute.xlu0 0
        %500 = vperm.xlu0 %499, %v474
        %v501 = vpop.permute.xlu0 %500
        %504 = vset.pattern.permute.xlu0 0
        %505 = vperm.xlu0 %504, %v475
        %v506 = vpop.permute.xlu0 %505
        %v508 = vsub.f32 %v451, %v491
        %v509 = vsub.f32 %v452, %v496
        %v510 = vsub.f32 %v453, %v501
        %v511 = vsub.f32 %v454, %v506
        %v512 = vmul.f32 %v508, 1.442695
        %v513 = vpow.pop %v512
        %v514 = vmul.f32 %v509, 1.442695
        %v515 = vpow.pop %v514
        %v516 = vmul.f32 %v510, 1.442695
        %v517 = vpow.pop %v516
        %v518 = vmul.f32 %v511, 1.442695
        %v519 = vpow.pop %v518
        %v520 = vld [vmem:[#allocation3] sm:$0xff]
        %v521 = vld [vmem:[#allocation3 + $0x8] sm:$0xff]
        %v522 = vld [vmem:[#allocation3 + $0x10] sm:$0xff]
        %v523 = vld [vmem:[#allocation3 + $0x18] sm:$0xff]
        %v524 = vmul.f32 %v481, %v520
        %v525 = vmul.f32 %v483, %v521
        %v526 = vmul.f32 %v485, %v522
        %v527 = vmul.f32 %v487, %v523
        %v528 = vsel %vm459, %v513, 0.0
        %529 = vadd.xlane.f32.xlu0 %v528
        %v530 = vpop.xlane.xlu0 %529
        %v531 = vsel %vm459, %v515, 0.0
        %532 = vadd.xlane.f32.xlu0 %v531
        %v533 = vpop.xlane.xlu0 %532
        %v534 = vsel %vm459, %v517, 0.0
        %535 = vadd.xlane.f32.xlu0 %v534
        %v536 = vpop.xlane.xlu0 %535
        %v537 = vsel %vm459, %v519, 0.0
        %538 = vadd.xlane.f32.xlu0 %v537
        %v539 = vpop.xlane.xlu0 %538
        %v540 = vadd.f32 %v524, %v530
        %v541 = vadd.f32 %v525, %v533
        %v542 = vadd.f32 %v526, %v536
        %v543 = vadd.f32 %v527, %v539
        %vm544 = vcmask 7168
        %545 = vst.msk [vmem:[#allocation3] sm:$0xff] %vm544, %v540
        %546 = vst.msk [vmem:[#allocation3 + $0x8] sm:$0xff] %vm544, %v541
        %547 = vst.msk [vmem:[#allocation3 + $0x10] sm:$0xff] %vm544, %v542
        %548 = vst.msk [vmem:[#allocation3 + $0x18] sm:$0xff] %vm544, %v543
        %v549 = vld [vmem:[#allocation4] sm:$0xff]
        %v550 = vld [vmem:[#allocation4 + $0x8] sm:$0xff]
        %v551 = vld [vmem:[#allocation4 + $0x10] sm:$0xff]
        %v552 = vld [vmem:[#allocation4 + $0x18] sm:$0xff]
        %554 = vset.pattern.permute.xlu0 0
        %555 = vperm.xlu0 %554, %v481
        %v556 = vpop.permute.xlu0 %555
        %559 = vset.pattern.permute.xlu0 0
        %560 = vperm.xlu0 %559, %v483
        %v561 = vpop.permute.xlu0 %560
        %564 = vset.pattern.permute.xlu0 0
        %565 = vperm.xlu0 %564, %v485
        %v566 = vpop.permute.xlu0 %565
        %569 = vset.pattern.permute.xlu0 0
        %570 = vperm.xlu0 %569, %v487
        %v571 = vpop.permute.xlu0 %570
        %v573 = vmul.f32 %v556, %v549
        %v574 = vmul.f32 %v561, %v550
        %v575 = vmul.f32 %v566, %v551
        %v576 = vmul.f32 %v571, %v552
        %v577 = vpack.c.bf16 %v513, %v513
        %v578 = vpack.c.bf16 %v515, %v515
        %v579 = vpack.c.bf16 %v517, %v517
        %v580 = vpack.c.bf16 %v519, %v519
        %v583 = vunpack.c.l.b16 %v577
        %v584 = vunpack.c.l.b16 %v578
        %v585 = vpack.c.b16 %v584, %v583
        %v587 = vsel %vm459, %v585, 0
        %vm589 = vcmask 1043456
        %v591 = vsel %vm589, %v383, 0
        %593 = vmatpush.bf16.msra.mxu0 0
        %594 = vmatpush.bf16.msra.mxu0 0
        %595 = vmatpush.bf16.msra.mxu0 0
        %596 = vmatpush.bf16.msra.mxu0 0
        %597 = vmatpush.bf16.msra.mxu0 0
        %598 = vmatpush.bf16.msra.mxu0 0
        %599 = vmatpush.bf16.msra.mxu0 0
        %600 = vmatpush.bf16.msra.mxu0 %v591
        %601 = vmatmul.bf16.gmra.mxu0 %v587
        %v602 = vpop.f32.mrf.mxu0
        %v603 = vadd.f32 0.0, %v602
        %v604 = vpop.f32.mrf.mxu0
        %v605 = vadd.f32 0.0, %v604
        %606 = vdwg.mxu0
        %v609 = vunpack.c.l.b16 %v579
        %v610 = vunpack.c.l.b16 %v580
        %v611 = vpack.c.b16 %v610, %v609
        %v613 = vsel %vm459, %v611, 0
        %v616 = vsel %vm589, %v384, 0
        %618 = vmatpush.bf16.msra.mxu0 0
        %619 = vmatpush.bf16.msra.mxu0 0
        %620 = vmatpush.bf16.msra.mxu0 0
        %621 = vmatpush.bf16.msra.mxu0 0
        %622 = vmatpush.bf16.msra.mxu0 0
        %623 = vmatpush.bf16.msra.mxu0 0
        %624 = vmatpush.bf16.msra.mxu0 0
        %625 = vmatpush.bf16.msra.mxu0 %v616
        %626 = vmatmul.bf16.gmra.mxu0 %v613
        %v627 = vpop.f32.mrf.mxu0
        %v628 = vadd.f32 0.0, %v627
        %v629 = vpop.f32.mrf.mxu0
        %v630 = vadd.f32 0.0, %v629
        %631 = vdwg.mxu0
        %v632 = vadd.f32 %v573, %v603
        %v633 = vadd.f32 %v574, %v605
        %v634 = vadd.f32 %v575, %v628
        %v635 = vadd.f32 %v576, %v630
        %636 = vst.msk [vmem:[#allocation4] sm:$0xff] %vm390, %v632
        %637 = vst.msk [vmem:[#allocation4 + $0x8] sm:$0xff] %vm390, %v633
        %638 = vst.msk [vmem:[#allocation4 + $0x10] sm:$0xff] %vm390, %v634
        %639 = vst.msk [vmem:[#allocation4 + $0x18] sm:$0xff] %vm390, %v635
        %640 = vst.msk [vmem:[#allocation2] sm:$0xff] %vm544, %v472
        %641 = vst.msk [vmem:[#allocation2 + $0x8] sm:$0xff] %vm544, %v473
        %642 = vst.msk [vmem:[#allocation2 + $0x10] sm:$0xff] %vm544, %v474
        %643 = vst.msk [vmem:[#allocation2 + $0x18] sm:$0xff] %vm544, %v475
      $region48: #{fwd.8} parent=39 // pred_fallthru
        _
      // Predicated region
      $region49: #{fwd.8} parent=39 // pred_check
        %p644 = pneg %p352
      $region50: #{fwd.8} parent=39 // pred_check_branch
        %646 = sbr.rel (%p644) target = $region52
      $region51: #{fwd.8} parent=39 // pred_region
        %v647 = vld [vmem:[#allocation4] sm:$0xff]
        %v648 = vld [vmem:[#allocation4 + $0x8] sm:$0xff]
        %v649 = vld [vmem:[#allocation4 + $0x10] sm:$0xff]
        %v650 = vld [vmem:[#allocation4 + $0x18] sm:$0xff]
        %v651 = vld [vmem:[#allocation3] sm:$0xff]
        %v652 = vld [vmem:[#allocation3 + $0x8] sm:$0xff]
        %v653 = vld [vmem:[#allocation3 + $0x10] sm:$0xff]
        %v654 = vld [vmem:[#allocation3 + $0x18] sm:$0xff]
        %656 = vset.pattern.permute.xlu0 0
        %657 = vperm.xlu0 %656, %v651
        %v658 = vpop.permute.xlu0 %657
        %661 = vset.pattern.permute.xlu0 0
        %662 = vperm.xlu0 %661, %v652
        %v663 = vpop.permute.xlu0 %662
        %666 = vset.pattern.permute.xlu0 0
        %667 = vperm.xlu0 %666, %v653
        %v668 = vpop.permute.xlu0 %667
        %671 = vset.pattern.permute.xlu0 0
        %672 = vperm.xlu0 %671, %v654
        %v673 = vpop.permute.xlu0 %672
        %v675 = vrcp.pop %v658
        %v676 = vmul.f32 %v658, %v675
        %v677 = vsub.f32 1.0, %v676
        %v678 = vmul.f32 %v675, %v677
        %v679 = vadd.f32 %v675, %v678
        %vm680 = vweird.f32 %v658
        %vm681 = vweird.f32 %v675
        %vm682 = vmor %vm680, %vm681
        %v683 = vsel %vm682, %v675, %v679
        %v684 = vand.u32 2147483647, %v658
        %vm685 = vcmp.eq.f32.partialorder %v684, 8.507059e+37
        %v686 = vand.u32 %v658, 2147483648
        %v687 = vor.u32 1.1754944e-38, %v686
        %v688 = vsel %vm685, %v687, %v683
        %v689 = vmul.f32 %v647, %v688
        %v690 = vrcp.pop %v663
        %v691 = vmul.f32 %v663, %v690
        %v692 = vsub.f32 1.0, %v691
        %v693 = vmul.f32 %v690, %v692
        %v694 = vadd.f32 %v690, %v693
        %vm695 = vweird.f32 %v663
        %vm696 = vweird.f32 %v690
        %vm697 = vmor %vm695, %vm696
        %v698 = vsel %vm697, %v690, %v694
        %v699 = vand.u32 2147483647, %v663
        %vm700 = vcmp.eq.f32.partialorder %v699, 8.507059e+37
        %v701 = vand.u32 %v663, 2147483648
        %v702 = vor.u32 1.1754944e-38, %v701
        %v703 = vsel %vm700, %v702, %v698
        %v704 = vmul.f32 %v648, %v703
        %v705 = vrcp.pop %v668
        %v706 = vmul.f32 %v668, %v705
        %v707 = vsub.f32 1.0, %v706
        %v708 = vmul.f32 %v705, %v707
        %v709 = vadd.f32 %v705, %v708
        %vm710 = vweird.f32 %v668
        %vm711 = vweird.f32 %v705
        %vm712 = vmor %vm710, %vm711
        %v713 = vsel %vm712, %v705, %v709
        %v714 = vand.u32 2147483647, %v668
        %vm715 = vcmp.eq.f32.partialorder %v714, 8.507059e+37
        %v716 = vand.u32 %v668, 2147483648
        %v717 = vor.u32 1.1754944e-38, %v716
        %v718 = vsel %vm715, %v717, %v713
        %v719 = vmul.f32 %v649, %v718
        %v720 = vrcp.pop %v673
        %v721 = vmul.f32 %v673, %v720
        %v722 = vsub.f32 1.0, %v721
        %v723 = vmul.f32 %v720, %v722
        %v724 = vadd.f32 %v720, %v723
        %vm725 = vweird.f32 %v673
        %vm726 = vweird.f32 %v720
        %vm727 = vmor %vm725, %vm726
        %v728 = vsel %vm727, %v720, %v724
        %v729 = vand.u32 2147483647, %v673
        %vm730 = vcmp.eq.f32.partialorder %v729, 8.507059e+37
        %v731 = vand.u32 %v673, 2147483648
        %v732 = vor.u32 1.1754944e-38, %v731
        %v733 = vsel %vm730, %v732, %v728
        %v734 = vmul.f32 %v650, %v733
        %v735 = vrot.slane %v719, 4
        %vm736 = vcmask 1047556
        %v737 = vsel %vm736, %v735, %v689
        %v738 = vrot.slane %v689, 4
        %v739 = vsel %vm736, %v719, %v738
        %v741 = vunpack.c.l.s4 1983009808
        %v742 = vunpack.c.0.s8 %v741
        %v743 = vperm.slane %v737, %v742
        %v745 = vunpack.c.l.s4 1983009808
        %v746 = vunpack.c.0.s8 %v745
        %v747 = vperm.slane %v739, %v746
        %v748 = vrot.slane %v734, 4
        %v749 = vsel %vm736, %v748, %v704
        %v750 = vrot.slane %v704, 4
        %v751 = vsel %vm736, %v734, %v750
        %v753 = vunpack.c.l.s4 1983009808
        %v754 = vunpack.c.0.s8 %v753
        %v755 = vperm.slane %v749, %v754
        %v757 = vunpack.c.l.s4 1983009808
        %v758 = vunpack.c.0.s8 %v757
        %v759 = vperm.slane %v751, %v758
        %v760 = vrot.slane %v755, 4
        %v761 = vsel %vm736, %v760, %v743
        %v762 = vrot.slane %v743, 4
        %v763 = vsel %vm736, %v755, %v762
        %v765 = vunpack.c.l.s4 1934713408
        %v766 = vunpack.c.0.s8 %v765
        %v767 = vperm.slane %v761, %v766
        %v769 = vunpack.c.l.s4 1934713408
        %v770 = vunpack.c.0.s8 %v769
        %v771 = vperm.slane %v763, %v770
        %v772 = vrot.slane %v759, 4
        %v773 = vsel %vm736, %v772, %v747
        %v774 = vrot.slane %v747, 4
        %v775 = vsel %vm736, %v759, %v774
        %v777 = vunpack.c.l.s4 1934713408
        %v778 = vunpack.c.0.s8 %v777
        %v779 = vperm.slane %v773, %v778
        %v781 = vunpack.c.l.s4 1934713408
        %v782 = vunpack.c.0.s8 %v781
        %v783 = vperm.slane %v775, %v782
        %v784 = vrot.slane %v767, 4
        %v785 = vsel %vm736, 0.0, %v784
        %v786 = vrot.slane %v771, 4
        %v787 = vsel %vm736, 0.0, %v786
        %v788 = vrot.slane %v779, 4
        %v789 = vsel %vm736, 0.0, %v788
        %v790 = vrot.slane %v783, 4
        %v791 = vsel %vm736, 0.0, %v790
        %v792 = vsel %vm736, %v786, %v767
        %v794 = vunpack.c.l.s4 1983009808
        %v795 = vunpack.c.0.s8 %v794
        %v796 = vperm.slane %v792, %v795
        %v797 = vrot.slane %v787, 4
        %v798 = vsel %vm736, %v797, %v785
        %v800 = vunpack.c.l.s4 1983009808
        %v801 = vunpack.c.0.s8 %v800
        %v802 = vperm.slane %v798, %v801
        %v803 = vsel %vm736, %v790, %v779
        %v805 = vunpack.c.l.s4 1983009808
        %v806 = vunpack.c.0.s8 %v805
        %v807 = vperm.slane %v803, %v806
        %v808 = vrot.slane %v791, 4
        %v809 = vsel %vm736, %v808, %v789
        %v811 = vunpack.c.l.s4 1983009808
        %v812 = vunpack.c.0.s8 %v811
        %v813 = vperm.slane %v809, %v812
        %v814 = vrot.slane %v802, 4
        %v815 = vsel %vm736, %v814, %v796
        %v816 = vrot.slane %v796, 4
        %v817 = vsel %vm736, %v802, %v816
        %v819 = vunpack.c.l.s4 1934713408
        %v820 = vunpack.c.0.s8 %v819
        %v821 = vperm.slane %v815, %v820
        %v823 = vunpack.c.l.s4 1934713408
        %v824 = vunpack.c.0.s8 %v823
        %v825 = vperm.slane %v817, %v824
        %v826 = vrot.slane %v813, 4
        %v827 = vsel %vm736, %v826, %v807
        %v828 = vrot.slane %v807, 4
        %v829 = vsel %vm736, %v813, %v828
        %v831 = vunpack.c.l.s4 1934713408
        %v832 = vunpack.c.0.s8 %v831
        %v833 = vperm.slane %v827, %v832
        %v835 = vunpack.c.l.s4 1934713408
        %v836 = vunpack.c.0.s8 %v835
        %v837 = vperm.slane %v829, %v836
        %v838 = vrot.slane %v833, 4
        %v839 = vsel %vm736, %v838, %v821
        %v840 = vrot.slane %v821, 4
        %v841 = vsel %vm736, %v833, %v840
        %v842 = vrot.slane %v837, 4
        %v843 = vsel %vm736, %v842, %v825
        %v844 = vrot.slane %v825, 4
        %v845 = vsel %vm736, %v837, %v844
        %847 = vrot.lane.b32.xlu0 %v841, 16
        %v848 = vpop.permute.xlu0 %847
        %851 = vrot.lane.b32.xlu0 %v843, 32
        %v852 = vpop.permute.xlu0 %851
        %855 = vrot.lane.b32.xlu0 %v845, 48
        %v856 = vpop.permute.xlu0 %855
        %vm858 = vcmask 130048
        %v859 = vsel %vm858, %v839, %v848
        %vm860 = vcmask 261120
        %v861 = vsel %vm860, %v859, %v852
        %vm862 = vcmask 392192
        %v863 = vsel %vm862, %v861, %v856
        %v864 = vpack.c.bf16 %v863, %v863
        %v865 = vld [vmem:[%s4] sm:$0xf]
        %v866 = vld [vmem:[%s4 + $0x4] sm:$0xf]
        %v867 = vld [vmem:[%s4 + $0x8] sm:$0xf]
        %v868 = vld [vmem:[%s4 + $0xc] sm:$0xf]
        %v869 = vld [vmem:[%s4 + $0x10] sm:$0xf]
        %v870 = vld [vmem:[%s4 + $0x14] sm:$0xf]
        %v871 = vld [vmem:[%s4 + $0x18] sm:$0xf]
        %v872 = vld [vmem:[%s4 + $0x1c] sm:$0xf]
        %v873 = vld [vmem:[%s343] sm:$0xf]
        %v874 = vunpack.c.l.bf16 %v873
        %v883 = vunpack.c.l.b16 %v865
        %v884 = vunpack.c.l.b16 %v866
        %v885 = vunpack.c.l.b16 %v867
        %v886 = vunpack.c.l.b16 %v868
        %v887 = vunpack.c.l.b16 %v869
        %v888 = vunpack.c.l.b16 %v870
        %v889 = vunpack.c.l.b16 %v871
        %v890 = vunpack.c.l.b16 %v872
        %v891 = vpack.c.b16 %v884, %v883
        %v892 = vpack.c.b16 %v886, %v885
        %v893 = vpack.c.b16 %v888, %v887
        %v894 = vpack.c.b16 %v890, %v889
        %vm899 = vcmask 523264
        %v901 = vsel %vm899, %v864, 0
        %903 = vmatpush.bf16.msra.mxu0 0
        %904 = vmatpush.bf16.msra.mxu0 0
        %905 = vmatpush.bf16.msra.mxu0 0
        %906 = vmatpush.bf16.msra.mxu0 0
        %907 = vmatpush.bf16.msra.mxu0 %v894
        %908 = vmatpush.bf16.msra.mxu0 %v893
        %909 = vmatpush.bf16.msra.mxu0 %v892
        %910 = vmatpush.bf16.msra.mxu0 %v891
        %911 = vmatmul.bf16.gmra.mxu0 %v901
        %v912 = vpop.f32.mrf.mxu0
        %v913 = vadd.f32 %v874, %v912
        %v914 = vpop.f32.mrf.mxu0
        %915 = vdwg.mxu0
        %v916 = vpack.c.bf16 %v913, %v913
        %vm917 = vcmask 519168
        %918 = vst.msk [vmem:[%s350] sm:$0xf] %vm917, %v916
      $region52: #{fwd.8} parent=39 // pred_fallthru
        _
      %p919 = scmp.lt.s32.totalorder %s21, 1
      %s920 = scalar_select %p919, %s21, 1
      %p921 = scmp.lt.s32.totalorder %s22, 0
      %s922 = scalar_select %p921, %s22, 0
      %s923 = sadd.s32 %s922, %s920
      %s924 = smul.addr %s923, 4
      %s925 = scalar_lea.vmem %s5, %s924
      // Predicated region
      $region53: #{fwd.8} parent=39 // pred_check
        %p926 = pneg %p188
      $region54: #{fwd.8} parent=39 // pred_check_branch
        %928 = sbr.rel (%p926) target = $region56
      $region55: #{fwd.8} parent=39 // pred_region
        _
      $region56: #{fwd.8} parent=39 // pred_fallthru
        _
    $region40: #{fwd.8} parent=5 // pred_fallthru
      _
    %p929 = scmp.le.s32.totalorder 2, %s11
    // Predicated region
    $region57: #{fwd.8} parent=5 // pred_check
      %p930 = pneg %p929
    $region58: #{fwd.8} parent=5 // pred_check_branch
      %932 = sbr.rel (%p930) target = $region60
    $region59: #{fwd.8} parent=5 // pred_region
      %s933 = ssub.s32 %s11, 2
      // Predicated region
      $region61: #{fwd.8} parent=59 // pred_check
        %p934 = pneg %p194
      $region62: #{fwd.8} parent=59 // pred_check_branch
        %936 = sbr.rel (%p934) target = $region64
      $region63: #{fwd.8} parent=59 // pred_region
        %p937 = scmp.lt.s32.totalorder %s24, 1
        %s938 = scalar_select %p937, %s24, 1
        %p939 = scmp.lt.s32.totalorder %s25, 0
        %s940 = scalar_select %p939, %s25, 0
        %s941 = sadd.s32 %s940, %s938
        %s942 = smul.addr %s941, 4
        %s943 = scalar_lea.vmem %s5, %s942
      $region64: #{fwd.8} parent=59 // pred_fallthru
        _
    $region60: #{fwd.8} parent=5 // pred_fallthru
      _
  $region6: #{fwd.8} parent=0 // loop_footer
    %s15 = sadd.s32 1, %s11
  $region7: #{fwd.8} parent=0 // loop_footer_branch
    %10 = sbr.rel target = $region3
  $region8: #{fwd.8} parent=0 // loop_exit
    _

</llo_original>
